<compile_context>
chip_gen: v7x
topology: tpu7x:2x2x1
jax: 0.10.0
libtpu: 0.0.40
codegen_flags: <defaults>
</compile_context>

<pallas_src>
import functools

import numpy as np
import jax
import jax.numpy as jnp
from jax.experimental import pallas as pl
from jax.experimental.pallas import tpu as pltpu

LANE = 128       # lane-dense output width (pad every N to this)
ROW_ALIGN = 16   # M padding granularity (bf16 sublane packing)


def _round_up(x, m):
    return (x + m - 1) // m * m


# ----------------------------- Pallas kernels ------------------------------

def _conv_pool_kernel(p0_ref, p1_ref, p2_ref, p3_ref, w_ref, b_ref, o_ref):
    """Fused conv(im2col matmul) + bias + ReLU + 2x2 max-pool.

    p{0..3} hold the im2col patches of the four 2x2 pooling quadrants, so the
    element-wise max of the four matmul results IS the max-pool output.
    """
    w = w_ref[...]
    b = b_ref[...]

    def quad(p_ref):
        y = jnp.dot(p_ref[...], w, preferred_element_type=jnp.float32) + b
        return jnp.maximum(y, 0.0)

    pooled = jnp.maximum(jnp.maximum(quad(p0_ref), quad(p1_ref)),
                         jnp.maximum(quad(p2_ref), quad(p3_ref)))
    o_ref[...] = pooled.astype(o_ref.dtype)


def _mlp_kernel(x_ref, w1_ref, b1_ref, w2_ref, b2_ref, w3_ref, b3_ref, o_ref):
    """fc1+ReLU -> fc2+ReLU -> fc3 fused; intermediates stay in VMEM/vregs."""
    h = jnp.dot(x_ref[...], w1_ref[...], preferred_element_type=jnp.float32)
    h = jnp.maximum(h + b1_ref[...], 0.0).astype(jnp.bfloat16)
    h = jnp.dot(h, w2_ref[...], preferred_element_type=jnp.float32)
    h = jnp.maximum(h + b2_ref[...], 0.0).astype(jnp.bfloat16)
    h = jnp.dot(h, w3_ref[...], preferred_element_type=jnp.float32)
    o_ref[...] = (h + b3_ref[...]).astype(o_ref.dtype)


# ------------------------------- wrappers -----------------------------------

def _pooled_patch_quadrants(x_nhwc, k):
    """Four im2col matrices (one per 2x2 pool quadrant).

    Rows ordered (b, ph, pw); columns ordered (kh, kw, c).  XLA glue only
    (static strided slices + concat); all compute happens in the kernel.
    """
    B, H, W, C = x_nhwc.shape
    PH, PW = (H - k + 1) // 2, (W - k + 1) // 2
    quads = []
    for oy in range(2):
        for ox in range(2):
            taps = []
            for di in range(k):
                for dj in range(k):
                    taps.append(
                        x_nhwc[:, oy + di:oy + di + 2 * PH:2,
                               ox + dj:ox + dj + 2 * PW:2, :])
            p = jnp.concatenate(taps, axis=-1)           # (B, PH, PW, k*k*C)
            quads.append(p.reshape(B * PH * PW, k * k * C))
    return quads, (B, PH, PW)


def conv_relu_pool(x_nhwc, w_mat, b_row, k, *, tm=512):
    """nn.Conv2d(valid) + ReLU + MaxPool2d(2,2), one Pallas kernel."""
    quads, (B, PH, PW) = _pooled_patch_quadrants(x_nhwc, k)
    M, K = quads[0].shape
    N = w_mat.shape[1]                                   # = LANE (padded)
    tm = min(tm, _round_up(M, ROW_ALIGN))
    M_pad = _round_up(M, tm)
    quads = [jnp.pad(q, ((0, M_pad - M), (0, 0))).astype(jnp.bfloat16)
             for q in quads]
    cost = pl.CostEstimate(
        flops=4 * 2 * M_pad * K * N,
        transcendentals=0,
        bytes_accessed=4 * M_pad * K * 2 + K * N * 2 + M_pad * N * 2)
    out = pl.pallas_call(
        _conv_pool_kernel,
        out_shape=jax.ShapeDtypeStruct((M_pad, N), jnp.bfloat16),
        grid=(M_pad // tm,),
        in_specs=[pl.BlockSpec((tm, K), lambda i: (i, 0)) for _ in range(4)]
        + [
            pl.BlockSpec((K, N), lambda i: (0, 0)),
            pl.BlockSpec((1, N), lambda i: (0, 0)),
        ],
        out_specs=pl.BlockSpec((tm, N), lambda i: (i, 0)),
        compiler_params=pltpu.CompilerParams(
            dimension_semantics=("parallel",)),
        cost_estimate=cost,
    )(*quads, w_mat, b_row)
    return out[:M].reshape(B, PH, PW, N)


def mlp_head(x, w1, b1, w2, b2, w3, b3, *, tm=512):
    """fc1+ReLU -> fc2+ReLU -> fc3, one Pallas kernel, M-tiled."""
    M, K = x.shape
    N1, N2, N3 = w1.shape[1], w2.shape[1], w3.shape[1]
    tm = min(tm, _round_up(M, ROW_ALIGN))
    M_pad = _round_up(M, tm)
    x = jnp.pad(x, ((0, M_pad - M), (0, 0))).astype(jnp.bfloat16)
    cost = pl.CostEstimate(
        flops=2 * M_pad * (K * N1 + N1 * N2 + N2 * N3),
        transcendentals=0,
        bytes_accessed=M_pad * K * 2
        + (K * N1 + N1 * N2 + N2 * N3) * 2 + M_pad * N3 * 4)
    out = pl.pallas_call(
        _mlp_kernel,
        out_shape=jax.ShapeDtypeStruct((M_pad, N3), jnp.float32),
        grid=(M_pad // tm,),
        in_specs=[
            pl.BlockSpec((tm, K), lambda i: (i, 0)),
            pl.BlockSpec((K, N1), lambda i: (0, 0)),
            pl.BlockSpec((1, N1), lambda i: (0, 0)),
            pl.BlockSpec((N1, N2), lambda i: (0, 0)),
            pl.BlockSpec((1, N2), lambda i: (0, 0)),
            pl.BlockSpec((N2, N3), lambda i: (0, 0)),
            pl.BlockSpec((1, N3), lambda i: (0, 0)),
        ],
        out_specs=pl.BlockSpec((tm, N3), lambda i: (i, 0)),
        compiler_params=pltpu.CompilerParams(
            dimension_semantics=("parallel",)),
        cost_estimate=cost,
    )(x, w1, b1, w2, b2, w3, b3)
    return out[:M]


# ------------------------------- parameters ---------------------------------

def init_params(key):
    """Torch-equivalent layouts + init (uniform +-1/sqrt(fan_in))."""
    ks = jax.random.split(key, 10)

    def uni(k, shape, fan_in):
        bound = 1.0 / jnp.sqrt(float(fan_in))
        return jax.random.uniform(k, shape, jnp.float32, -bound, bound)

    return {
        "conv1_w": uni(ks[0], (6, 3, 5, 5), 3 * 5 * 5),
        "conv1_b": uni(ks[1], (6,), 3 * 5 * 5),
        "conv2_w": uni(ks[2], (16, 6, 5, 5), 6 * 5 * 5),
        "conv2_b": uni(ks[3], (16,), 6 * 5 * 5),
        "fc1_w": uni(ks[4], (400, 120), 400),   # rows in torch (C,H,W) order
        "fc1_b": uni(ks[5], (120,), 400),
        "fc2_w": uni(ks[6], (120, 84), 120),
        "fc2_b": uni(ks[7], (84,), 120),
        "fc3_w": uni(ks[8], (84, 10), 84),
        "fc3_b": uni(ks[9], (10,), 84),
    }


def prepare_params(params):
    """One-time repack: conv weights -> (k*k*C, 128) matmul matrices, fc1 rows
    permuted from torch's (C,H,W) flatten order to our (H,W,C) order, all N
    zero-padded to 128 lanes, weights cast to bf16, biases kept f32."""

    def pad_cols(a, n):
        return jnp.pad(a, ((0, 0), (0, n - a.shape[1])))

    def pad_rows(a, n):
        return jnp.pad(a, ((0, n - a.shape[0]), (0, 0)))

    def bias_row(b):
        return jnp.pad(b.reshape(1, -1),
                       ((0, 0), (0, LANE - b.shape[0]))).astype(jnp.float32)

    def conv_w(w):  # (OC, IC, KH, KW) -> (KH*KW*IC, 128) bf16
        oc = w.shape[0]
        m = jnp.transpose(w, (2, 3, 1, 0)).reshape(-1, oc)
        return pad_cols(m, LANE).astype(jnp.bfloat16)

    # fc1 row permutation: torch flatten order is (c, h, w); ours is (h, w, c).
    perm = np.transpose(np.arange(400).reshape(16, 5, 5), (1, 2, 0)).reshape(-1)

    fc1 = pad_cols(params["fc1_w"][perm, :], LANE).astype(jnp.bfloat16)
    fc2 = pad_cols(pad_rows(params["fc2_w"], LANE), LANE).astype(jnp.bfloat16)
    fc3 = pad_cols(pad_rows(params["fc3_w"], LANE), LANE).astype(jnp.bfloat16)

    return {
        "conv1_w": conv_w(params["conv1_w"]), "conv1_b": bias_row(params["conv1_b"]),
        "conv2_w": conv_w(params["conv2_w"]), "conv2_b": bias_row(params["conv2_b"]),
        "fc1_w": fc1, "fc1_b": bias_row(params["fc1_b"]),
        "fc2_w": fc2, "fc2_b": bias_row(params["fc2_b"]),
        "fc3_w": fc3, "fc3_b": bias_row(params["fc3_b"]),
    }


# ------------------------------ full network --------------------------------

@jax.jit
def net_forward(x_nchw, p):
    x = jnp.transpose(x_nchw, (0, 2, 3, 1))                          # -> NHWC
    x = conv_relu_pool(x, p["conv1_w"], p["conv1_b"], 5)[..., :6]    # (B,14,14,6)
    x = conv_relu_pool(x, p["conv2_w"], p["conv2_b"], 5)[..., :16]   # (B,5,5,16)
    B = x.shape[0]
    x = x.reshape(B, 5 * 5 * 16)   # (h,w,c) flatten; fc1 rows permuted to match
    logits = mlp_head(x, p["fc1_w"], p["fc1_b"], p["fc2_w"], p["fc2_b"],
                      p["fc3_w"], p["fc3_b"])[:, :10]
    return logits                                                    # (B, 10)


if __name__ == "__main__":
    key = jax.random.PRNGKey(0)
    k_x, k_p = jax.random.split(key)
    # The module's view(-1, 16*5*5) implies a 3x32x32 input (CIFAR-10 size).
    x = jax.random.normal(k_x, (2, 3, 32, 32), jnp.float32)
    params = prepare_params(init_params(k_p))

    out = jax.block_until_ready(net_forward(x, params))
    assert out.shape == (2, 10)
    assert bool(jnp.all(jnp.isfinite(out)))
    print("KERNEL_OK")
</pallas_src>

<mosaic_0001>
module attributes {stable_mosaic.version = 11 : i64} {
  func.func @_conv_pool_kernel(%arg0: i32, %arg1: memref<400x75xbf16, #tpu.memory_space<vmem>>, %arg2: memref<400x75xbf16, #tpu.memory_space<vmem>>, %arg3: memref<400x75xbf16, #tpu.memory_space<vmem>>, %arg4: memref<400x75xbf16, #tpu.memory_space<vmem>>, %arg5: memref<75x128xbf16, #tpu.memory_space<vmem>>, %arg6: memref<1x128xf32, #tpu.memory_space<vmem>>, %arg7: memref<400x128xbf16, #tpu.memory_space<vmem>>) attributes {dimension_semantics = [#tpu.dimension_semantics<parallel>], iteration_bounds = array<i64: 1>, scalar_prefetch = 0 : i64, scratch_operands = 0 : i64, tpu.core_type = #tpu.core_type<tc>, window_params = [{transform_indices = @transform_0, window_bounds = array<i64: 400, 75>}, {transform_indices = @transform_1, window_bounds = array<i64: 400, 75>}, {transform_indices = @transform_2, window_bounds = array<i64: 400, 75>}, {transform_indices = @transform_3, window_bounds = array<i64: 400, 75>}, {pipeline_mode = #tpu.pipeline_mode<synchronous>, transform_indices = @transform_4, window_bounds = array<i64: 75, 128>}, {pipeline_mode = #tpu.pipeline_mode<synchronous>, transform_indices = @transform_5, window_bounds = array<i64: 1, 128>}, {transform_indices = @transform_6, window_bounds = array<i64: 400, 128>}]} {
    %c0 = arith.constant 0 : index
    %c0_0 = arith.constant 0 : index
    %0 = vector.load %arg5[%c0, %c0_0] : memref<75x128xbf16, #tpu.memory_space<vmem>>, vector<75x128xbf16>
    %c0_1 = arith.constant 0 : index
    %c0_2 = arith.constant 0 : index
    %1 = vector.load %arg6[%c0_1, %c0_2] : memref<1x128xf32, #tpu.memory_space<vmem>>, vector<1x128xf32>
    %c0_3 = arith.constant 0 : index
    %c0_4 = arith.constant 0 : index
    %2 = vector.load %arg1[%c0_3, %c0_4] : memref<400x75xbf16, #tpu.memory_space<vmem>>, vector<400x75xbf16>
    %cst = arith.constant dense<0.000000e+00> : vector<400x128xf32>
    %3 = tpu.matmul %2, %0, %cst {dimension_numbers = #tpu.dot_dimension_numbers<[1], [0], [0], [1], [0, 0, 1, 1], [], []>} : vector<400x75xbf16>, vector<75x128xbf16>, vector<400x128xf32> -> vector<400x128xf32>
    %4 = vector.broadcast %1 : vector<1x128xf32> to vector<400x128xf32>
    %5 = arith.addf %3, %4 : vector<400x128xf32>
    %cst_5 = arith.constant 0.000000e+00 : f32
    %6 = vector.broadcast %cst_5 : f32 to vector<400x128xf32>
    %7 = arith.maximumf %5, %6 : vector<400x128xf32>
    %c0_6 = arith.constant 0 : index
    %c0_7 = arith.constant 0 : index
    %8 = vector.load %arg2[%c0_6, %c0_7] : memref<400x75xbf16, #tpu.memory_space<vmem>>, vector<400x75xbf16>
    %cst_8 = arith.constant dense<0.000000e+00> : vector<400x128xf32>
    %9 = tpu.matmul %8, %0, %cst_8 {dimension_numbers = #tpu.dot_dimension_numbers<[1], [0], [0], [1], [0, 0, 1, 1], [], []>} : vector<400x75xbf16>, vector<75x128xbf16>, vector<400x128xf32> -> vector<400x128xf32>
    %10 = vector.broadcast %1 : vector<1x128xf32> to vector<400x128xf32>
    %11 = arith.addf %9, %10 : vector<400x128xf32>
    %cst_9 = arith.constant 0.000000e+00 : f32
    %12 = vector.broadcast %cst_9 : f32 to vector<400x128xf32>
    %13 = arith.maximumf %11, %12 : vector<400x128xf32>
    %14 = arith.maximumf %7, %13 : vector<400x128xf32>
    %c0_10 = arith.constant 0 : index
    %c0_11 = arith.constant 0 : index
    %15 = vector.load %arg3[%c0_10, %c0_11] : memref<400x75xbf16, #tpu.memory_space<vmem>>, vector<400x75xbf16>
    %cst_12 = arith.constant dense<0.000000e+00> : vector<400x128xf32>
    %16 = tpu.matmul %15, %0, %cst_12 {dimension_numbers = #tpu.dot_dimension_numbers<[1], [0], [0], [1], [0, 0, 1, 1], [], []>} : vector<400x75xbf16>, vector<75x128xbf16>, vector<400x128xf32> -> vector<400x128xf32>
    %17 = vector.broadcast %1 : vector<1x128xf32> to vector<400x128xf32>
    %18 = arith.addf %16, %17 : vector<400x128xf32>
    %cst_13 = arith.constant 0.000000e+00 : f32
    %19 = vector.broadcast %cst_13 : f32 to vector<400x128xf32>
    %20 = arith.maximumf %18, %19 : vector<400x128xf32>
    %c0_14 = arith.constant 0 : index
    %c0_15 = arith.constant 0 : index
    %21 = vector.load %arg4[%c0_14, %c0_15] : memref<400x75xbf16, #tpu.memory_space<vmem>>, vector<400x75xbf16>
    %cst_16 = arith.constant dense<0.000000e+00> : vector<400x128xf32>
    %22 = tpu.matmul %21, %0, %cst_16 {dimension_numbers = #tpu.dot_dimension_numbers<[1], [0], [0], [1], [0, 0, 1, 1], [], []>} : vector<400x75xbf16>, vector<75x128xbf16>, vector<400x128xf32> -> vector<400x128xf32>
    %23 = vector.broadcast %1 : vector<1x128xf32> to vector<400x128xf32>
    %24 = arith.addf %22, %23 : vector<400x128xf32>
    %cst_17 = arith.constant 0.000000e+00 : f32
    %25 = vector.broadcast %cst_17 : f32 to vector<400x128xf32>
    %26 = arith.maximumf %24, %25 : vector<400x128xf32>
    %27 = arith.maximumf %20, %26 : vector<400x128xf32>
    %28 = arith.maximumf %14, %27 : vector<400x128xf32>
    %29 = arith.truncf %28 : vector<400x128xf32> to vector<400x128xbf16>
    %c0_18 = arith.constant 0 : index
    %c0_19 = arith.constant 0 : index
    %30 = vector.load %arg7[%c0_18, %c0_19] : memref<400x128xbf16, #tpu.memory_space<vmem>>, vector<400x128xbf16>
    tpu.vector_store %arg7[%c0_18, %c0_19], %29 {strides = array<i32>} : memref<400x128xbf16, #tpu.memory_space<vmem>>, vector<400x128xbf16>,
    return
  }
  func.func @transform_0(%arg0: i32) -> (i32, i32) {
    %c0_i32 = arith.constant 0 : i32
    %c0_i32_0 = arith.constant 0 : i32
    return %arg0, %c0_i32 : i32, i32
  }
  func.func @transform_1(%arg0: i32) -> (i32, i32) {
    %c0_i32 = arith.constant 0 : i32
    %c0_i32_0 = arith.constant 0 : i32
    return %arg0, %c0_i32 : i32, i32
  }
  func.func @transform_2(%arg0: i32) -> (i32, i32) {
    %c0_i32 = arith.constant 0 : i32
    %c0_i32_0 = arith.constant 0 : i32
    return %arg0, %c0_i32 : i32, i32
  }
  func.func @transform_3(%arg0: i32) -> (i32, i32) {
    %c0_i32 = arith.constant 0 : i32
    %c0_i32_0 = arith.constant 0 : i32
    return %arg0, %c0_i32 : i32, i32
  }
  func.func @transform_4(%arg0: i32) -> (i32, i32) {
    %c0_i32 = arith.constant 0 : i32
    %c0_i32_0 = arith.constant 0 : i32
    %c0_i32_1 = arith.constant 0 : i32
    return %c0_i32, %c0_i32_0 : i32, i32
  }
  func.func @transform_5(%arg0: i32) -> (i32, i32) {
    %c0_i32 = arith.constant 0 : i32
    %c0_i32_0 = arith.constant 0 : i32
    %c0_i32_1 = arith.constant 0 : i32
    return %c0_i32, %c0_i32_0 : i32, i32
  }
  func.func @transform_6(%arg0: i32) -> (i32, i32) {
    %c0_i32 = arith.constant 0 : i32
    %c0_i32_0 = arith.constant 0 : i32
    return %arg0, %c0_i32 : i32, i32
  }
}

module attributes {stable_mosaic.version = 11 : i64} {
  func.func @_conv_pool_kernel(%arg0: i32, %arg1: memref<64x150xbf16, #tpu.memory_space<vmem>>, %arg2: memref<64x150xbf16, #tpu.memory_space<vmem>>, %arg3: memref<64x150xbf16, #tpu.memory_space<vmem>>, %arg4: memref<64x150xbf16, #tpu.memory_space<vmem>>, %arg5: memref<150x128xbf16, #tpu.memory_space<vmem>>, %arg6: memref<1x128xf32, #tpu.memory_space<vmem>>, %arg7: memref<64x128xbf16, #tpu.memory_space<vmem>>) attributes {dimension_semantics = [#tpu.dimension_semantics<parallel>], iteration_bounds = array<i64: 1>, scalar_prefetch = 0 : i64, scratch_operands = 0 : i64, tpu.core_type = #tpu.core_type<tc>, window_params = [{transform_indices = @transform_0, window_bounds = array<i64: 64, 150>}, {transform_indices = @transform_1, window_bounds = array<i64: 64, 150>}, {transform_indices = @transform_2, window_bounds = array<i64: 64, 150>}, {transform_indices = @transform_3, window_bounds = array<i64: 64, 150>}, {pipeline_mode = #tpu.pipeline_mode<synchronous>, transform_indices = @transform_4, window_bounds = array<i64: 150, 128>}, {pipeline_mode = #tpu.pipeline_mode<synchronous>, transform_indices = @transform_5, window_bounds = array<i64: 1, 128>}, {transform_indices = @transform_6, window_bounds = array<i64: 64, 128>}]} {
    %c0 = arith.constant 0 : index
    %c0_0 = arith.constant 0 : index
    %0 = vector.load %arg5[%c0, %c0_0] : memref<150x128xbf16, #tpu.memory_space<vmem>>, vector<150x128xbf16>
    %c0_1 = arith.constant 0 : index
    %c0_2 = arith.constant 0 : index
    %1 = vector.load %arg6[%c0_1, %c0_2] : memref<1x128xf32, #tpu.memory_space<vmem>>, vector<1x128xf32>
    %c0_3 = arith.constant 0 : index
    %c0_4 = arith.constant 0 : index
    %2 = vector.load %arg1[%c0_3, %c0_4] : memref<64x150xbf16, #tpu.memory_space<vmem>>, vector<64x150xbf16>
    %cst = arith.constant dense<0.000000e+00> : vector<64x128xf32>
    %3 = tpu.matmul %2, %0, %cst {dimension_numbers = #tpu.dot_dimension_numbers<[1], [0], [0], [1], [0, 0, 1, 1], [], []>} : vector<64x150xbf16>, vector<150x128xbf16>, vector<64x128xf32> -> vector<64x128xf32>
    %4 = vector.broadcast %1 : vector<1x128xf32> to vector<64x128xf32>
    %5 = arith.addf %3, %4 : vector<64x128xf32>
    %cst_5 = arith.constant 0.000000e+00 : f32
    %6 = vector.broadcast %cst_5 : f32 to vector<64x128xf32>
    %7 = arith.maximumf %5, %6 : vector<64x128xf32>
    %c0_6 = arith.constant 0 : index
    %c0_7 = arith.constant 0 : index
    %8 = vector.load %arg2[%c0_6, %c0_7] : memref<64x150xbf16, #tpu.memory_space<vmem>>, vector<64x150xbf16>
    %cst_8 = arith.constant dense<0.000000e+00> : vector<64x128xf32>
    %9 = tpu.matmul %8, %0, %cst_8 {dimension_numbers = #tpu.dot_dimension_numbers<[1], [0], [0], [1], [0, 0, 1, 1], [], []>} : vector<64x150xbf16>, vector<150x128xbf16>, vector<64x128xf32> -> vector<64x128xf32>
    %10 = vector.broadcast %1 : vector<1x128xf32> to vector<64x128xf32>
    %11 = arith.addf %9, %10 : vector<64x128xf32>
    %cst_9 = arith.constant 0.000000e+00 : f32
    %12 = vector.broadcast %cst_9 : f32 to vector<64x128xf32>
    %13 = arith.maximumf %11, %12 : vector<64x128xf32>
    %14 = arith.maximumf %7, %13 : vector<64x128xf32>
    %c0_10 = arith.constant 0 : index
    %c0_11 = arith.constant 0 : index
    %15 = vector.load %arg3[%c0_10, %c0_11] : memref<64x150xbf16, #tpu.memory_space<vmem>>, vector<64x150xbf16>
    %cst_12 = arith.constant dense<0.000000e+00> : vector<64x128xf32>
    %16 = tpu.matmul %15, %0, %cst_12 {dimension_numbers = #tpu.dot_dimension_numbers<[1], [0], [0], [1], [0, 0, 1, 1], [], []>} : vector<64x150xbf16>, vector<150x128xbf16>, vector<64x128xf32> -> vector<64x128xf32>
    %17 = vector.broadcast %1 : vector<1x128xf32> to vector<64x128xf32>
    %18 = arith.addf %16, %17 : vector<64x128xf32>
    %cst_13 = arith.constant 0.000000e+00 : f32
    %19 = vector.broadcast %cst_13 : f32 to vector<64x128xf32>
    %20 = arith.maximumf %18, %19 : vector<64x128xf32>
    %c0_14 = arith.constant 0 : index
    %c0_15 = arith.constant 0 : index
    %21 = vector.load %arg4[%c0_14, %c0_15] : memref<64x150xbf16, #tpu.memory_space<vmem>>, vector<64x150xbf16>
    %cst_16 = arith.constant dense<0.000000e+00> : vector<64x128xf32>
    %22 = tpu.matmul %21, %0, %cst_16 {dimension_numbers = #tpu.dot_dimension_numbers<[1], [0], [0], [1], [0, 0, 1, 1], [], []>} : vector<64x150xbf16>, vector<150x128xbf16>, vector<64x128xf32> -> vector<64x128xf32>
    %23 = vector.broadcast %1 : vector<1x128xf32> to vector<64x128xf32>
    %24 = arith.addf %22, %23 : vector<64x128xf32>
    %cst_17 = arith.constant 0.000000e+00 : f32
    %25 = vector.broadcast %cst_17 : f32 to vector<64x128xf32>
    %26 = arith.maximumf %24, %25 : vector<64x128xf32>
    %27 = arith.maximumf %20, %26 : vector<64x128xf32>
    %28 = arith.maximumf %14, %27 : vector<64x128xf32>
    %29 = arith.truncf %28 : vector<64x128xf32> to vector<64x128xbf16>
    %c0_18 = arith.constant 0 : index
    %c0_19 = arith.constant 0 : index
    %30 = vector.load %arg7[%c0_18, %c0_19] : memref<64x128xbf16, #tpu.memory_space<vmem>>, vector<64x128xbf16>
    tpu.vector_store %arg7[%c0_18, %c0_19], %29 {strides = array<i32>} : memref<64x128xbf16, #tpu.memory_space<vmem>>, vector<64x128xbf16>,
    return
  }
  func.func @transform_0(%arg0: i32) -> (i32, i32) {
    %c0_i32 = arith.constant 0 : i32
    %c0_i32_0 = arith.constant 0 : i32
    return %arg0, %c0_i32 : i32, i32
  }
  func.func @transform_1(%arg0: i32) -> (i32, i32) {
    %c0_i32 = arith.constant 0 : i32
    %c0_i32_0 = arith.constant 0 : i32
    return %arg0, %c0_i32 : i32, i32
  }
  func.func @transform_2(%arg0: i32) -> (i32, i32) {
    %c0_i32 = arith.constant 0 : i32
    %c0_i32_0 = arith.constant 0 : i32
    return %arg0, %c0_i32 : i32, i32
  }
  func.func @transform_3(%arg0: i32) -> (i32, i32) {
    %c0_i32 = arith.constant 0 : i32
    %c0_i32_0 = arith.constant 0 : i32
    return %arg0, %c0_i32 : i32, i32
  }
  func.func @transform_4(%arg0: i32) -> (i32, i32) {
    %c0_i32 = arith.constant 0 : i32
    %c0_i32_0 = arith.constant 0 : i32
    %c0_i32_1 = arith.constant 0 : i32
    return %c0_i32, %c0_i32_0 : i32, i32
  }
  func.func @transform_5(%arg0: i32) -> (i32, i32) {
    %c0_i32 = arith.constant 0 : i32
    %c0_i32_0 = arith.constant 0 : i32
    %c0_i32_1 = arith.constant 0 : i32
    return %c0_i32, %c0_i32_0 : i32, i32
  }
  func.func @transform_6(%arg0: i32) -> (i32, i32) {
    %c0_i32 = arith.constant 0 : i32
    %c0_i32_0 = arith.constant 0 : i32
    return %arg0, %c0_i32 : i32, i32
  }
}

module attributes {stable_mosaic.version = 11 : i64} {
  func.func @_mlp_kernel(%arg0: i32, %arg1: memref<16x400xbf16, #tpu.memory_space<vmem>>, %arg2: memref<400x128xbf16, #tpu.memory_space<vmem>>, %arg3: memref<1x128xf32, #tpu.memory_space<vmem>>, %arg4: memref<128x128xbf16, #tpu.memory_space<vmem>>, %arg5: memref<1x128xf32, #tpu.memory_space<vmem>>, %arg6: memref<128x128xbf16, #tpu.memory_space<vmem>>, %arg7: memref<1x128xf32, #tpu.memory_space<vmem>>, %arg8: memref<16x128xf32, #tpu.memory_space<vmem>>) attributes {dimension_semantics = [#tpu.dimension_semantics<parallel>], iteration_bounds = array<i64: 1>, scalar_prefetch = 0 : i64, scratch_operands = 0 : i64, tpu.core_type = #tpu.core_type<tc>, window_params = [{transform_indices = @transform_0, window_bounds = array<i64: 16, 400>}, {pipeline_mode = #tpu.pipeline_mode<synchronous>, transform_indices = @transform_1, window_bounds = array<i64: 400, 128>}, {pipeline_mode = #tpu.pipeline_mode<synchronous>, transform_indices = @transform_2, window_bounds = array<i64: 1, 128>}, {pipeline_mode = #tpu.pipeline_mode<synchronous>, transform_indices = @transform_3, window_bounds = array<i64: 128, 128>}, {pipeline_mode = #tpu.pipeline_mode<synchronous>, transform_indices = @transform_4, window_bounds = array<i64: 1, 128>}, {pipeline_mode = #tpu.pipeline_mode<synchronous>, transform_indices = @transform_5, window_bounds = array<i64: 128, 128>}, {pipeline_mode = #tpu.pipeline_mode<synchronous>, transform_indices = @transform_6, window_bounds = array<i64: 1, 128>}, {transform_indices = @transform_7, window_bounds = array<i64: 16, 128>}]} {
    %c0 = arith.constant 0 : index
    %c0_0 = arith.constant 0 : index
    %0 = vector.load %arg1[%c0, %c0_0] : memref<16x400xbf16, #tpu.memory_space<vmem>>, vector<16x400xbf16>
    %c0_1 = arith.constant 0 : index
    %c0_2 = arith.constant 0 : index
    %1 = vector.load %arg2[%c0_1, %c0_2] : memref<400x128xbf16, #tpu.memory_space<vmem>>, vector<400x128xbf16>
    %cst = arith.constant dense<0.000000e+00> : vector<16x128xf32>
    %2 = tpu.matmul %0, %1, %cst {dimension_numbers = #tpu.dot_dimension_numbers<[1], [0], [0], [1], [0, 0, 1, 1], [], []>} : vector<16x400xbf16>, vector<400x128xbf16>, vector<16x128xf32> -> vector<16x128xf32>
    %c0_3 = arith.constant 0 : index
    %c0_4 = arith.constant 0 : index
    %3 = vector.load %arg3[%c0_3, %c0_4] : memref<1x128xf32, #tpu.memory_space<vmem>>, vector<1x128xf32>
    %4 = vector.broadcast %3 : vector<1x128xf32> to vector<16x128xf32>
    %5 = arith.addf %2, %4 : vector<16x128xf32>
    %cst_5 = arith.constant 0.000000e+00 : f32
    %6 = vector.broadcast %cst_5 : f32 to vector<16x128xf32>
    %7 = arith.maximumf %5, %6 : vector<16x128xf32>
    %8 = arith.truncf %7 : vector<16x128xf32> to vector<16x128xbf16>
    %c0_6 = arith.constant 0 : index
    %c0_7 = arith.constant 0 : index
    %9 = vector.load %arg4[%c0_6, %c0_7] : memref<128x128xbf16, #tpu.memory_space<vmem>>, vector<128x128xbf16>
    %cst_8 = arith.constant dense<0.000000e+00> : vector<16x128xf32>
    %10 = tpu.matmul %8, %9, %cst_8 {dimension_numbers = #tpu.dot_dimension_numbers<[1], [0], [0], [1], [0, 0, 1, 1], [], []>} : vector<16x128xbf16>, vector<128x128xbf16>, vector<16x128xf32> -> vector<16x128xf32>
    %c0_9 = arith.constant 0 : index
    %c0_10 = arith.constant 0 : index
    %11 = vector.load %arg5[%c0_9, %c0_10] : memref<1x128xf32, #tpu.memory_space<vmem>>, vector<1x128xf32>
    %12 = vector.broadcast %11 : vector<1x128xf32> to vector<16x128xf32>
    %13 = arith.addf %10, %12 : vector<16x128xf32>
    %cst_11 = arith.constant 0.000000e+00 : f32
    %14 = vector.broadcast %cst_11 : f32 to vector<16x128xf32>
    %15 = arith.maximumf %13, %14 : vector<16x128xf32>
    %16 = arith.truncf %15 : vector<16x128xf32> to vector<16x128xbf16>
    %c0_12 = arith.constant 0 : index
    %c0_13 = arith.constant 0 : index
    %17 = vector.load %arg6[%c0_12, %c0_13] : memref<128x128xbf16, #tpu.memory_space<vmem>>, vector<128x128xbf16>
    %cst_14 = arith.constant dense<0.000000e+00> : vector<16x128xf32>
    %18 = tpu.matmul %16, %17, %cst_14 {dimension_numbers = #tpu.dot_dimension_numbers<[1], [0], [0], [1], [0, 0, 1, 1], [], []>} : vector<16x128xbf16>, vector<128x128xbf16>, vector<16x128xf32> -> vector<16x128xf32>
    %c0_15 = arith.constant 0 : index
    %c0_16 = arith.constant 0 : index
    %19 = vector.load %arg7[%c0_15, %c0_16] : memref<1x128xf32, #tpu.memory_space<vmem>>, vector<1x128xf32>
    %20 = vector.broadcast %19 : vector<1x128xf32> to vector<16x128xf32>
    %21 = arith.addf %18, %20 : vector<16x128xf32>
    %c0_17 = arith.constant 0 : index
    %c0_18 = arith.constant 0 : index
    %22 = vector.load %arg8[%c0_17, %c0_18] : memref<16x128xf32, #tpu.memory_space<vmem>>, vector<16x128xf32>
    tpu.vector_store %arg8[%c0_17, %c0_18], %21 {strides = array<i32>} : memref<16x128xf32, #tpu.memory_space<vmem>>, vector<16x128xf32>,
    return
  }
  func.func @transform_0(%arg0: i32) -> (i32, i32) {
    %c0_i32 = arith.constant 0 : i32
    %c0_i32_0 = arith.constant 0 : i32
    return %arg0, %c0_i32 : i32, i32
  }
  func.func @transform_1(%arg0: i32) -> (i32, i32) {
    %c0_i32 = arith.constant 0 : i32
    %c0_i32_0 = arith.constant 0 : i32
    %c0_i32_1 = arith.constant 0 : i32
    return %c0_i32, %c0_i32_0 : i32, i32
  }
  func.func @transform_2(%arg0: i32) -> (i32, i32) {
    %c0_i32 = arith.constant 0 : i32
    %c0_i32_0 = arith.constant 0 : i32
    %c0_i32_1 = arith.constant 0 : i32
    return %c0_i32, %c0_i32_0 : i32, i32
  }
  func.func @transform_3(%arg0: i32) -> (i32, i32) {
    %c0_i32 = arith.constant 0 : i32
    %c0_i32_0 = arith.constant 0 : i32
    %c0_i32_1 = arith.constant 0 : i32
    return %c0_i32, %c0_i32_0 : i32, i32
  }
  func.func @transform_4(%arg0: i32) -> (i32, i32) {
    %c0_i32 = arith.constant 0 : i32
    %c0_i32_0 = arith.constant 0 : i32
    %c0_i32_1 = arith.constant 0 : i32
    return %c0_i32, %c0_i32_0 : i32, i32
  }
  func.func @transform_5(%arg0: i32) -> (i32, i32) {
    %c0_i32 = arith.constant 0 : i32
    %c0_i32_0 = arith.constant 0 : i32
    %c0_i32_1 = arith.constant 0 : i32
    return %c0_i32, %c0_i32_0 : i32, i32
  }
  func.func @transform_6(%arg0: i32) -> (i32, i32) {
    %c0_i32 = arith.constant 0 : i32
    %c0_i32_0 = arith.constant 0 : i32
    %c0_i32_1 = arith.constant 0 : i32
    return %c0_i32, %c0_i32_0 : i32, i32
  }
  func.func @transform_7(%arg0: i32) -> (i32, i32) {
    %c0_i32 = arith.constant 0 : i32
    %c0_i32_0 = arith.constant 0 : i32
    return %arg0, %c0_i32 : i32, i32
  }
}

</mosaic_0001>

<llo_original>
// kernel: net_forward.3
$region0: #{net_forward.3}
  #allocation0 [shape = 'u32[]', space=smem, size = 0x4, offset = 0x4, fixed_abs, tag = 'smem constant byte address 0x4 - core index']
  #allocation1 [shape = 'u32[144,128]{1,0:T(1,128)}', space=vmem, size = 0x12000, scoped, tag = 'internal scratch']
  %s0 = inlined_call_operand.vmem [shape: bf16[400,75], index: 0, kind: input, shape index: {}]
  %s1 = inlined_call_operand.vmem [shape: bf16[400,75], index: 1, kind: input, shape index: {}]
  %s2 = inlined_call_operand.vmem [shape: bf16[400,75], index: 2, kind: input, shape index: {}]
  %s3 = inlined_call_operand.vmem [shape: bf16[400,75], index: 3, kind: input, shape index: {}]
  %s4 = inlined_call_operand.vmem [shape: bf16[75,128], index: 4, kind: input, shape index: {}]
  %s5 = inlined_call_operand.vmem [shape: f32[1,128], index: 5, kind: input, shape index: {}]
  %s6 = inlined_call_operand.vmem [shape: bf16[400,128], index: 6, kind: output, shape index: {}]
  %s7 = sld [smem:[#allocation0]]
  $region34: #{net_forward.3} parent=0
    _
  %s9 = ssub.s32 1, %s7
  %s10 = scalar_select 0, %s9, %s7
  // Predicated region
  $region2: #{net_forward.3} parent=0 // pred_check
    _
  $region3: #{net_forward.3} parent=0 // pred_check_branch
    %12 = sbr.rel (0) target = $region5
  $region4: #{net_forward.3} parent=0 // pred_region
    _
  $region5: #{net_forward.3} parent=0 // pred_fallthru
    _
  // Predicated region
  $region6: #{net_forward.3} parent=0 // pred_check
    _
  $region7: #{net_forward.3} parent=0 // pred_check_branch
    %14 = sbr.rel (0) target = $region9
  $region8: #{net_forward.3} parent=0 // pred_region
    _
  $region9: #{net_forward.3} parent=0 // pred_fallthru
    _
  // Predicated region
  $region10: #{net_forward.3} parent=0 // pred_check
    _
  $region11: #{net_forward.3} parent=0 // pred_check_branch
    %16 = sbr.rel (0) target = $region13
  $region12: #{net_forward.3} parent=0 // pred_region
    _
  $region13: #{net_forward.3} parent=0 // pred_fallthru
    _
  // Predicated region
  $region14: #{net_forward.3} parent=0 // pred_check
    _
  $region15: #{net_forward.3} parent=0 // pred_check_branch
    %18 = sbr.rel (0) target = $region17
  $region16: #{net_forward.3} parent=0 // pred_region
    _
  $region17: #{net_forward.3} parent=0 // pred_fallthru
    _
  // Predicated region
  $region18: #{net_forward.3} parent=0 // pred_check
    _
  $region19: #{net_forward.3} parent=0 // pred_check_branch
    %20 = sbr.rel (0) target = $region21
  $region20: #{net_forward.3} parent=0 // pred_region
    _
  $region21: #{net_forward.3} parent=0 // pred_fallthru
    _
  // Predicated region
  $region22: #{net_forward.3} parent=0 // pred_check
    _
  $region23: #{net_forward.3} parent=0 // pred_check_branch
    %22 = sbr.rel (0) target = $region25
  $region24: #{net_forward.3} parent=0 // pred_region
    _
  $region25: #{net_forward.3} parent=0 // pred_fallthru
    _
  %v24 = vld [vmem:[%s4] sm:$0xf]
  %v25 = vld [vmem:[%s4 + $0x4] sm:$0xf]
  %v26 = vld [vmem:[%s4 + $0x8] sm:$0xf]
  %v27 = vld [vmem:[%s4 + $0xc] sm:$0xf]
  %v28 = vld [vmem:[%s4 + $0x10] sm:$0xf]
  %v29 = vld [vmem:[%s4 + $0x14] sm:$0xf]
  %v30 = vld [vmem:[%s4 + $0x18] sm:$0xf]
  %v31 = vld [vmem:[%s4 + $0x1c] sm:$0xf]
  %v32 = vld [vmem:[%s4 + $0x20] sm:$0xf]
  %v33 = vld [vmem:[%s4 + $0x24] sm:$0x3]
  %v34 = vld [vmem:[%s5] sm:$0x1]
  %v35 = vld [vmem:[%s0] sm:$0xf]
  %v36 = vld [vmem:[%s0 + $0x4] sm:$0xf]
  %v37 = vld [vmem:[%s0 + $0x8] sm:$0xf]
  %v38 = vld [vmem:[%s0 + $0xc] sm:$0xf]
  %v39 = vld [vmem:[%s0 + $0x10] sm:$0xf]
  %v40 = vld [vmem:[%s0 + $0x14] sm:$0xf]
  %v41 = vld [vmem:[%s0 + $0x18] sm:$0xf]
  %v42 = vld [vmem:[%s0 + $0x1c] sm:$0xf]
  %v43 = vld [vmem:[%s0 + $0x20] sm:$0xf]
  %v44 = vld [vmem:[%s0 + $0x24] sm:$0xf]
  %v45 = vld [vmem:[%s0 + $0x28] sm:$0xf]
  %v46 = vld [vmem:[%s0 + $0x2c] sm:$0xf]
  %v47 = vld [vmem:[%s0 + $0x30] sm:$0xf]
  %v48 = vld [vmem:[%s0 + $0x34] sm:$0xf]
  %v49 = vld [vmem:[%s0 + $0x38] sm:$0xf]
  %v50 = vld [vmem:[%s0 + $0x3c] sm:$0xf]
  %v51 = vld [vmem:[%s0 + $0x40] sm:$0xf]
  %v52 = vld [vmem:[%s0 + $0x44] sm:$0xf]
  %v53 = vld [vmem:[%s0 + $0x48] sm:$0xf]
  %v54 = vld [vmem:[%s0 + $0x4c] sm:$0xf]
  %v55 = vld [vmem:[%s0 + $0x50] sm:$0xf]
  %v56 = vld [vmem:[%s0 + $0x54] sm:$0xf]
  %v57 = vld [vmem:[%s0 + $0x58] sm:$0xf]
  %v58 = vld [vmem:[%s0 + $0x5c] sm:$0xf]
  %v59 = vld [vmem:[%s0 + $0x60] sm:$0xf]
  %v60 = vld [vmem:[%s0 + $0x64] sm:$0xf]
  %v61 = vld [vmem:[%s0 + $0x68] sm:$0xf]
  %v62 = vld [vmem:[%s0 + $0x6c] sm:$0xf]
  %v63 = vld [vmem:[%s0 + $0x70] sm:$0xf]
  %v64 = vld [vmem:[%s0 + $0x74] sm:$0xf]
  %v65 = vld [vmem:[%s0 + $0x78] sm:$0xf]
  %v66 = vld [vmem:[%s0 + $0x7c] sm:$0xf]
  %v67 = vld [vmem:[%s0 + $0x80] sm:$0xf]
  %v68 = vld [vmem:[%s0 + $0x84] sm:$0xf]
  %v69 = vld [vmem:[%s0 + $0x88] sm:$0xf]
  %v70 = vld [vmem:[%s0 + $0x8c] sm:$0xf]
  %v71 = vld [vmem:[%s0 + $0x90] sm:$0xf]
  %v72 = vld [vmem:[%s0 + $0x94] sm:$0xf]
  %v73 = vld [vmem:[%s0 + $0x98] sm:$0xf]
  %v74 = vld [vmem:[%s0 + $0x9c] sm:$0xf]
  %v75 = vld [vmem:[%s0 + $0xa0] sm:$0xf]
  %v76 = vld [vmem:[%s0 + $0xa4] sm:$0xf]
  %v77 = vld [vmem:[%s0 + $0xa8] sm:$0xf]
  %v78 = vld [vmem:[%s0 + $0xac] sm:$0xf]
  %v79 = vld [vmem:[%s0 + $0xb0] sm:$0xf]
  %v80 = vld [vmem:[%s0 + $0xb4] sm:$0xf]
  %v81 = vld [vmem:[%s0 + $0xb8] sm:$0xf]
  %v82 = vld [vmem:[%s0 + $0xbc] sm:$0xf]
  %v83 = vld [vmem:[%s0 + $0xc0] sm:$0xf]
  %v84 = vld [vmem:[%s0 + $0xc4] sm:$0xf]
  %v86 = vlaneseq
  %v87 = vshrl.u32 %v86, 7
  %v88 = vsub.s32 0, %v87
  %v89 = vrot.slane %v34, %v88
  %v141 = vunpack.c.l.b16 %v35
  %v142 = vunpack.c.l.b16 %v36
  %v143 = vunpack.c.l.b16 %v37
  %v144 = vunpack.c.l.b16 %v38
  %v145 = vunpack.c.l.b16 %v39
  %v146 = vunpack.c.l.b16 %v40
  %v147 = vunpack.c.l.b16 %v41
  %v148 = vunpack.c.l.b16 %v42
  %v149 = vunpack.c.l.b16 %v43
  %v150 = vunpack.c.l.b16 %v44
  %v151 = vunpack.c.l.b16 %v45
  %v152 = vunpack.c.l.b16 %v46
  %v153 = vunpack.c.l.b16 %v47
  %v154 = vunpack.c.l.b16 %v48
  %v155 = vunpack.c.l.b16 %v49
  %v156 = vunpack.c.l.b16 %v50
  %v157 = vunpack.c.l.b16 %v51
  %v158 = vunpack.c.l.b16 %v52
  %v159 = vunpack.c.l.b16 %v53
  %v160 = vunpack.c.l.b16 %v54
  %v161 = vunpack.c.l.b16 %v55
  %v162 = vunpack.c.l.b16 %v56
  %v163 = vunpack.c.l.b16 %v57
  %v164 = vunpack.c.l.b16 %v58
  %v165 = vunpack.c.l.b16 %v59
  %v166 = vunpack.c.l.b16 %v60
  %v167 = vunpack.c.l.b16 %v61
  %v168 = vunpack.c.l.b16 %v62
  %v169 = vunpack.c.l.b16 %v63
  %v170 = vunpack.c.l.b16 %v64
  %v171 = vunpack.c.l.b16 %v65
  %v172 = vunpack.c.l.b16 %v66
  %v173 = vunpack.c.l.b16 %v67
  %v174 = vunpack.c.l.b16 %v68
  %v175 = vunpack.c.l.b16 %v69
  %v176 = vunpack.c.l.b16 %v70
  %v177 = vunpack.c.l.b16 %v71
  %v178 = vunpack.c.l.b16 %v72
  %v179 = vunpack.c.l.b16 %v73
  %v180 = vunpack.c.l.b16 %v74
  %v181 = vunpack.c.l.b16 %v75
  %v182 = vunpack.c.l.b16 %v76
  %v183 = vunpack.c.l.b16 %v77
  %v184 = vunpack.c.l.b16 %v78
  %v185 = vunpack.c.l.b16 %v79
  %v186 = vunpack.c.l.b16 %v80
  %v187 = vunpack.c.l.b16 %v81
  %v188 = vunpack.c.l.b16 %v82
  %v189 = vunpack.c.l.b16 %v83
  %v190 = vunpack.c.l.b16 %v84
  %v191 = vpack.c.b16 %v142, %v141
  %v192 = vpack.c.b16 %v144, %v143
  %v193 = vpack.c.b16 %v146, %v145
  %v194 = vpack.c.b16 %v148, %v147
  %v195 = vpack.c.b16 %v150, %v149
  %v196 = vpack.c.b16 %v152, %v151
  %v197 = vpack.c.b16 %v154, %v153
  %v198 = vpack.c.b16 %v156, %v155
  %v199 = vpack.c.b16 %v158, %v157
  %v200 = vpack.c.b16 %v160, %v159
  %v201 = vpack.c.b16 %v162, %v161
  %v202 = vpack.c.b16 %v164, %v163
  %v203 = vpack.c.b16 %v166, %v165
  %v204 = vpack.c.b16 %v168, %v167
  %v205 = vpack.c.b16 %v170, %v169
  %v206 = vpack.c.b16 %v172, %v171
  %v207 = vpack.c.b16 %v174, %v173
  %v208 = vpack.c.b16 %v176, %v175
  %v209 = vpack.c.b16 %v178, %v177
  %v210 = vpack.c.b16 %v180, %v179
  %v211 = vpack.c.b16 %v182, %v181
  %v212 = vpack.c.b16 %v184, %v183
  %v213 = vpack.c.b16 %v186, %v185
  %v214 = vpack.c.b16 %v188, %v187
  %v215 = vpack.c.b16 %v190, %v189
  %v226 = vunpack.c.l.b16 %v24
  %v227 = vunpack.c.l.b16 %v25
  %v228 = vunpack.c.l.b16 %v26
  %v229 = vunpack.c.l.b16 %v27
  %v230 = vunpack.c.l.b16 %v28
  %v231 = vunpack.c.l.b16 %v29
  %v232 = vunpack.c.l.b16 %v30
  %v233 = vunpack.c.l.b16 %v31
  %v234 = vunpack.c.l.b16 %v32
  %v235 = vunpack.c.l.b16 %v33
  %v236 = vpack.c.b16 %v227, %v226
  %v237 = vpack.c.b16 %v229, %v228
  %v238 = vpack.c.b16 %v231, %v230
  %v239 = vpack.c.b16 %v233, %v232
  %v240 = vpack.c.b16 %v235, %v234
  %vm245 = vcmask 613376
  %v247 = vsel %vm245, %v191, 0
  %v250 = vsel %vm245, %v192, 0
  %v253 = vsel %vm245, %v193, 0
  %v256 = vsel %vm245, %v194, 0
  %v259 = vsel %vm245, %v195, 0
  %v262 = vsel %vm245, %v196, 0
  %v265 = vsel %vm245, %v197, 0
  %v268 = vsel %vm245, %v198, 0
  %v271 = vsel %vm245, %v199, 0
  %v274 = vsel %vm245, %v200, 0
  %v277 = vsel %vm245, %v201, 0
  %v280 = vsel %vm245, %v202, 0
  %v283 = vsel %vm245, %v203, 0
  %v286 = vsel %vm245, %v204, 0
  %v289 = vsel %vm245, %v205, 0
  %v292 = vsel %vm245, %v206, 0
  %v295 = vsel %vm245, %v207, 0
  %v298 = vsel %vm245, %v208, 0
  %v301 = vsel %vm245, %v209, 0
  %v304 = vsel %vm245, %v210, 0
  %v307 = vsel %vm245, %v211, 0
  %v310 = vsel %vm245, %v212, 0
  %v313 = vsel %vm245, %v213, 0
  %v316 = vsel %vm245, %v214, 0
  %v319 = vsel %vm245, %v215, 0
  %vm321 = vcmask 1044480
  %vm322 = vcmask 1045504
  %v323 = vsel %vm321, 4294967295, 65535
  %v324 = vsel %vm322, %v323, 0
  %v326 = vand.u32 %v240, %v324
  %328 = vmatprep.subr.bf16.mxu0 0
  %329 = vmatpush1.bf16.msra.mxu0 %v236
  %330 = vmatprep.subr.bf16.mxu0 0
  %331 = vmatpush1.bf16.msra.mxu0 %v237
  %332 = vmatprep.subr.bf16.mxu0 0
  %333 = vmatpush1.bf16.msra.mxu0 %v238
  %334 = vmatprep.subr.bf16.mxu0 0
  %335 = vmatpush1.bf16.msra.mxu0 %v239
  %336 = vmatprep.subr.bf16.mxu0 0
  %337 = vmatpush1.bf16.msra.mxu0 %v326
  %338 = vmatprep.subr.bf16.mxu0 0
  %339 = vmatpush1.bf16.msra.mxu0 0
  %340 = vmatprep.subr.bf16.mxu0 0
  %341 = vmatpush1.bf16.msra.mxu0 0
  %342 = vmatprep.subr.bf16.mxu0 0
  %343 = vmatpush1.bf16.msra.mxu0 0
  %344 = vmatprep.subr.bf16.mxu0 0
  %345 = vmatpush1.bf16.msra.mxu0 0
  %346 = vmatprep.subr.bf16.mxu0 0
  %347 = vmatpush1.bf16.msra.mxu0 0
  %348 = vmatprep.subr.bf16.mxu0 0
  %349 = vmatpush1.bf16.msra.mxu0 0
  %350 = vmatprep.subr.bf16.mxu0 0
  %351 = vmatpush1.bf16.msra.mxu0 0
  %352 = vmatprep.subr.bf16.mxu0 0
  %353 = vmatpush1.bf16.msra.mxu0 0
  %354 = vmatprep.subr.bf16.mxu0 0
  %355 = vmatpush1.bf16.msra.mxu0 0
  %356 = vmatprep.subr.bf16.mxu0 0
  %357 = vmatpush1.bf16.msra.mxu0 0
  %358 = vmatprep.subr.bf16.mxu0 0
  %359 = vmatpush1.bf16.msra.mxu0 0
  %360 = vmatprep.mubr.bf16.mxu0 0
  %361 = vmatmul.mubr.bf16.gmra.mrb[0].mxu0 %v247
  %v362 = vpop.f32.mrb[0].mxu0
  %v363 = vadd.f32 %v89, %v362
  %v364 = vpop.f32.mrb[0].mxu0
  %v365 = vpop.f32.mrb[0].mxu0
  %v366 = vadd.f32 %v89, %v365
  %v367 = vpop.f32.mrb[0].mxu0
  %368 = vmatprep.mubr.bf16.mxu0 0
  %369 = vmatmul.mubr.bf16.gmra.mrb[0].mxu0 %v250
  %v370 = vpop.f32.mrb[0].mxu0
  %v371 = vadd.f32 %v89, %v370
  %v372 = vpop.f32.mrb[0].mxu0
  %v373 = vpop.f32.mrb[0].mxu0
  %v374 = vadd.f32 %v89, %v373
  %v375 = vpop.f32.mrb[0].mxu0
  %376 = vmatprep.mubr.bf16.mxu0 0
  %377 = vmatmul.mubr.bf16.gmra.mrb[0].mxu0 %v253
  %v378 = vpop.f32.mrb[0].mxu0
  %v379 = vadd.f32 %v89, %v378
  %v380 = vpop.f32.mrb[0].mxu0
  %v381 = vpop.f32.mrb[0].mxu0
  %v382 = vadd.f32 %v89, %v381
  %v383 = vpop.f32.mrb[0].mxu0
  %384 = vmatprep.mubr.bf16.mxu0 0
  %385 = vmatmul.mubr.bf16.gmra.mrb[0].mxu0 %v256
  %v386 = vpop.f32.mrb[0].mxu0
  %v387 = vadd.f32 %v89, %v386
  %v388 = vpop.f32.mrb[0].mxu0
  %v389 = vpop.f32.mrb[0].mxu0
  %v390 = vadd.f32 %v89, %v389
  %v391 = vpop.f32.mrb[0].mxu0
  %392 = vmatprep.mubr.bf16.mxu0 0
  %393 = vmatmul.mubr.bf16.gmra.mrb[0].mxu0 %v259
  %v394 = vpop.f32.mrb[0].mxu0
  %v395 = vadd.f32 %v89, %v394
  %v396 = vpop.f32.mrb[0].mxu0
  %v397 = vpop.f32.mrb[0].mxu0
  %v398 = vadd.f32 %v89, %v397
  %v399 = vpop.f32.mrb[0].mxu0
  %400 = vmatprep.mubr.bf16.mxu0 0
  %401 = vmatmul.mubr.bf16.gmra.mrb[0].mxu0 %v262
  %v402 = vpop.f32.mrb[0].mxu0
  %v403 = vadd.f32 %v89, %v402
  %v404 = vpop.f32.mrb[0].mxu0
  %v405 = vpop.f32.mrb[0].mxu0
  %v406 = vadd.f32 %v89, %v405
  %v407 = vpop.f32.mrb[0].mxu0
  %408 = vmatprep.mubr.bf16.mxu0 0
  %409 = vmatmul.mubr.bf16.gmra.mrb[0].mxu0 %v265
  %v410 = vpop.f32.mrb[0].mxu0
  %v411 = vadd.f32 %v89, %v410
  %v412 = vpop.f32.mrb[0].mxu0
  %v413 = vpop.f32.mrb[0].mxu0
  %v414 = vadd.f32 %v89, %v413
  %v415 = vpop.f32.mrb[0].mxu0
  %416 = vmatprep.mubr.bf16.mxu0 0
  %417 = vmatmul.mubr.bf16.gmra.mrb[0].mxu0 %v268
  %v418 = vpop.f32.mrb[0].mxu0
  %v419 = vadd.f32 %v89, %v418
  %v420 = vpop.f32.mrb[0].mxu0
  %v421 = vpop.f32.mrb[0].mxu0
  %v422 = vadd.f32 %v89, %v421
  %v423 = vpop.f32.mrb[0].mxu0
  %424 = vmatprep.mubr.bf16.mxu0 0
  %425 = vmatmul.mubr.bf16.gmra.mrb[0].mxu0 %v271
  %v426 = vpop.f32.mrb[0].mxu0
  %v427 = vadd.f32 %v89, %v426
  %v428 = vpop.f32.mrb[0].mxu0
  %v429 = vpop.f32.mrb[0].mxu0
  %v430 = vadd.f32 %v89, %v429
  %v431 = vpop.f32.mrb[0].mxu0
  %432 = vmatprep.mubr.bf16.mxu0 0
  %433 = vmatmul.mubr.bf16.gmra.mrb[0].mxu0 %v274
  %v434 = vpop.f32.mrb[0].mxu0
  %v435 = vadd.f32 %v89, %v434
  %v436 = vpop.f32.mrb[0].mxu0
  %v437 = vpop.f32.mrb[0].mxu0
  %v438 = vadd.f32 %v89, %v437
  %v439 = vpop.f32.mrb[0].mxu0
  %440 = vmatprep.mubr.bf16.mxu0 0
  %441 = vmatmul.mubr.bf16.gmra.mrb[0].mxu0 %v277
  %v442 = vpop.f32.mrb[0].mxu0
  %v443 = vadd.f32 %v89, %v442
  %v444 = vpop.f32.mrb[0].mxu0
  %v445 = vpop.f32.mrb[0].mxu0
  %v446 = vadd.f32 %v89, %v445
  %v447 = vpop.f32.mrb[0].mxu0
  %448 = vmatprep.mubr.bf16.mxu0 0
  %449 = vmatmul.mubr.bf16.gmra.mrb[0].mxu0 %v280
  %v450 = vpop.f32.mrb[0].mxu0
  %v451 = vadd.f32 %v89, %v450
  %v452 = vpop.f32.mrb[0].mxu0
  %v453 = vpop.f32.mrb[0].mxu0
  %v454 = vadd.f32 %v89, %v453
  %v455 = vpop.f32.mrb[0].mxu0
  %456 = vmatprep.mubr.bf16.mxu0 0
  %457 = vmatmul.mubr.bf16.gmra.mrb[0].mxu0 %v283
  %v458 = vpop.f32.mrb[0].mxu0
  %v459 = vadd.f32 %v89, %v458
  %v460 = vpop.f32.mrb[0].mxu0
  %v461 = vpop.f32.mrb[0].mxu0
  %v462 = vadd.f32 %v89, %v461
  %v463 = vpop.f32.mrb[0].mxu0
  %464 = vmatprep.mubr.bf16.mxu0 0
  %465 = vmatmul.mubr.bf16.gmra.mrb[0].mxu0 %v286
  %v466 = vpop.f32.mrb[0].mxu0
  %v467 = vadd.f32 %v89, %v466
  %v468 = vpop.f32.mrb[0].mxu0
  %v469 = vpop.f32.mrb[0].mxu0
  %v470 = vadd.f32 %v89, %v469
  %v471 = vpop.f32.mrb[0].mxu0
  %472 = vmatprep.mubr.bf16.mxu0 0
  %473 = vmatmul.mubr.bf16.gmra.mrb[0].mxu0 %v289
  %v474 = vpop.f32.mrb[0].mxu0
  %v475 = vadd.f32 %v89, %v474
  %v476 = vpop.f32.mrb[0].mxu0
  %v477 = vpop.f32.mrb[0].mxu0
  %v478 = vadd.f32 %v89, %v477
  %v479 = vpop.f32.mrb[0].mxu0
  %480 = vmatprep.mubr.bf16.mxu0 0
  %481 = vmatmul.mubr.bf16.gmra.mrb[0].mxu0 %v292
  %v482 = vpop.f32.mrb[0].mxu0
  %v483 = vadd.f32 %v89, %v482
  %v484 = vpop.f32.mrb[0].mxu0
  %v485 = vpop.f32.mrb[0].mxu0
  %v486 = vadd.f32 %v89, %v485
  %v487 = vpop.f32.mrb[0].mxu0
  %488 = vmatprep.mubr.bf16.mxu0 0
  %489 = vmatmul.mubr.bf16.gmra.mrb[0].mxu0 %v295
  %v490 = vpop.f32.mrb[0].mxu0
  %v491 = vadd.f32 %v89, %v490
  %v492 = vpop.f32.mrb[0].mxu0
  %v493 = vpop.f32.mrb[0].mxu0
  %v494 = vadd.f32 %v89, %v493
  %v495 = vpop.f32.mrb[0].mxu0
  %496 = vmatprep.mubr.bf16.mxu0 0
  %497 = vmatmul.mubr.bf16.gmra.mrb[0].mxu0 %v298
  %v498 = vpop.f32.mrb[0].mxu0
  %v499 = vadd.f32 %v89, %v498
  %v500 = vpop.f32.mrb[0].mxu0
  %v501 = vpop.f32.mrb[0].mxu0
  %v502 = vadd.f32 %v89, %v501
  %v503 = vpop.f32.mrb[0].mxu0
  %504 = vmatprep.mubr.bf16.mxu0 0
  %505 = vmatmul.mubr.bf16.gmra.mrb[0].mxu0 %v301
  %v506 = vpop.f32.mrb[0].mxu0
  %v507 = vadd.f32 %v89, %v506
  %v508 = vpop.f32.mrb[0].mxu0
  %v509 = vpop.f32.mrb[0].mxu0
  %v510 = vadd.f32 %v89, %v509
  %v511 = vpop.f32.mrb[0].mxu0
  %512 = vmatprep.mubr.bf16.mxu0 0
  %513 = vmatmul.mubr.bf16.gmra.mrb[0].mxu0 %v304
  %v514 = vpop.f32.mrb[0].mxu0
  %v515 = vadd.f32 %v89, %v514
  %v516 = vpop.f32.mrb[0].mxu0
  %v517 = vpop.f32.mrb[0].mxu0
  %v518 = vadd.f32 %v89, %v517
  %v519 = vpop.f32.mrb[0].mxu0
  %520 = vmatprep.mubr.bf16.mxu0 0
  %521 = vmatmul.mubr.bf16.gmra.mrb[0].mxu0 %v307
  %v522 = vpop.f32.mrb[0].mxu0
  %v523 = vadd.f32 %v89, %v522
  %v524 = vpop.f32.mrb[0].mxu0
  %v525 = vpop.f32.mrb[0].mxu0
  %v526 = vadd.f32 %v89, %v525
  %v527 = vpop.f32.mrb[0].mxu0
  %528 = vmatprep.mubr.bf16.mxu0 0
  %529 = vmatmul.mubr.bf16.gmra.mrb[0].mxu0 %v310
  %v530 = vpop.f32.mrb[0].mxu0
  %v531 = vadd.f32 %v89, %v530
  %v532 = vpop.f32.mrb[0].mxu0
  %v533 = vpop.f32.mrb[0].mxu0
  %v534 = vadd.f32 %v89, %v533
  %v535 = vpop.f32.mrb[0].mxu0
  %536 = vmatprep.mubr.bf16.mxu0 0
  %537 = vmatmul.mubr.bf16.gmra.mrb[0].mxu0 %v313
  %v538 = vpop.f32.mrb[0].mxu0
  %v539 = vadd.f32 %v89, %v538
  %v540 = vpop.f32.mrb[0].mxu0
  %v541 = vpop.f32.mrb[0].mxu0
  %v542 = vadd.f32 %v89, %v541
  %v543 = vpop.f32.mrb[0].mxu0
  %544 = vmatprep.mubr.bf16.mxu0 0
  %545 = vmatmul.mubr.bf16.gmra.mrb[0].mxu0 %v316
  %v546 = vpop.f32.mrb[0].mxu0
  %v547 = vadd.f32 %v89, %v546
  %v548 = vpop.f32.mrb[0].mxu0
  %v549 = vpop.f32.mrb[0].mxu0
  %v550 = vadd.f32 %v89, %v549
  %v551 = vpop.f32.mrb[0].mxu0
  %552 = vmatprep.mubr.bf16.mxu0 0
  %553 = vmatmul.mubr.bf16.gmra.mrb[0].mxu0 %v319
  %v554 = vpop.f32.mrb[0].mxu0
  %v555 = vadd.f32 %v89, %v554
  %v556 = vpop.f32.mrb[0].mxu0
  %v557 = vpop.f32.mrb[0].mxu0
  %v558 = vadd.f32 %v89, %v557
  %v559 = vpop.f32.mrb[0].mxu0
  %560 = vdwg.mxu0
  %v561 = vmax.f32 %v363, 0.0
  %v562 = vmax.f32 %v366, 0.0
  %v563 = vmax.f32 %v371, 0.0
  %v564 = vmax.f32 %v374, 0.0
  %v565 = vmax.f32 %v379, 0.0
  %v566 = vmax.f32 %v382, 0.0
  %v567 = vmax.f32 %v387, 0.0
  %v568 = vmax.f32 %v390, 0.0
  %v569 = vmax.f32 %v395, 0.0
  %v570 = vmax.f32 %v398, 0.0
  %v571 = vmax.f32 %v403, 0.0
  %v572 = vmax.f32 %v406, 0.0
  %v573 = vmax.f32 %v411, 0.0
  %v574 = vmax.f32 %v414, 0.0
  %v575 = vmax.f32 %v419, 0.0
  %v576 = vmax.f32 %v422, 0.0
  %v577 = vmax.f32 %v427, 0.0
  %v578 = vmax.f32 %v430, 0.0
  %v579 = vmax.f32 %v435, 0.0
  %v580 = vmax.f32 %v438, 0.0
  %v581 = vmax.f32 %v443, 0.0
  %v582 = vmax.f32 %v446, 0.0
  %v583 = vmax.f32 %v451, 0.0
  %v584 = vmax.f32 %v454, 0.0
  %v585 = vmax.f32 %v459, 0.0
  %v586 = vmax.f32 %v462, 0.0
  %v587 = vmax.f32 %v467, 0.0
  %v588 = vmax.f32 %v470, 0.0
  %v589 = vmax.f32 %v475, 0.0
  %v590 = vmax.f32 %v478, 0.0
  %v591 = vmax.f32 %v483, 0.0
  %v592 = vmax.f32 %v486, 0.0
  %v593 = vmax.f32 %v491, 0.0
  %v594 = vmax.f32 %v494, 0.0
  %v595 = vmax.f32 %v499, 0.0
  %v596 = vmax.f32 %v502, 0.0
  %v597 = vmax.f32 %v507, 0.0
  %v598 = vmax.f32 %v510, 0.0
  %v599 = vmax.f32 %v515, 0.0
  %v600 = vmax.f32 %v518, 0.0
  %v601 = vmax.f32 %v523, 0.0
  %v602 = vmax.f32 %v526, 0.0
  %v603 = vmax.f32 %v531, 0.0
  %v604 = vmax.f32 %v534, 0.0
  %v605 = vmax.f32 %v539, 0.0
  %v606 = vmax.f32 %v542, 0.0
  %v607 = vmax.f32 %v547, 0.0
  %v608 = vmax.f32 %v550, 0.0
  %v609 = vmax.f32 %v555, 0.0
  %v610 = vmax.f32 %v558, 0.0
  %v611 = vld [vmem:[%s1] sm:$0xf]
  %v612 = vld [vmem:[%s1 + $0x4] sm:$0xf]
  %v613 = vld [vmem:[%s1 + $0x8] sm:$0xf]
  %v614 = vld [vmem:[%s1 + $0xc] sm:$0xf]
  %v615 = vld [vmem:[%s1 + $0x10] sm:$0xf]
  %v616 = vld [vmem:[%s1 + $0x14] sm:$0xf]
  %v617 = vld [vmem:[%s1 + $0x18] sm:$0xf]
  %v618 = vld [vmem:[%s1 + $0x1c] sm:$0xf]
  %v619 = vld [vmem:[%s1 + $0x20] sm:$0xf]
  %v620 = vld [vmem:[%s1 + $0x24] sm:$0xf]
  %v621 = vld [vmem:[%s1 + $0x28] sm:$0xf]
  %v622 = vld [vmem:[%s1 + $0x2c] sm:$0xf]
  %v623 = vld [vmem:[%s1 + $0x30] sm:$0xf]
  %v624 = vld [vmem:[%s1 + $0x34] sm:$0xf]
  %v625 = vld [vmem:[%s1 + $0x38] sm:$0xf]
  %v626 = vld [vmem:[%s1 + $0x3c] sm:$0xf]
  %v627 = vld [vmem:[%s1 + $0x40] sm:$0xf]
  %v628 = vld [vmem:[%s1 + $0x44] sm:$0xf]
  %v629 = vld [vmem:[%s1 + $0x48] sm:$0xf]
  %v630 = vld [vmem:[%s1 + $0x4c] sm:$0xf]
  %v631 = vld [vmem:[%s1 + $0x50] sm:$0xf]
  %v632 = vld [vmem:[%s1 + $0x54] sm:$0xf]
  %v633 = vld [vmem:[%s1 + $0x58] sm:$0xf]
  %v634 = vld [vmem:[%s1 + $0x5c] sm:$0xf]
  %v635 = vld [vmem:[%s1 + $0x60] sm:$0xf]
  %v636 = vld [vmem:[%s1 + $0x64] sm:$0xf]
  %v637 = vld [vmem:[%s1 + $0x68] sm:$0xf]
  %v638 = vld [vmem:[%s1 + $0x6c] sm:$0xf]
  %v639 = vld [vmem:[%s1 + $0x70] sm:$0xf]
  %v640 = vld [vmem:[%s1 + $0x74] sm:$0xf]
  %v641 = vld [vmem:[%s1 + $0x78] sm:$0xf]
  %v642 = vld [vmem:[%s1 + $0x7c] sm:$0xf]
  %v643 = vld [vmem:[%s1 + $0x80] sm:$0xf]
  %v644 = vld [vmem:[%s1 + $0x84] sm:$0xf]
  %v645 = vld [vmem:[%s1 + $0x88] sm:$0xf]
  %v646 = vld [vmem:[%s1 + $0x8c] sm:$0xf]
  %v647 = vld [vmem:[%s1 + $0x90] sm:$0xf]
  %v648 = vld [vmem:[%s1 + $0x94] sm:$0xf]
  %v649 = vld [vmem:[%s1 + $0x98] sm:$0xf]
  %v650 = vld [vmem:[%s1 + $0x9c] sm:$0xf]
  %v651 = vld [vmem:[%s1 + $0xa0] sm:$0xf]
  %v652 = vld [vmem:[%s1 + $0xa4] sm:$0xf]
  %v653 = vld [vmem:[%s1 + $0xa8] sm:$0xf]
  %v654 = vld [vmem:[%s1 + $0xac] sm:$0xf]
  %v655 = vld [vmem:[%s1 + $0xb0] sm:$0xf]
  %v656 = vld [vmem:[%s1 + $0xb4] sm:$0xf]
  %v657 = vld [vmem:[%s1 + $0xb8] sm:$0xf]
  %v658 = vld [vmem:[%s1 + $0xbc] sm:$0xf]
  %v659 = vld [vmem:[%s1 + $0xc0] sm:$0xf]
  %v660 = vld [vmem:[%s1 + $0xc4] sm:$0xf]
  %v711 = vunpack.c.l.b16 %v611
  %v712 = vunpack.c.l.b16 %v612
  %v713 = vunpack.c.l.b16 %v613
  %v714 = vunpack.c.l.b16 %v614
  %v715 = vunpack.c.l.b16 %v615
  %v716 = vunpack.c.l.b16 %v616
  %v717 = vunpack.c.l.b16 %v617
  %v718 = vunpack.c.l.b16 %v618
  %v719 = vunpack.c.l.b16 %v619
  %v720 = vunpack.c.l.b16 %v620
  %v721 = vunpack.c.l.b16 %v621
  %v722 = vunpack.c.l.b16 %v622
  %v723 = vunpack.c.l.b16 %v623
  %v724 = vunpack.c.l.b16 %v624
  %v725 = vunpack.c.l.b16 %v625
  %v726 = vunpack.c.l.b16 %v626
  %v727 = vunpack.c.l.b16 %v627
  %v728 = vunpack.c.l.b16 %v628
  %v729 = vunpack.c.l.b16 %v629
  %v730 = vunpack.c.l.b16 %v630
  %v731 = vunpack.c.l.b16 %v631
  %v732 = vunpack.c.l.b16 %v632
  %v733 = vunpack.c.l.b16 %v633
  %v734 = vunpack.c.l.b16 %v634
  %v735 = vunpack.c.l.b16 %v635
  %v736 = vunpack.c.l.b16 %v636
  %v737 = vunpack.c.l.b16 %v637
  %v738 = vunpack.c.l.b16 %v638
  %v739 = vunpack.c.l.b16 %v639
  %v740 = vunpack.c.l.b16 %v640
  %v741 = vunpack.c.l.b16 %v641
  %v742 = vunpack.c.l.b16 %v642
  %v743 = vunpack.c.l.b16 %v643
  %v744 = vunpack.c.l.b16 %v644
  %v745 = vunpack.c.l.b16 %v645
  %v746 = vunpack.c.l.b16 %v646
  %v747 = vunpack.c.l.b16 %v647
  %v748 = vunpack.c.l.b16 %v648
  %v749 = vunpack.c.l.b16 %v649
  %v750 = vunpack.c.l.b16 %v650
  %v751 = vunpack.c.l.b16 %v651
  %v752 = vunpack.c.l.b16 %v652
  %v753 = vunpack.c.l.b16 %v653
  %v754 = vunpack.c.l.b16 %v654
  %v755 = vunpack.c.l.b16 %v655
  %v756 = vunpack.c.l.b16 %v656
  %v757 = vunpack.c.l.b16 %v657
  %v758 = vunpack.c.l.b16 %v658
  %v759 = vunpack.c.l.b16 %v659
  %v760 = vunpack.c.l.b16 %v660
  %v761 = vpack.c.b16 %v712, %v711
  %v762 = vpack.c.b16 %v714, %v713
  %v763 = vpack.c.b16 %v716, %v715
  %v764 = vpack.c.b16 %v718, %v717
  %v765 = vpack.c.b16 %v720, %v719
  %v766 = vpack.c.b16 %v722, %v721
  %v767 = vpack.c.b16 %v724, %v723
  %v768 = vpack.c.b16 %v726, %v725
  %v769 = vpack.c.b16 %v728, %v727
  %v770 = vpack.c.b16 %v730, %v729
  %v771 = vpack.c.b16 %v732, %v731
  %v772 = vpack.c.b16 %v734, %v733
  %v773 = vpack.c.b16 %v736, %v735
  %v774 = vpack.c.b16 %v738, %v737
  %v775 = vpack.c.b16 %v740, %v739
  %v776 = vpack.c.b16 %v742, %v741
  %v777 = vpack.c.b16 %v744, %v743
  %v778 = vpack.c.b16 %v746, %v745
  %v779 = vpack.c.b16 %v748, %v747
  %v780 = vpack.c.b16 %v750, %v749
  %v781 = vpack.c.b16 %v752, %v751
  %v782 = vpack.c.b16 %v754, %v753
  %v783 = vpack.c.b16 %v756, %v755
  %v784 = vpack.c.b16 %v758, %v757
  %v785 = vpack.c.b16 %v760, %v759
  %v787 = vsel %vm245, %v761, 0
  %v790 = vsel %vm245, %v762, 0
  %v793 = vsel %vm245, %v763, 0
  %v796 = vsel %vm245, %v764, 0
  %v799 = vsel %vm245, %v765, 0
  %v802 = vsel %vm245, %v766, 0
  %v805 = vsel %vm245, %v767, 0
  %v808 = vsel %vm245, %v768, 0
  %v811 = vsel %vm245, %v769, 0
  %v814 = vsel %vm245, %v770, 0
  %v817 = vsel %vm245, %v771, 0
  %v820 = vsel %vm245, %v772, 0
  %v823 = vsel %vm245, %v773, 0
  %v826 = vsel %vm245, %v774, 0
  %v829 = vsel %vm245, %v775, 0
  %v832 = vsel %vm245, %v776, 0
  %v835 = vsel %vm245, %v777, 0
  %v838 = vsel %vm245, %v778, 0
  %v841 = vsel %vm245, %v779, 0
  %v844 = vsel %vm245, %v780, 0
  %v847 = vsel %vm245, %v781, 0
  %v850 = vsel %vm245, %v782, 0
  %v853 = vsel %vm245, %v783, 0
  %v856 = vsel %vm245, %v784, 0
  %v859 = vsel %vm245, %v785, 0
  %861 = vmatprep.subr.bf16.mxu0 0
  %862 = vmatpush1.bf16.msra.mxu0 %v236
  %863 = vmatprep.subr.bf16.mxu0 0
  %864 = vmatpush1.bf16.msra.mxu0 %v237
  %865 = vmatprep.subr.bf16.mxu0 0
  %866 = vmatpush1.bf16.msra.mxu0 %v238
  %867 = vmatprep.subr.bf16.mxu0 0
  %868 = vmatpush1.bf16.msra.mxu0 %v239
  %869 = vmatprep.subr.bf16.mxu0 0
  %870 = vmatpush1.bf16.msra.mxu0 %v326
  %871 = vmatprep.subr.bf16.mxu0 0
  %872 = vmatpush1.bf16.msra.mxu0 0
  %873 = vmatprep.subr.bf16.mxu0 0
  %874 = vmatpush1.bf16.msra.mxu0 0
  %875 = vmatprep.subr.bf16.mxu0 0
  %876 = vmatpush1.bf16.msra.mxu0 0
  %877 = vmatprep.subr.bf16.mxu0 0
  %878 = vmatpush1.bf16.msra.mxu0 0
  %879 = vmatprep.subr.bf16.mxu0 0
  %880 = vmatpush1.bf16.msra.mxu0 0
  %881 = vmatprep.subr.bf16.mxu0 0
  %882 = vmatpush1.bf16.msra.mxu0 0
  %883 = vmatprep.subr.bf16.mxu0 0
  %884 = vmatpush1.bf16.msra.mxu0 0
  %885 = vmatprep.subr.bf16.mxu0 0
  %886 = vmatpush1.bf16.msra.mxu0 0
  %887 = vmatprep.subr.bf16.mxu0 0
  %888 = vmatpush1.bf16.msra.mxu0 0
  %889 = vmatprep.subr.bf16.mxu0 0
  %890 = vmatpush1.bf16.msra.mxu0 0
  %891 = vmatprep.subr.bf16.mxu0 0
  %892 = vmatpush1.bf16.msra.mxu0 0
  %893 = vmatprep.mubr.bf16.mxu0 0
  %894 = vmatmul.mubr.bf16.gmra.mrb[0].mxu0 %v787
  %v895 = vpop.f32.mrb[0].mxu0
  %v896 = vadd.f32 %v89, %v895
  %v897 = vpop.f32.mrb[0].mxu0
  %v898 = vpop.f32.mrb[0].mxu0
  %v899 = vadd.f32 %v89, %v898
  %v900 = vpop.f32.mrb[0].mxu0
  %901 = vmatprep.mubr.bf16.mxu0 0
  %902 = vmatmul.mubr.bf16.gmra.mrb[0].mxu0 %v790
  %v903 = vpop.f32.mrb[0].mxu0
  %v904 = vadd.f32 %v89, %v903
  %v905 = vpop.f32.mrb[0].mxu0
  %v906 = vpop.f32.mrb[0].mxu0
  %v907 = vadd.f32 %v89, %v906
  %v908 = vpop.f32.mrb[0].mxu0
  %909 = vmatprep.mubr.bf16.mxu0 0
  %910 = vmatmul.mubr.bf16.gmra.mrb[0].mxu0 %v793
  %v911 = vpop.f32.mrb[0].mxu0
  %v912 = vadd.f32 %v89, %v911
  %v913 = vpop.f32.mrb[0].mxu0
  %v914 = vpop.f32.mrb[0].mxu0
  %v915 = vadd.f32 %v89, %v914
  %v916 = vpop.f32.mrb[0].mxu0
  %917 = vmatprep.mubr.bf16.mxu0 0
  %918 = vmatmul.mubr.bf16.gmra.mrb[0].mxu0 %v796
  %v919 = vpop.f32.mrb[0].mxu0
  %v920 = vadd.f32 %v89, %v919
  %v921 = vpop.f32.mrb[0].mxu0
  %v922 = vpop.f32.mrb[0].mxu0
  %v923 = vadd.f32 %v89, %v922
  %v924 = vpop.f32.mrb[0].mxu0
  %925 = vmatprep.mubr.bf16.mxu0 0
  %926 = vmatmul.mubr.bf16.gmra.mrb[0].mxu0 %v799
  %v927 = vpop.f32.mrb[0].mxu0
  %v928 = vadd.f32 %v89, %v927
  %v929 = vpop.f32.mrb[0].mxu0
  %v930 = vpop.f32.mrb[0].mxu0
  %v931 = vadd.f32 %v89, %v930
  %v932 = vpop.f32.mrb[0].mxu0
  %933 = vmatprep.mubr.bf16.mxu0 0
  %934 = vmatmul.mubr.bf16.gmra.mrb[0].mxu0 %v802
  %v935 = vpop.f32.mrb[0].mxu0
  %v936 = vadd.f32 %v89, %v935
  %v937 = vpop.f32.mrb[0].mxu0
  %v938 = vpop.f32.mrb[0].mxu0
  %v939 = vadd.f32 %v89, %v938
  %v940 = vpop.f32.mrb[0].mxu0
  %941 = vmatprep.mubr.bf16.mxu0 0
  %942 = vmatmul.mubr.bf16.gmra.mrb[0].mxu0 %v805
  %v943 = vpop.f32.mrb[0].mxu0
  %v944 = vadd.f32 %v89, %v943
  %v945 = vpop.f32.mrb[0].mxu0
  %v946 = vpop.f32.mrb[0].mxu0
  %v947 = vadd.f32 %v89, %v946
  %v948 = vpop.f32.mrb[0].mxu0
  %949 = vmatprep.mubr.bf16.mxu0 0
  %950 = vmatmul.mubr.bf16.gmra.mrb[0].mxu0 %v808
  %v951 = vpop.f32.mrb[0].mxu0
  %v952 = vadd.f32 %v89, %v951
  %v953 = vpop.f32.mrb[0].mxu0
  %v954 = vpop.f32.mrb[0].mxu0
  %v955 = vadd.f32 %v89, %v954
  %v956 = vpop.f32.mrb[0].mxu0
  %957 = vmatprep.mubr.bf16.mxu0 0
  %958 = vmatmul.mubr.bf16.gmra.mrb[0].mxu0 %v811
  %v959 = vpop.f32.mrb[0].mxu0
  %v960 = vadd.f32 %v89, %v959
  %v961 = vpop.f32.mrb[0].mxu0
  %v962 = vpop.f32.mrb[0].mxu0
  %v963 = vadd.f32 %v89, %v962
  %v964 = vpop.f32.mrb[0].mxu0
  %965 = vmatprep.mubr.bf16.mxu0 0
  %966 = vmatmul.mubr.bf16.gmra.mrb[0].mxu0 %v814
  %v967 = vpop.f32.mrb[0].mxu0
  %v968 = vadd.f32 %v89, %v967
  %v969 = vpop.f32.mrb[0].mxu0
  %v970 = vpop.f32.mrb[0].mxu0
  %v971 = vadd.f32 %v89, %v970
  %v972 = vpop.f32.mrb[0].mxu0
  %973 = vmatprep.mubr.bf16.mxu0 0
  %974 = vmatmul.mubr.bf16.gmra.mrb[0].mxu0 %v817
  %v975 = vpop.f32.mrb[0].mxu0
  %v976 = vadd.f32 %v89, %v975
  %v977 = vpop.f32.mrb[0].mxu0
  %v978 = vpop.f32.mrb[0].mxu0
  %v979 = vadd.f32 %v89, %v978
  %v980 = vpop.f32.mrb[0].mxu0
  %981 = vmatprep.mubr.bf16.mxu0 0
  %982 = vmatmul.mubr.bf16.gmra.mrb[0].mxu0 %v820
  %v983 = vpop.f32.mrb[0].mxu0
  %v984 = vadd.f32 %v89, %v983
  %v985 = vpop.f32.mrb[0].mxu0
  %v986 = vpop.f32.mrb[0].mxu0
  %v987 = vadd.f32 %v89, %v986
  %v988 = vpop.f32.mrb[0].mxu0
  %989 = vmatprep.mubr.bf16.mxu0 0
  %990 = vmatmul.mubr.bf16.gmra.mrb[0].mxu0 %v823
  %v991 = vpop.f32.mrb[0].mxu0
  %v992 = vadd.f32 %v89, %v991
  %v993 = vpop.f32.mrb[0].mxu0
  %v994 = vpop.f32.mrb[0].mxu0
  %v995 = vadd.f32 %v89, %v994
  %v996 = vpop.f32.mrb[0].mxu0
  %997 = vmatprep.mubr.bf16.mxu0 0
  %998 = vmatmul.mubr.bf16.gmra.mrb[0].mxu0 %v826
  %v999 = vpop.f32.mrb[0].mxu0
  %v1000 = vadd.f32 %v89, %v999
  %v1001 = vpop.f32.mrb[0].mxu0
  %v1002 = vpop.f32.mrb[0].mxu0
  %v1003 = vadd.f32 %v89, %v1002
  %v1004 = vpop.f32.mrb[0].mxu0
  %1005 = vmatprep.mubr.bf16.mxu0 0
  %1006 = vmatmul.mubr.bf16.gmra.mrb[0].mxu0 %v829
  %v1007 = vpop.f32.mrb[0].mxu0
  %v1008 = vadd.f32 %v89, %v1007
  %v1009 = vpop.f32.mrb[0].mxu0
  %v1010 = vpop.f32.mrb[0].mxu0
  %v1011 = vadd.f32 %v89, %v1010
  %v1012 = vpop.f32.mrb[0].mxu0
  %1013 = vmatprep.mubr.bf16.mxu0 0
  %1014 = vmatmul.mubr.bf16.gmra.mrb[0].mxu0 %v832
  %v1015 = vpop.f32.mrb[0].mxu0
  %v1016 = vadd.f32 %v89, %v1015
  %v1017 = vpop.f32.mrb[0].mxu0
  %v1018 = vpop.f32.mrb[0].mxu0
  %v1019 = vadd.f32 %v89, %v1018
  %v1020 = vpop.f32.mrb[0].mxu0
  %1021 = vmatprep.mubr.bf16.mxu0 0
  %1022 = vmatmul.mubr.bf16.gmra.mrb[0].mxu0 %v835
  %v1023 = vpop.f32.mrb[0].mxu0
  %v1024 = vadd.f32 %v89, %v1023
  %v1025 = vpop.f32.mrb[0].mxu0
  %v1026 = vpop.f32.mrb[0].mxu0
  %v1027 = vadd.f32 %v89, %v1026
  %v1028 = vpop.f32.mrb[0].mxu0
  %1029 = vmatprep.mubr.bf16.mxu0 0
  %1030 = vmatmul.mubr.bf16.gmra.mrb[0].mxu0 %v838
  %v1031 = vpop.f32.mrb[0].mxu0
  %v1032 = vadd.f32 %v89, %v1031
  %v1033 = vpop.f32.mrb[0].mxu0
  %v1034 = vpop.f32.mrb[0].mxu0
  %v1035 = vadd.f32 %v89, %v1034
  %v1036 = vpop.f32.mrb[0].mxu0
  %1037 = vmatprep.mubr.bf16.mxu0 0
  %1038 = vmatmul.mubr.bf16.gmra.mrb[0].mxu0 %v841
  %v1039 = vpop.f32.mrb[0].mxu0
  %v1040 = vadd.f32 %v89, %v1039
  %v1041 = vpop.f32.mrb[0].mxu0
  %v1042 = vpop.f32.mrb[0].mxu0
  %v1043 = vadd.f32 %v89, %v1042
  %v1044 = vpop.f32.mrb[0].mxu0
  %1045 = vmatprep.mubr.bf16.mxu0 0
  %1046 = vmatmul.mubr.bf16.gmra.mrb[0].mxu0 %v844
  %v1047 = vpop.f32.mrb[0].mxu0
  %v1048 = vadd.f32 %v89, %v1047
  %v1049 = vpop.f32.mrb[0].mxu0
  %v1050 = vpop.f32.mrb[0].mxu0
  %v1051 = vadd.f32 %v89, %v1050
  %v1052 = vpop.f32.mrb[0].mxu0
  %1053 = vmatprep.mubr.bf16.mxu0 0
  %1054 = vmatmul.mubr.bf16.gmra.mrb[0].mxu0 %v847
  %v1055 = vpop.f32.mrb[0].mxu0
  %v1056 = vadd.f32 %v89, %v1055
  %v1057 = vpop.f32.mrb[0].mxu0
  %v1058 = vpop.f32.mrb[0].mxu0
  %v1059 = vadd.f32 %v89, %v1058
  %v1060 = vpop.f32.mrb[0].mxu0
  %1061 = vmatprep.mubr.bf16.mxu0 0
  %1062 = vmatmul.mubr.bf16.gmra.mrb[0].mxu0 %v850
  %v1063 = vpop.f32.mrb[0].mxu0
  %v1064 = vadd.f32 %v89, %v1063
  %v1065 = vpop.f32.mrb[0].mxu0
  %v1066 = vpop.f32.mrb[0].mxu0
  %v1067 = vadd.f32 %v89, %v1066
  %v1068 = vpop.f32.mrb[0].mxu0
  %1069 = vmatprep.mubr.bf16.mxu0 0
  %1070 = vmatmul.mubr.bf16.gmra.mrb[0].mxu0 %v853
  %v1071 = vpop.f32.mrb[0].mxu0
  %v1072 = vadd.f32 %v89, %v1071
  %v1073 = vpop.f32.mrb[0].mxu0
  %v1074 = vpop.f32.mrb[0].mxu0
  %v1075 = vadd.f32 %v89, %v1074
  %v1076 = vpop.f32.mrb[0].mxu0
  %1077 = vmatprep.mubr.bf16.mxu0 0
  %1078 = vmatmul.mubr.bf16.gmra.mrb[0].mxu0 %v856
  %v1079 = vpop.f32.mrb[0].mxu0
  %v1080 = vadd.f32 %v89, %v1079
  %v1081 = vpop.f32.mrb[0].mxu0
  %v1082 = vpop.f32.mrb[0].mxu0
  %v1083 = vadd.f32 %v89, %v1082
  %v1084 = vpop.f32.mrb[0].mxu0
  %1085 = vmatprep.mubr.bf16.mxu0 0
  %1086 = vmatmul.mubr.bf16.gmra.mrb[0].mxu0 %v859
  %v1087 = vpop.f32.mrb[0].mxu0
  %v1088 = vadd.f32 %v89, %v1087
  %v1089 = vpop.f32.mrb[0].mxu0
  %v1090 = vpop.f32.mrb[0].mxu0
  %v1091 = vadd.f32 %v89, %v1090
  %v1092 = vpop.f32.mrb[0].mxu0
  %1093 = vdwg.mxu0
  %v1094 = vmax.f32 %v896, 0.0
  %v1095 = vmax.f32 %v899, 0.0
  %v1096 = vmax.f32 %v904, 0.0
  %v1097 = vmax.f32 %v907, 0.0
  %v1098 = vmax.f32 %v912, 0.0
  %v1099 = vmax.f32 %v915, 0.0
  %v1100 = vmax.f32 %v920, 0.0
  %v1101 = vmax.f32 %v923, 0.0
  %v1102 = vmax.f32 %v928, 0.0
  %v1103 = vmax.f32 %v931, 0.0
  %v1104 = vmax.f32 %v936, 0.0
  %v1105 = vmax.f32 %v939, 0.0
  %v1106 = vmax.f32 %v944, 0.0
  %v1107 = vmax.f32 %v947, 0.0
  %v1108 = vmax.f32 %v952, 0.0
  %v1109 = vmax.f32 %v955, 0.0
  %v1110 = vmax.f32 %v960, 0.0
  %v1111 = vmax.f32 %v963, 0.0
  %v1112 = vmax.f32 %v968, 0.0
  %v1113 = vmax.f32 %v971, 0.0
  %v1114 = vmax.f32 %v976, 0.0
  %v1115 = vmax.f32 %v979, 0.0
  %v1116 = vmax.f32 %v984, 0.0
  %v1117 = vmax.f32 %v987, 0.0
  %v1118 = vmax.f32 %v992, 0.0
  %v1119 = vmax.f32 %v995, 0.0
  %v1120 = vmax.f32 %v1000, 0.0
  %v1121 = vmax.f32 %v1003, 0.0
  %v1122 = vmax.f32 %v1008, 0.0
  %v1123 = vmax.f32 %v1011, 0.0
  %v1124 = vmax.f32 %v1016, 0.0
  %v1125 = vmax.f32 %v1019, 0.0
  %v1126 = vmax.f32 %v1024, 0.0
  %v1127 = vmax.f32 %v1027, 0.0
  %v1128 = vmax.f32 %v1032, 0.0
  %v1129 = vmax.f32 %v1035, 0.0
  %v1130 = vmax.f32 %v1040, 0.0
  %v1131 = vmax.f32 %v1043, 0.0
  %v1132 = vmax.f32 %v1048, 0.0
  %v1133 = vmax.f32 %v1051, 0.0
  %v1134 = vmax.f32 %v1056, 0.0
  %v1135 = vmax.f32 %v1059, 0.0
  %v1136 = vmax.f32 %v1064, 0.0
  %v1137 = vmax.f32 %v1067, 0.0
  %v1138 = vmax.f32 %v1072, 0.0
  %v1139 = vmax.f32 %v1075, 0.0
  %v1140 = vmax.f32 %v1080, 0.0
  %v1141 = vmax.f32 %v1083, 0.0
  %v1142 = vmax.f32 %v1088, 0.0
  %v1143 = vmax.f32 %v1091, 0.0
  %v1144 = vmax.f32 %v561, %v1094
  %v1145 = vmax.f32 %v562, %v1095
  %v1146 = vmax.f32 %v563, %v1096
  %v1147 = vmax.f32 %v564, %v1097
  %v1148 = vmax.f32 %v565, %v1098
  %v1149 = vmax.f32 %v566, %v1099
  %v1150 = vmax.f32 %v567, %v1100
  %v1151 = vmax.f32 %v568, %v1101
  %v1152 = vmax.f32 %v569, %v1102
  %v1153 = vmax.f32 %v570, %v1103
  %v1154 = vmax.f32 %v571, %v1104
  %v1155 = vmax.f32 %v572, %v1105
  %v1156 = vmax.f32 %v573, %v1106
  %v1157 = vmax.f32 %v574, %v1107
  %v1158 = vmax.f32 %v575, %v1108
  %v1159 = vmax.f32 %v576, %v1109
  %v1160 = vmax.f32 %v577, %v1110
  %v1161 = vmax.f32 %v578, %v1111
  %v1162 = vmax.f32 %v579, %v1112
  %v1163 = vmax.f32 %v580, %v1113
  %v1164 = vmax.f32 %v581, %v1114
  %v1165 = vmax.f32 %v582, %v1115
  %v1166 = vmax.f32 %v583, %v1116
  %v1167 = vmax.f32 %v584, %v1117
  %v1168 = vmax.f32 %v585, %v1118
  %v1169 = vmax.f32 %v586, %v1119
  %v1170 = vmax.f32 %v587, %v1120
  %v1171 = vmax.f32 %v588, %v1121
  %v1172 = vmax.f32 %v589, %v1122
  %v1173 = vmax.f32 %v590, %v1123
  %v1174 = vmax.f32 %v591, %v1124
  %v1175 = vmax.f32 %v592, %v1125
  %v1176 = vmax.f32 %v593, %v1126
  %v1177 = vmax.f32 %v594, %v1127
  %v1178 = vmax.f32 %v595, %v1128
  %v1179 = vmax.f32 %v596, %v1129
  %v1180 = vmax.f32 %v597, %v1130
  %v1181 = vmax.f32 %v598, %v1131
  %v1182 = vmax.f32 %v599, %v1132
  %v1183 = vmax.f32 %v600, %v1133
  %v1184 = vmax.f32 %v601, %v1134
  %v1185 = vmax.f32 %v602, %v1135
  %v1186 = vmax.f32 %v603, %v1136
  %v1187 = vmax.f32 %v604, %v1137
  %v1188 = vmax.f32 %v605, %v1138
  %v1189 = vmax.f32 %v606, %v1139
  %v1190 = vmax.f32 %v607, %v1140
  %v1191 = vmax.f32 %v608, %v1141
  %v1192 = vmax.f32 %v609, %v1142
  %v1193 = vmax.f32 %v610, %v1143
  %v1194 = vld [vmem:[%s2] sm:$0xf]
  %v1195 = vld [vmem:[%s2 + $0x4] sm:$0xf]
  %v1196 = vld [vmem:[%s2 + $0x8] sm:$0xf]
  %v1197 = vld [vmem:[%s2 + $0xc] sm:$0xf]
  %v1198 = vld [vmem:[%s2 + $0x10] sm:$0xf]
  %v1199 = vld [vmem:[%s2 + $0x14] sm:$0xf]
  %v1200 = vld [vmem:[%s2 + $0x18] sm:$0xf]
  %v1201 = vld [vmem:[%s2 + $0x1c] sm:$0xf]
  %v1202 = vld [vmem:[%s2 + $0x20] sm:$0xf]
  %v1203 = vld [vmem:[%s2 + $0x24] sm:$0xf]
  %v1204 = vld [vmem:[%s2 + $0x28] sm:$0xf]
  %v1205 = vld [vmem:[%s2 + $0x2c] sm:$0xf]
  %v1206 = vld [vmem:[%s2 + $0x30] sm:$0xf]
  %v1207 = vld [vmem:[%s2 + $0x34] sm:$0xf]
  %v1208 = vld [vmem:[%s2 + $0x38] sm:$0xf]
  %v1209 = vld [vmem:[%s2 + $0x3c] sm:$0xf]
  %v1210 = vld [vmem:[%s2 + $0x40] sm:$0xf]
  %v1211 = vld [vmem:[%s2 + $0x44] sm:$0xf]
  %v1212 = vld [vmem:[%s2 + $0x48] sm:$0xf]
  %v1213 = vld [vmem:[%s2 + $0x4c] sm:$0xf]
  %v1214 = vld [vmem:[%s2 + $0x50] sm:$0xf]
  %v1215 = vld [vmem:[%s2 + $0x54] sm:$0xf]
  %v1216 = vld [vmem:[%s2 + $0x58] sm:$0xf]
  %v1217 = vld [vmem:[%s2 + $0x5c] sm:$0xf]
  %v1218 = vld [vmem:[%s2 + $0x60] sm:$0xf]
  %v1219 = vld [vmem:[%s2 + $0x64] sm:$0xf]
  %v1220 = vld [vmem:[%s2 + $0x68] sm:$0xf]
  %v1221 = vld [vmem:[%s2 + $0x6c] sm:$0xf]
  %v1222 = vld [vmem:[%s2 + $0x70] sm:$0xf]
  %v1223 = vld [vmem:[%s2 + $0x74] sm:$0xf]
  %v1224 = vld [vmem:[%s2 + $0x78] sm:$0xf]
  %v1225 = vld [vmem:[%s2 + $0x7c] sm:$0xf]
  %v1226 = vld [vmem:[%s2 + $0x80] sm:$0xf]
  %v1227 = vld [vmem:[%s2 + $0x84] sm:$0xf]
  %v1228 = vld [vmem:[%s2 + $0x88] sm:$0xf]
  %v1229 = vld [vmem:[%s2 + $0x8c] sm:$0xf]
  %v1230 = vld [vmem:[%s2 + $0x90] sm:$0xf]
  %v1231 = vld [vmem:[%s2 + $0x94] sm:$0xf]
  %v1232 = vld [vmem:[%s2 + $0x98] sm:$0xf]
  %v1233 = vld [vmem:[%s2 + $0x9c] sm:$0xf]
  %v1234 = vld [vmem:[%s2 + $0xa0] sm:$0xf]
  %v1235 = vld [vmem:[%s2 + $0xa4] sm:$0xf]
  %v1236 = vld [vmem:[%s2 + $0xa8] sm:$0xf]
  %v1237 = vld [vmem:[%s2 + $0xac] sm:$0xf]
  %v1238 = vld [vmem:[%s2 + $0xb0] sm:$0xf]
  %v1239 = vld [vmem:[%s2 + $0xb4] sm:$0xf]
  %v1240 = vld [vmem:[%s2 + $0xb8] sm:$0xf]
  %v1241 = vld [vmem:[%s2 + $0xbc] sm:$0xf]
  %v1242 = vld [vmem:[%s2 + $0xc0] sm:$0xf]
  %v1243 = vld [vmem:[%s2 + $0xc4] sm:$0xf]
  %v1294 = vunpack.c.l.b16 %v1194
  %v1295 = vunpack.c.l.b16 %v1195
  %v1296 = vunpack.c.l.b16 %v1196
  %v1297 = vunpack.c.l.b16 %v1197
  %v1298 = vunpack.c.l.b16 %v1198
  %v1299 = vunpack.c.l.b16 %v1199
  %v1300 = vunpack.c.l.b16 %v1200
  %v1301 = vunpack.c.l.b16 %v1201
  %v1302 = vunpack.c.l.b16 %v1202
  %v1303 = vunpack.c.l.b16 %v1203
  %v1304 = vunpack.c.l.b16 %v1204
  %v1305 = vunpack.c.l.b16 %v1205
  %v1306 = vunpack.c.l.b16 %v1206
  %v1307 = vunpack.c.l.b16 %v1207
  %v1308 = vunpack.c.l.b16 %v1208
  %v1309 = vunpack.c.l.b16 %v1209
  %v1310 = vunpack.c.l.b16 %v1210
  %v1311 = vunpack.c.l.b16 %v1211
  %v1312 = vunpack.c.l.b16 %v1212
  %v1313 = vunpack.c.l.b16 %v1213
  %v1314 = vunpack.c.l.b16 %v1214
  %v1315 = vunpack.c.l.b16 %v1215
  %v1316 = vunpack.c.l.b16 %v1216
  %v1317 = vunpack.c.l.b16 %v1217
  %v1318 = vunpack.c.l.b16 %v1218
  %v1319 = vunpack.c.l.b16 %v1219
  %v1320 = vunpack.c.l.b16 %v1220
  %v1321 = vunpack.c.l.b16 %v1221
  %v1322 = vunpack.c.l.b16 %v1222
  %v1323 = vunpack.c.l.b16 %v1223
  %v1324 = vunpack.c.l.b16 %v1224
  %v1325 = vunpack.c.l.b16 %v1225
  %v1326 = vunpack.c.l.b16 %v1226
  %v1327 = vunpack.c.l.b16 %v1227
  %v1328 = vunpack.c.l.b16 %v1228
  %v1329 = vunpack.c.l.b16 %v1229
  %v1330 = vunpack.c.l.b16 %v1230
  %v1331 = vunpack.c.l.b16 %v1231
  %v1332 = vunpack.c.l.b16 %v1232
  %v1333 = vunpack.c.l.b16 %v1233
  %v1334 = vunpack.c.l.b16 %v1234
  %v1335 = vunpack.c.l.b16 %v1235
  %v1336 = vunpack.c.l.b16 %v1236
  %v1337 = vunpack.c.l.b16 %v1237
  %v1338 = vunpack.c.l.b16 %v1238
  %v1339 = vunpack.c.l.b16 %v1239
  %v1340 = vunpack.c.l.b16 %v1240
  %v1341 = vunpack.c.l.b16 %v1241
  %v1342 = vunpack.c.l.b16 %v1242
  %v1343 = vunpack.c.l.b16 %v1243
  %v1344 = vpack.c.b16 %v1295, %v1294
  %v1345 = vpack.c.b16 %v1297, %v1296
  %v1346 = vpack.c.b16 %v1299, %v1298
  %v1347 = vpack.c.b16 %v1301, %v1300
  %v1348 = vpack.c.b16 %v1303, %v1302
  %v1349 = vpack.c.b16 %v1305, %v1304
  %v1350 = vpack.c.b16 %v1307, %v1306
  %v1351 = vpack.c.b16 %v1309, %v1308
  %v1352 = vpack.c.b16 %v1311, %v1310
  %v1353 = vpack.c.b16 %v1313, %v1312
  %v1354 = vpack.c.b16 %v1315, %v1314
  %v1355 = vpack.c.b16 %v1317, %v1316
  %v1356 = vpack.c.b16 %v1319, %v1318
  %v1357 = vpack.c.b16 %v1321, %v1320
  %v1358 = vpack.c.b16 %v1323, %v1322
  %v1359 = vpack.c.b16 %v1325, %v1324
  %v1360 = vpack.c.b16 %v1327, %v1326
  %v1361 = vpack.c.b16 %v1329, %v1328
  %v1362 = vpack.c.b16 %v1331, %v1330
  %v1363 = vpack.c.b16 %v1333, %v1332
  %v1364 = vpack.c.b16 %v1335, %v1334
  %v1365 = vpack.c.b16 %v1337, %v1336
  %v1366 = vpack.c.b16 %v1339, %v1338
  %v1367 = vpack.c.b16 %v1341, %v1340
  %v1368 = vpack.c.b16 %v1343, %v1342
  %v1370 = vsel %vm245, %v1344, 0
  %v1373 = vsel %vm245, %v1345, 0
  %v1376 = vsel %vm245, %v1346, 0
  %v1379 = vsel %vm245, %v1347, 0
  %v1382 = vsel %vm245, %v1348, 0
  %v1385 = vsel %vm245, %v1349, 0
  %v1388 = vsel %vm245, %v1350, 0
  %v1391 = vsel %vm245, %v1351, 0
  %v1394 = vsel %vm245, %v1352, 0
  %v1397 = vsel %vm245, %v1353, 0
  %v1400 = vsel %vm245, %v1354, 0
  %v1403 = vsel %vm245, %v1355, 0
  %v1406 = vsel %vm245, %v1356, 0
  %v1409 = vsel %vm245, %v1357, 0
  %v1412 = vsel %vm245, %v1358, 0
  %v1415 = vsel %vm245, %v1359, 0
  %v1418 = vsel %vm245, %v1360, 0
  %v1421 = vsel %vm245, %v1361, 0
  %v1424 = vsel %vm245, %v1362, 0
  %v1427 = vsel %vm245, %v1363, 0
  %v1430 = vsel %vm245, %v1364, 0
  %v1433 = vsel %vm245, %v1365, 0
  %v1436 = vsel %vm245, %v1366, 0
  %v1439 = vsel %vm245, %v1367, 0
  %v1442 = vsel %vm245, %v1368, 0
  %1444 = vmatprep.subr.bf16.mxu0 0
  %1445 = vmatpush1.bf16.msra.mxu0 %v236
  %1446 = vmatprep.subr.bf16.mxu0 0
  %1447 = vmatpush1.bf16.msra.mxu0 %v237
  %1448 = vmatprep.subr.bf16.mxu0 0
  %1449 = vmatpush1.bf16.msra.mxu0 %v238
  %1450 = vmatprep.subr.bf16.mxu0 0
  %1451 = vmatpush1.bf16.msra.mxu0 %v239
  %1452 = vmatprep.subr.bf16.mxu0 0
  %1453 = vmatpush1.bf16.msra.mxu0 %v326
  %1454 = vmatprep.subr.bf16.mxu0 0
  %1455 = vmatpush1.bf16.msra.mxu0 0
  %1456 = vmatprep.subr.bf16.mxu0 0
  %1457 = vmatpush1.bf16.msra.mxu0 0
  %1458 = vmatprep.subr.bf16.mxu0 0
  %1459 = vmatpush1.bf16.msra.mxu0 0
  %1460 = vmatprep.subr.bf16.mxu0 0
  %1461 = vmatpush1.bf16.msra.mxu0 0
  %1462 = vmatprep.subr.bf16.mxu0 0
  %1463 = vmatpush1.bf16.msra.mxu0 0
  %1464 = vmatprep.subr.bf16.mxu0 0
  %1465 = vmatpush1.bf16.msra.mxu0 0
  %1466 = vmatprep.subr.bf16.mxu0 0
  %1467 = vmatpush1.bf16.msra.mxu0 0
  %1468 = vmatprep.subr.bf16.mxu0 0
  %1469 = vmatpush1.bf16.msra.mxu0 0
  %1470 = vmatprep.subr.bf16.mxu0 0
  %1471 = vmatpush1.bf16.msra.mxu0 0
  %1472 = vmatprep.subr.bf16.mxu0 0
  %1473 = vmatpush1.bf16.msra.mxu0 0
  %1474 = vmatprep.subr.bf16.mxu0 0
  %1475 = vmatpush1.bf16.msra.mxu0 0
  %1476 = vmatprep.mubr.bf16.mxu0 0
  %1477 = vmatmul.mubr.bf16.gmra.mrb[0].mxu0 %v1370
  %v1478 = vpop.f32.mrb[0].mxu0
  %v1479 = vadd.f32 %v89, %v1478
  %v1480 = vpop.f32.mrb[0].mxu0
  %v1481 = vpop.f32.mrb[0].mxu0
  %v1482 = vadd.f32 %v89, %v1481
  %v1483 = vpop.f32.mrb[0].mxu0
  %1484 = vmatprep.mubr.bf16.mxu0 0
  %1485 = vmatmul.mubr.bf16.gmra.mrb[0].mxu0 %v1373
  %v1486 = vpop.f32.mrb[0].mxu0
  %v1487 = vadd.f32 %v89, %v1486
  %v1488 = vpop.f32.mrb[0].mxu0
  %v1489 = vpop.f32.mrb[0].mxu0
  %v1490 = vadd.f32 %v89, %v1489
  %v1491 = vpop.f32.mrb[0].mxu0
  %1492 = vmatprep.mubr.bf16.mxu0 0
  %1493 = vmatmul.mubr.bf16.gmra.mrb[0].mxu0 %v1376
  %v1494 = vpop.f32.mrb[0].mxu0
  %v1495 = vadd.f32 %v89, %v1494
  %v1496 = vpop.f32.mrb[0].mxu0
  %v1497 = vpop.f32.mrb[0].mxu0
  %v1498 = vadd.f32 %v89, %v1497
  %v1499 = vpop.f32.mrb[0].mxu0
  %1500 = vmatprep.mubr.bf16.mxu0 0
  %1501 = vmatmul.mubr.bf16.gmra.mrb[0].mxu0 %v1379
  %v1502 = vpop.f32.mrb[0].mxu0
  %v1503 = vadd.f32 %v89, %v1502
  %v1504 = vpop.f32.mrb[0].mxu0
  %v1505 = vpop.f32.mrb[0].mxu0
  %v1506 = vadd.f32 %v89, %v1505
  %v1507 = vpop.f32.mrb[0].mxu0
  %1508 = vmatprep.mubr.bf16.mxu0 0
  %1509 = vmatmul.mubr.bf16.gmra.mrb[0].mxu0 %v1382
  %v1510 = vpop.f32.mrb[0].mxu0
  %v1511 = vadd.f32 %v89, %v1510
  %v1512 = vpop.f32.mrb[0].mxu0
  %v1513 = vpop.f32.mrb[0].mxu0
  %v1514 = vadd.f32 %v89, %v1513
  %v1515 = vpop.f32.mrb[0].mxu0
  %1516 = vmatprep.mubr.bf16.mxu0 0
  %1517 = vmatmul.mubr.bf16.gmra.mrb[0].mxu0 %v1385
  %v1518 = vpop.f32.mrb[0].mxu0
  %v1519 = vadd.f32 %v89, %v1518
  %v1520 = vpop.f32.mrb[0].mxu0
  %v1521 = vpop.f32.mrb[0].mxu0
  %v1522 = vadd.f32 %v89, %v1521
  %v1523 = vpop.f32.mrb[0].mxu0
  %1524 = vmatprep.mubr.bf16.mxu0 0
  %1525 = vmatmul.mubr.bf16.gmra.mrb[0].mxu0 %v1388
  %v1526 = vpop.f32.mrb[0].mxu0
  %v1527 = vadd.f32 %v89, %v1526
  %v1528 = vpop.f32.mrb[0].mxu0
  %v1529 = vpop.f32.mrb[0].mxu0
  %v1530 = vadd.f32 %v89, %v1529
  %v1531 = vpop.f32.mrb[0].mxu0
  %1532 = vmatprep.mubr.bf16.mxu0 0
  %1533 = vmatmul.mubr.bf16.gmra.mrb[0].mxu0 %v1391
  %v1534 = vpop.f32.mrb[0].mxu0
  %v1535 = vadd.f32 %v89, %v1534
  %v1536 = vpop.f32.mrb[0].mxu0
  %v1537 = vpop.f32.mrb[0].mxu0
  %v1538 = vadd.f32 %v89, %v1537
  %v1539 = vpop.f32.mrb[0].mxu0
  %1540 = vmatprep.mubr.bf16.mxu0 0
  %1541 = vmatmul.mubr.bf16.gmra.mrb[0].mxu0 %v1394
  %v1542 = vpop.f32.mrb[0].mxu0
  %v1543 = vadd.f32 %v89, %v1542
  %v1544 = vpop.f32.mrb[0].mxu0
  %v1545 = vpop.f32.mrb[0].mxu0
  %v1546 = vadd.f32 %v89, %v1545
  %v1547 = vpop.f32.mrb[0].mxu0
  %1548 = vmatprep.mubr.bf16.mxu0 0
  %1549 = vmatmul.mubr.bf16.gmra.mrb[0].mxu0 %v1397
  %v1550 = vpop.f32.mrb[0].mxu0
  %v1551 = vadd.f32 %v89, %v1550
  %v1552 = vpop.f32.mrb[0].mxu0
  %v1553 = vpop.f32.mrb[0].mxu0
  %v1554 = vadd.f32 %v89, %v1553
  %v1555 = vpop.f32.mrb[0].mxu0
  %1556 = vmatprep.mubr.bf16.mxu0 0
  %1557 = vmatmul.mubr.bf16.gmra.mrb[0].mxu0 %v1400
  %v1558 = vpop.f32.mrb[0].mxu0
  %v1559 = vadd.f32 %v89, %v1558
  %v1560 = vpop.f32.mrb[0].mxu0
  %v1561 = vpop.f32.mrb[0].mxu0
  %v1562 = vadd.f32 %v89, %v1561
  %v1563 = vpop.f32.mrb[0].mxu0
  %1564 = vmatprep.mubr.bf16.mxu0 0
  %1565 = vmatmul.mubr.bf16.gmra.mrb[0].mxu0 %v1403
  %v1566 = vpop.f32.mrb[0].mxu0
  %v1567 = vadd.f32 %v89, %v1566
  %v1568 = vpop.f32.mrb[0].mxu0
  %v1569 = vpop.f32.mrb[0].mxu0
  %v1570 = vadd.f32 %v89, %v1569
  %v1571 = vpop.f32.mrb[0].mxu0
  %1572 = vmatprep.mubr.bf16.mxu0 0
  %1573 = vmatmul.mubr.bf16.gmra.mrb[0].mxu0 %v1406
  %v1574 = vpop.f32.mrb[0].mxu0
  %v1575 = vadd.f32 %v89, %v1574
  %v1576 = vpop.f32.mrb[0].mxu0
  %v1577 = vpop.f32.mrb[0].mxu0
  %v1578 = vadd.f32 %v89, %v1577
  %v1579 = vpop.f32.mrb[0].mxu0
  %1580 = vmatprep.mubr.bf16.mxu0 0
  %1581 = vmatmul.mubr.bf16.gmra.mrb[0].mxu0 %v1409
  %v1582 = vpop.f32.mrb[0].mxu0
  %v1583 = vadd.f32 %v89, %v1582
  %v1584 = vpop.f32.mrb[0].mxu0
  %v1585 = vpop.f32.mrb[0].mxu0
  %v1586 = vadd.f32 %v89, %v1585
  %v1587 = vpop.f32.mrb[0].mxu0
  %1588 = vmatprep.mubr.bf16.mxu0 0
  %1589 = vmatmul.mubr.bf16.gmra.mrb[0].mxu0 %v1412
  %v1590 = vpop.f32.mrb[0].mxu0
  %v1591 = vadd.f32 %v89, %v1590
  %v1592 = vpop.f32.mrb[0].mxu0
  %v1593 = vpop.f32.mrb[0].mxu0
  %v1594 = vadd.f32 %v89, %v1593
  %v1595 = vpop.f32.mrb[0].mxu0
  %1596 = vmatprep.mubr.bf16.mxu0 0
  %1597 = vmatmul.mubr.bf16.gmra.mrb[0].mxu0 %v1415
  %v1598 = vpop.f32.mrb[0].mxu0
  %v1599 = vadd.f32 %v89, %v1598
  %v1600 = vpop.f32.mrb[0].mxu0
  %v1601 = vpop.f32.mrb[0].mxu0
  %v1602 = vadd.f32 %v89, %v1601
  %v1603 = vpop.f32.mrb[0].mxu0
  %1604 = vmatprep.mubr.bf16.mxu0 0
  %1605 = vmatmul.mubr.bf16.gmra.mrb[0].mxu0 %v1418
  %v1606 = vpop.f32.mrb[0].mxu0
  %v1607 = vadd.f32 %v89, %v1606
  %v1608 = vpop.f32.mrb[0].mxu0
  %v1609 = vpop.f32.mrb[0].mxu0
  %v1610 = vadd.f32 %v89, %v1609
  %v1611 = vpop.f32.mrb[0].mxu0
  %1612 = vmatprep.mubr.bf16.mxu0 0
  %1613 = vmatmul.mubr.bf16.gmra.mrb[0].mxu0 %v1421
  %v1614 = vpop.f32.mrb[0].mxu0
  %v1615 = vadd.f32 %v89, %v1614
  %v1616 = vpop.f32.mrb[0].mxu0
  %v1617 = vpop.f32.mrb[0].mxu0
  %v1618 = vadd.f32 %v89, %v1617
  %v1619 = vpop.f32.mrb[0].mxu0
  %1620 = vmatprep.mubr.bf16.mxu0 0
  %1621 = vmatmul.mubr.bf16.gmra.mrb[0].mxu0 %v1424
  %v1622 = vpop.f32.mrb[0].mxu0
  %v1623 = vadd.f32 %v89, %v1622
  %v1624 = vpop.f32.mrb[0].mxu0
  %v1625 = vpop.f32.mrb[0].mxu0
  %v1626 = vadd.f32 %v89, %v1625
  %v1627 = vpop.f32.mrb[0].mxu0
  %1628 = vmatprep.mubr.bf16.mxu0 0
  %1629 = vmatmul.mubr.bf16.gmra.mrb[0].mxu0 %v1427
  %v1630 = vpop.f32.mrb[0].mxu0
  %v1631 = vadd.f32 %v89, %v1630
  %v1632 = vpop.f32.mrb[0].mxu0
  %v1633 = vpop.f32.mrb[0].mxu0
  %v1634 = vadd.f32 %v89, %v1633
  %v1635 = vpop.f32.mrb[0].mxu0
  %1636 = vmatprep.mubr.bf16.mxu0 0
  %1637 = vmatmul.mubr.bf16.gmra.mrb[0].mxu0 %v1430
  %v1638 = vpop.f32.mrb[0].mxu0
  %v1639 = vadd.f32 %v89, %v1638
  %v1640 = vpop.f32.mrb[0].mxu0
  %v1641 = vpop.f32.mrb[0].mxu0
  %v1642 = vadd.f32 %v89, %v1641
  %v1643 = vpop.f32.mrb[0].mxu0
  %1644 = vmatprep.mubr.bf16.mxu0 0
  %1645 = vmatmul.mubr.bf16.gmra.mrb[0].mxu0 %v1433
  %v1646 = vpop.f32.mrb[0].mxu0
  %v1647 = vadd.f32 %v89, %v1646
  %v1648 = vpop.f32.mrb[0].mxu0
  %v1649 = vpop.f32.mrb[0].mxu0
  %v1650 = vadd.f32 %v89, %v1649
  %v1651 = vpop.f32.mrb[0].mxu0
  %1652 = vmatprep.mubr.bf16.mxu0 0
  %1653 = vmatmul.mubr.bf16.gmra.mrb[0].mxu0 %v1436
  %v1654 = vpop.f32.mrb[0].mxu0
  %v1655 = vadd.f32 %v89, %v1654
  %v1656 = vpop.f32.mrb[0].mxu0
  %v1657 = vpop.f32.mrb[0].mxu0
  %v1658 = vadd.f32 %v89, %v1657
  %v1659 = vpop.f32.mrb[0].mxu0
  %1660 = vmatprep.mubr.bf16.mxu0 0
  %1661 = vmatmul.mubr.bf16.gmra.mrb[0].mxu0 %v1439
  %v1662 = vpop.f32.mrb[0].mxu0
  %v1663 = vadd.f32 %v89, %v1662
  %v1664 = vpop.f32.mrb[0].mxu0
  %v1665 = vpop.f32.mrb[0].mxu0
  %v1666 = vadd.f32 %v89, %v1665
  %v1667 = vpop.f32.mrb[0].mxu0
  %1668 = vmatprep.mubr.bf16.mxu0 0
  %1669 = vmatmul.mubr.bf16.gmra.mrb[0].mxu0 %v1442
  %v1670 = vpop.f32.mrb[0].mxu0
  %v1671 = vadd.f32 %v89, %v1670
  %v1672 = vpop.f32.mrb[0].mxu0
  %v1673 = vpop.f32.mrb[0].mxu0
  %v1674 = vadd.f32 %v89, %v1673
  %v1675 = vpop.f32.mrb[0].mxu0
  %1676 = vdwg.mxu0
  %v1677 = vmax.f32 %v1479, 0.0
  %v1678 = vmax.f32 %v1482, 0.0
  %v1679 = vmax.f32 %v1487, 0.0
  %v1680 = vmax.f32 %v1490, 0.0
  %v1681 = vmax.f32 %v1495, 0.0
  %v1682 = vmax.f32 %v1498, 0.0
  %v1683 = vmax.f32 %v1503, 0.0
  %v1684 = vmax.f32 %v1506, 0.0
  %v1685 = vmax.f32 %v1511, 0.0
  %v1686 = vmax.f32 %v1514, 0.0
  %v1687 = vmax.f32 %v1519, 0.0
  %v1688 = vmax.f32 %v1522, 0.0
  %v1689 = vmax.f32 %v1527, 0.0
  %v1690 = vmax.f32 %v1530, 0.0
  %v1691 = vmax.f32 %v1535, 0.0
  %v1692 = vmax.f32 %v1538, 0.0
  %v1693 = vmax.f32 %v1543, 0.0
  %v1694 = vmax.f32 %v1546, 0.0
  %v1695 = vmax.f32 %v1551, 0.0
  %v1696 = vmax.f32 %v1554, 0.0
  %v1697 = vmax.f32 %v1559, 0.0
  %v1698 = vmax.f32 %v1562, 0.0
  %v1699 = vmax.f32 %v1567, 0.0
  %v1700 = vmax.f32 %v1570, 0.0
  %v1701 = vmax.f32 %v1575, 0.0
  %v1702 = vmax.f32 %v1578, 0.0
  %v1703 = vmax.f32 %v1583, 0.0
  %v1704 = vmax.f32 %v1586, 0.0
  %v1705 = vmax.f32 %v1591, 0.0
  %v1706 = vmax.f32 %v1594, 0.0
  %v1707 = vmax.f32 %v1599, 0.0
  %v1708 = vmax.f32 %v1602, 0.0
  %v1709 = vmax.f32 %v1607, 0.0
  %v1710 = vmax.f32 %v1610, 0.0
  %v1711 = vmax.f32 %v1615, 0.0
  %v1712 = vmax.f32 %v1618, 0.0
  %v1713 = vmax.f32 %v1623, 0.0
  %v1714 = vmax.f32 %v1626, 0.0
  %v1715 = vmax.f32 %v1631, 0.0
  %v1716 = vmax.f32 %v1634, 0.0
  %v1717 = vmax.f32 %v1639, 0.0
  %v1718 = vmax.f32 %v1642, 0.0
  %v1719 = vmax.f32 %v1647, 0.0
  %v1720 = vmax.f32 %v1650, 0.0
  %v1721 = vmax.f32 %v1655, 0.0
  %v1722 = vmax.f32 %v1658, 0.0
  %v1723 = vmax.f32 %v1663, 0.0
  %v1724 = vmax.f32 %v1666, 0.0
  %v1725 = vmax.f32 %v1671, 0.0
  %v1726 = vmax.f32 %v1674, 0.0
  %v1727 = vld [vmem:[%s3] sm:$0xf]
  %v1728 = vld [vmem:[%s3 + $0x4] sm:$0xf]
  %v1729 = vld [vmem:[%s3 + $0x8] sm:$0xf]
  %v1730 = vld [vmem:[%s3 + $0xc] sm:$0xf]
  %v1731 = vld [vmem:[%s3 + $0x10] sm:$0xf]
  %v1732 = vld [vmem:[%s3 + $0x14] sm:$0xf]
  %v1733 = vld [vmem:[%s3 + $0x18] sm:$0xf]
  %v1734 = vld [vmem:[%s3 + $0x1c] sm:$0xf]
  %v1735 = vld [vmem:[%s3 + $0x20] sm:$0xf]
  %v1736 = vld [vmem:[%s3 + $0x24] sm:$0xf]
  %v1737 = vld [vmem:[%s3 + $0x28] sm:$0xf]
  %v1738 = vld [vmem:[%s3 + $0x2c] sm:$0xf]
  %v1739 = vld [vmem:[%s3 + $0x30] sm:$0xf]
  %v1740 = vld [vmem:[%s3 + $0x34] sm:$0xf]
  %v1741 = vld [vmem:[%s3 + $0x38] sm:$0xf]
  %v1742 = vld [vmem:[%s3 + $0x3c] sm:$0xf]
  %v1743 = vld [vmem:[%s3 + $0x40] sm:$0xf]
  %v1744 = vld [vmem:[%s3 + $0x44] sm:$0xf]
  %v1745 = vld [vmem:[%s3 + $0x48] sm:$0xf]
  %v1746 = vld [vmem:[%s3 + $0x4c] sm:$0xf]
  %v1747 = vld [vmem:[%s3 + $0x50] sm:$0xf]
  %v1748 = vld [vmem:[%s3 + $0x54] sm:$0xf]
  %v1749 = vld [vmem:[%s3 + $0x58] sm:$0xf]
  %v1750 = vld [vmem:[%s3 + $0x5c] sm:$0xf]
  %v1751 = vld [vmem:[%s3 + $0x60] sm:$0xf]
  %v1752 = vld [vmem:[%s3 + $0x64] sm:$0xf]
  %v1753 = vld [vmem:[%s3 + $0x68] sm:$0xf]
  %v1754 = vld [vmem:[%s3 + $0x6c] sm:$0xf]
  %v1755 = vld [vmem:[%s3 + $0x70] sm:$0xf]
  %v1756 = vld [vmem:[%s3 + $0x74] sm:$0xf]
  %v1757 = vld [vmem:[%s3 + $0x78] sm:$0xf]
  %v1758 = vld [vmem:[%s3 + $0x7c] sm:$0xf]
  %v1759 = vld [vmem:[%s3 + $0x80] sm:$0xf]
  %v1760 = vld [vmem:[%s3 + $0x84] sm:$0xf]
  %v1761 = vld [vmem:[%s3 + $0x88] sm:$0xf]
  %v1762 = vld [vmem:[%s3 + $0x8c] sm:$0xf]
  %v1763 = vld [vmem:[%s3 + $0x90] sm:$0xf]
  %v1764 = vld [vmem:[%s3 + $0x94] sm:$0xf]
  %v1765 = vld [vmem:[%s3 + $0x98] sm:$0xf]
  %v1766 = vld [vmem:[%s3 + $0x9c] sm:$0xf]
  %v1767 = vld [vmem:[%s3 + $0xa0] sm:$0xf]
  %v1768 = vld [vmem:[%s3 + $0xa4] sm:$0xf]
  %v1769 = vld [vmem:[%s3 + $0xa8] sm:$0xf]
  %v1770 = vld [vmem:[%s3 + $0xac] sm:$0xf]
  %v1771 = vld [vmem:[%s3 + $0xb0] sm:$0xf]
  %v1772 = vld [vmem:[%s3 + $0xb4] sm:$0xf]
  %v1773 = vld [vmem:[%s3 + $0xb8] sm:$0xf]
  %v1774 = vld [vmem:[%s3 + $0xbc] sm:$0xf]
  %v1775 = vld [vmem:[%s3 + $0xc0] sm:$0xf]
  %v1776 = vld [vmem:[%s3 + $0xc4] sm:$0xf]
  %v1827 = vunpack.c.l.b16 %v1727
  %v1828 = vunpack.c.l.b16 %v1728
  %v1829 = vunpack.c.l.b16 %v1729
  %v1830 = vunpack.c.l.b16 %v1730
  %v1831 = vunpack.c.l.b16 %v1731
  %v1832 = vunpack.c.l.b16 %v1732
  %v1833 = vunpack.c.l.b16 %v1733
  %v1834 = vunpack.c.l.b16 %v1734
  %v1835 = vunpack.c.l.b16 %v1735
  %v1836 = vunpack.c.l.b16 %v1736
  %v1837 = vunpack.c.l.b16 %v1737
  %v1838 = vunpack.c.l.b16 %v1738
  %v1839 = vunpack.c.l.b16 %v1739
  %v1840 = vunpack.c.l.b16 %v1740
  %v1841 = vunpack.c.l.b16 %v1741
  %v1842 = vunpack.c.l.b16 %v1742
  %v1843 = vunpack.c.l.b16 %v1743
  %v1844 = vunpack.c.l.b16 %v1744
  %v1845 = vunpack.c.l.b16 %v1745
  %v1846 = vunpack.c.l.b16 %v1746
  %v1847 = vunpack.c.l.b16 %v1747
  %v1848 = vunpack.c.l.b16 %v1748
  %v1849 = vunpack.c.l.b16 %v1749
  %v1850 = vunpack.c.l.b16 %v1750
  %v1851 = vunpack.c.l.b16 %v1751
  %v1852 = vunpack.c.l.b16 %v1752
  %v1853 = vunpack.c.l.b16 %v1753
  %v1854 = vunpack.c.l.b16 %v1754
  %v1855 = vunpack.c.l.b16 %v1755
  %v1856 = vunpack.c.l.b16 %v1756
  %v1857 = vunpack.c.l.b16 %v1757
  %v1858 = vunpack.c.l.b16 %v1758
  %v1859 = vunpack.c.l.b16 %v1759
  %v1860 = vunpack.c.l.b16 %v1760
  %v1861 = vunpack.c.l.b16 %v1761
  %v1862 = vunpack.c.l.b16 %v1762
  %v1863 = vunpack.c.l.b16 %v1763
  %v1864 = vunpack.c.l.b16 %v1764
  %v1865 = vunpack.c.l.b16 %v1765
  %v1866 = vunpack.c.l.b16 %v1766
  %v1867 = vunpack.c.l.b16 %v1767
  %v1868 = vunpack.c.l.b16 %v1768
  %v1869 = vunpack.c.l.b16 %v1769
  %v1870 = vunpack.c.l.b16 %v1770
  %v1871 = vunpack.c.l.b16 %v1771
  %v1872 = vunpack.c.l.b16 %v1772
  %v1873 = vunpack.c.l.b16 %v1773
  %v1874 = vunpack.c.l.b16 %v1774
  %v1875 = vunpack.c.l.b16 %v1775
  %v1876 = vunpack.c.l.b16 %v1776
  %v1877 = vpack.c.b16 %v1828, %v1827
  %v1878 = vpack.c.b16 %v1830, %v1829
  %v1879 = vpack.c.b16 %v1832, %v1831
  %v1880 = vpack.c.b16 %v1834, %v1833
  %v1881 = vpack.c.b16 %v1836, %v1835
  %v1882 = vpack.c.b16 %v1838, %v1837
  %v1883 = vpack.c.b16 %v1840, %v1839
  %v1884 = vpack.c.b16 %v1842, %v1841
  %v1885 = vpack.c.b16 %v1844, %v1843
  %v1886 = vpack.c.b16 %v1846, %v1845
  %v1887 = vpack.c.b16 %v1848, %v1847
  %v1888 = vpack.c.b16 %v1850, %v1849
  %v1889 = vpack.c.b16 %v1852, %v1851
  %v1890 = vpack.c.b16 %v1854, %v1853
  %v1891 = vpack.c.b16 %v1856, %v1855
  %v1892 = vpack.c.b16 %v1858, %v1857
  %v1893 = vpack.c.b16 %v1860, %v1859
  %v1894 = vpack.c.b16 %v1862, %v1861
  %v1895 = vpack.c.b16 %v1864, %v1863
  %v1896 = vpack.c.b16 %v1866, %v1865
  %v1897 = vpack.c.b16 %v1868, %v1867
  %v1898 = vpack.c.b16 %v1870, %v1869
  %v1899 = vpack.c.b16 %v1872, %v1871
  %v1900 = vpack.c.b16 %v1874, %v1873
  %v1901 = vpack.c.b16 %v1876, %v1875
  %v1903 = vsel %vm245, %v1877, 0
  %v1906 = vsel %vm245, %v1878, 0
  %v1909 = vsel %vm245, %v1879, 0
  %v1912 = vsel %vm245, %v1880, 0
  %v1915 = vsel %vm245, %v1881, 0
  %v1918 = vsel %vm245, %v1882, 0
  %v1921 = vsel %vm245, %v1883, 0
  %v1924 = vsel %vm245, %v1884, 0
  %v1927 = vsel %vm245, %v1885, 0
  %v1930 = vsel %vm245, %v1886, 0
  %v1933 = vsel %vm245, %v1887, 0
  %v1936 = vsel %vm245, %v1888, 0
  %v1939 = vsel %vm245, %v1889, 0
  %v1942 = vsel %vm245, %v1890, 0
  %v1945 = vsel %vm245, %v1891, 0
  %v1948 = vsel %vm245, %v1892, 0
  %v1951 = vsel %vm245, %v1893, 0
  %v1954 = vsel %vm245, %v1894, 0
  %v1957 = vsel %vm245, %v1895, 0
  %v1960 = vsel %vm245, %v1896, 0
  %v1963 = vsel %vm245, %v1897, 0
  %v1966 = vsel %vm245, %v1898, 0
  %v1969 = vsel %vm245, %v1899, 0
  %v1972 = vsel %vm245, %v1900, 0
  %v1975 = vsel %vm245, %v1901, 0
  %1977 = vmatprep.subr.bf16.mxu0 0
  %1978 = vmatpush1.bf16.msra.mxu0 %v236
  %1979 = vmatprep.subr.bf16.mxu0 0
  %1980 = vmatpush1.bf16.msra.mxu0 %v237
  %1981 = vmatprep.subr.bf16.mxu0 0
  %1982 = vmatpush1.bf16.msra.mxu0 %v238
  %1983 = vmatprep.subr.bf16.mxu0 0
  %1984 = vmatpush1.bf16.msra.mxu0 %v239
  %1985 = vmatprep.subr.bf16.mxu0 0
  %1986 = vmatpush1.bf16.msra.mxu0 %v326
  %1987 = vmatprep.subr.bf16.mxu0 0
  %1988 = vmatpush1.bf16.msra.mxu0 0
  %1989 = vmatprep.subr.bf16.mxu0 0
  %1990 = vmatpush1.bf16.msra.mxu0 0
  %1991 = vmatprep.subr.bf16.mxu0 0
  %1992 = vmatpush1.bf16.msra.mxu0 0
  %1993 = vmatprep.subr.bf16.mxu0 0
  %1994 = vmatpush1.bf16.msra.mxu0 0
  %1995 = vmatprep.subr.bf16.mxu0 0
  %1996 = vmatpush1.bf16.msra.mxu0 0
  %1997 = vmatprep.subr.bf16.mxu0 0
  %1998 = vmatpush1.bf16.msra.mxu0 0
  %1999 = vmatprep.subr.bf16.mxu0 0
  %2000 = vmatpush1.bf16.msra.mxu0 0
  %2001 = vmatprep.subr.bf16.mxu0 0
  %2002 = vmatpush1.bf16.msra.mxu0 0
  %2003 = vmatprep.subr.bf16.mxu0 0
  %2004 = vmatpush1.bf16.msra.mxu0 0
  %2005 = vmatprep.subr.bf16.mxu0 0
  %2006 = vmatpush1.bf16.msra.mxu0 0
  %2007 = vmatprep.subr.bf16.mxu0 0
  %2008 = vmatpush1.bf16.msra.mxu0 0
  %2009 = vmatprep.mubr.bf16.mxu0 0
  %2010 = vmatmul.mubr.bf16.gmra.mrb[0].mxu0 %v1903
  %v2011 = vpop.f32.mrb[0].mxu0
  %v2012 = vadd.f32 %v89, %v2011
  %v2013 = vpop.f32.mrb[0].mxu0
  %v2014 = vpop.f32.mrb[0].mxu0
  %v2015 = vadd.f32 %v89, %v2014
  %v2016 = vpop.f32.mrb[0].mxu0
  %2017 = vmatprep.mubr.bf16.mxu0 0
  %2018 = vmatmul.mubr.bf16.gmra.mrb[0].mxu0 %v1906
  %v2019 = vpop.f32.mrb[0].mxu0
  %v2020 = vadd.f32 %v89, %v2019
  %v2021 = vpop.f32.mrb[0].mxu0
  %v2022 = vpop.f32.mrb[0].mxu0
  %v2023 = vadd.f32 %v89, %v2022
  %v2024 = vpop.f32.mrb[0].mxu0
  %2025 = vmatprep.mubr.bf16.mxu0 0
  %2026 = vmatmul.mubr.bf16.gmra.mrb[0].mxu0 %v1909
  %v2027 = vpop.f32.mrb[0].mxu0
  %v2028 = vadd.f32 %v89, %v2027
  %v2029 = vpop.f32.mrb[0].mxu0
  %v2030 = vpop.f32.mrb[0].mxu0
  %v2031 = vadd.f32 %v89, %v2030
  %v2032 = vpop.f32.mrb[0].mxu0
  %2033 = vmatprep.mubr.bf16.mxu0 0
  %2034 = vmatmul.mubr.bf16.gmra.mrb[0].mxu0 %v1912
  %v2035 = vpop.f32.mrb[0].mxu0
  %v2036 = vadd.f32 %v89, %v2035
  %v2037 = vpop.f32.mrb[0].mxu0
  %v2038 = vpop.f32.mrb[0].mxu0
  %v2039 = vadd.f32 %v89, %v2038
  %v2040 = vpop.f32.mrb[0].mxu0
  %2041 = vmatprep.mubr.bf16.mxu0 0
  %2042 = vmatmul.mubr.bf16.gmra.mrb[0].mxu0 %v1915
  %v2043 = vpop.f32.mrb[0].mxu0
  %v2044 = vadd.f32 %v89, %v2043
  %v2045 = vpop.f32.mrb[0].mxu0
  %v2046 = vpop.f32.mrb[0].mxu0
  %v2047 = vadd.f32 %v89, %v2046
  %v2048 = vpop.f32.mrb[0].mxu0
  %2049 = vmatprep.mubr.bf16.mxu0 0
  %2050 = vmatmul.mubr.bf16.gmra.mrb[0].mxu0 %v1918
  %v2051 = vpop.f32.mrb[0].mxu0
  %v2052 = vadd.f32 %v89, %v2051
  %v2053 = vpop.f32.mrb[0].mxu0
  %v2054 = vpop.f32.mrb[0].mxu0
  %v2055 = vadd.f32 %v89, %v2054
  %v2056 = vpop.f32.mrb[0].mxu0
  %2057 = vmatprep.mubr.bf16.mxu0 0
  %2058 = vmatmul.mubr.bf16.gmra.mrb[0].mxu0 %v1921
  %v2059 = vpop.f32.mrb[0].mxu0
  %v2060 = vadd.f32 %v89, %v2059
  %v2061 = vpop.f32.mrb[0].mxu0
  %v2062 = vpop.f32.mrb[0].mxu0
  %v2063 = vadd.f32 %v89, %v2062
  %v2064 = vpop.f32.mrb[0].mxu0
  %2065 = vmatprep.mubr.bf16.mxu0 0
  %2066 = vmatmul.mubr.bf16.gmra.mrb[0].mxu0 %v1924
  %v2067 = vpop.f32.mrb[0].mxu0
  %v2068 = vadd.f32 %v89, %v2067
  %v2069 = vpop.f32.mrb[0].mxu0
  %v2070 = vpop.f32.mrb[0].mxu0
  %v2071 = vadd.f32 %v89, %v2070
  %v2072 = vpop.f32.mrb[0].mxu0
  %2073 = vmatprep.mubr.bf16.mxu0 0
  %2074 = vmatmul.mubr.bf16.gmra.mrb[0].mxu0 %v1927
  %v2075 = vpop.f32.mrb[0].mxu0
  %v2076 = vadd.f32 %v89, %v2075
  %v2077 = vpop.f32.mrb[0].mxu0
  %v2078 = vpop.f32.mrb[0].mxu0
  %v2079 = vadd.f32 %v89, %v2078
  %v2080 = vpop.f32.mrb[0].mxu0
  %2081 = vmatprep.mubr.bf16.mxu0 0
  %2082 = vmatmul.mubr.bf16.gmra.mrb[0].mxu0 %v1930
  %v2083 = vpop.f32.mrb[0].mxu0
  %v2084 = vadd.f32 %v89, %v2083
  %v2085 = vpop.f32.mrb[0].mxu0
  %v2086 = vpop.f32.mrb[0].mxu0
  %v2087 = vadd.f32 %v89, %v2086
  %v2088 = vpop.f32.mrb[0].mxu0
  %2089 = vmatprep.mubr.bf16.mxu0 0
  %2090 = vmatmul.mubr.bf16.gmra.mrb[0].mxu0 %v1933
  %v2091 = vpop.f32.mrb[0].mxu0
  %v2092 = vadd.f32 %v89, %v2091
  %v2093 = vpop.f32.mrb[0].mxu0
  %v2094 = vpop.f32.mrb[0].mxu0
  %v2095 = vadd.f32 %v89, %v2094
  %v2096 = vpop.f32.mrb[0].mxu0
  %2097 = vmatprep.mubr.bf16.mxu0 0
  %2098 = vmatmul.mubr.bf16.gmra.mrb[0].mxu0 %v1936
  %v2099 = vpop.f32.mrb[0].mxu0
  %v2100 = vadd.f32 %v89, %v2099
  %v2101 = vpop.f32.mrb[0].mxu0
  %v2102 = vpop.f32.mrb[0].mxu0
  %v2103 = vadd.f32 %v89, %v2102
  %v2104 = vpop.f32.mrb[0].mxu0
  %2105 = vmatprep.mubr.bf16.mxu0 0
  %2106 = vmatmul.mubr.bf16.gmra.mrb[0].mxu0 %v1939
  %v2107 = vpop.f32.mrb[0].mxu0
  %v2108 = vadd.f32 %v89, %v2107
  %v2109 = vpop.f32.mrb[0].mxu0
  %v2110 = vpop.f32.mrb[0].mxu0
  %v2111 = vadd.f32 %v89, %v2110
  %v2112 = vpop.f32.mrb[0].mxu0
  %2113 = vmatprep.mubr.bf16.mxu0 0
  %2114 = vmatmul.mubr.bf16.gmra.mrb[0].mxu0 %v1942
  %v2115 = vpop.f32.mrb[0].mxu0
  %v2116 = vadd.f32 %v89, %v2115
  %v2117 = vpop.f32.mrb[0].mxu0
  %v2118 = vpop.f32.mrb[0].mxu0
  %v2119 = vadd.f32 %v89, %v2118
  %v2120 = vpop.f32.mrb[0].mxu0
  %2121 = vmatprep.mubr.bf16.mxu0 0
  %2122 = vmatmul.mubr.bf16.gmra.mrb[0].mxu0 %v1945
  %v2123 = vpop.f32.mrb[0].mxu0
  %v2124 = vadd.f32 %v89, %v2123
  %v2125 = vpop.f32.mrb[0].mxu0
  %v2126 = vpop.f32.mrb[0].mxu0
  %v2127 = vadd.f32 %v89, %v2126
  %v2128 = vpop.f32.mrb[0].mxu0
  %2129 = vmatprep.mubr.bf16.mxu0 0
  %2130 = vmatmul.mubr.bf16.gmra.mrb[0].mxu0 %v1948
  %v2131 = vpop.f32.mrb[0].mxu0
  %v2132 = vadd.f32 %v89, %v2131
  %v2133 = vpop.f32.mrb[0].mxu0
  %v2134 = vpop.f32.mrb[0].mxu0
  %v2135 = vadd.f32 %v89, %v2134
  %v2136 = vpop.f32.mrb[0].mxu0
  %2137 = vmatprep.mubr.bf16.mxu0 0
  %2138 = vmatmul.mubr.bf16.gmra.mrb[0].mxu0 %v1951
  %v2139 = vpop.f32.mrb[0].mxu0
  %v2140 = vadd.f32 %v89, %v2139
  %v2141 = vpop.f32.mrb[0].mxu0
  %v2142 = vpop.f32.mrb[0].mxu0
  %v2143 = vadd.f32 %v89, %v2142
  %v2144 = vpop.f32.mrb[0].mxu0
  %2145 = vmatprep.mubr.bf16.mxu0 0
  %2146 = vmatmul.mubr.bf16.gmra.mrb[0].mxu0 %v1954
  %v2147 = vpop.f32.mrb[0].mxu0
  %v2148 = vadd.f32 %v89, %v2147
  %v2149 = vpop.f32.mrb[0].mxu0
  %v2150 = vpop.f32.mrb[0].mxu0
  %v2151 = vadd.f32 %v89, %v2150
  %v2152 = vpop.f32.mrb[0].mxu0
  %2153 = vmatprep.mubr.bf16.mxu0 0
  %2154 = vmatmul.mubr.bf16.gmra.mrb[0].mxu0 %v1957
  %v2155 = vpop.f32.mrb[0].mxu0
  %v2156 = vadd.f32 %v89, %v2155
  %v2157 = vpop.f32.mrb[0].mxu0
  %v2158 = vpop.f32.mrb[0].mxu0
  %v2159 = vadd.f32 %v89, %v2158
  %v2160 = vpop.f32.mrb[0].mxu0
  %2161 = vmatprep.mubr.bf16.mxu0 0
  %2162 = vmatmul.mubr.bf16.gmra.mrb[0].mxu0 %v1960
  %v2163 = vpop.f32.mrb[0].mxu0
  %v2164 = vadd.f32 %v89, %v2163
  %v2165 = vpop.f32.mrb[0].mxu0
  %v2166 = vpop.f32.mrb[0].mxu0
  %v2167 = vadd.f32 %v89, %v2166
  %v2168 = vpop.f32.mrb[0].mxu0
  %2169 = vmatprep.mubr.bf16.mxu0 0
  %2170 = vmatmul.mubr.bf16.gmra.mrb[0].mxu0 %v1963
  %v2171 = vpop.f32.mrb[0].mxu0
  %v2172 = vadd.f32 %v89, %v2171
  %v2173 = vpop.f32.mrb[0].mxu0
  %v2174 = vpop.f32.mrb[0].mxu0
  %v2175 = vadd.f32 %v89, %v2174
  %v2176 = vpop.f32.mrb[0].mxu0
  %2177 = vmatprep.mubr.bf16.mxu0 0
  %2178 = vmatmul.mubr.bf16.gmra.mrb[0].mxu0 %v1966
  %v2179 = vpop.f32.mrb[0].mxu0
  %v2180 = vadd.f32 %v89, %v2179
  %v2181 = vpop.f32.mrb[0].mxu0
  %v2182 = vpop.f32.mrb[0].mxu0
  %v2183 = vadd.f32 %v89, %v2182
  %v2184 = vpop.f32.mrb[0].mxu0
  %2185 = vmatprep.mubr.bf16.mxu0 0
  %2186 = vmatmul.mubr.bf16.gmra.mrb[0].mxu0 %v1969
  %v2187 = vpop.f32.mrb[0].mxu0
  %v2188 = vadd.f32 %v89, %v2187
  %v2189 = vpop.f32.mrb[0].mxu0
  %v2190 = vpop.f32.mrb[0].mxu0
  %v2191 = vadd.f32 %v89, %v2190
  %v2192 = vpop.f32.mrb[0].mxu0
  %2193 = vmatprep.mubr.bf16.mxu0 0
  %2194 = vmatmul.mubr.bf16.gmra.mrb[0].mxu0 %v1972
  %v2195 = vpop.f32.mrb[0].mxu0
  %v2196 = vadd.f32 %v89, %v2195
  %v2197 = vpop.f32.mrb[0].mxu0
  %v2198 = vpop.f32.mrb[0].mxu0
  %v2199 = vadd.f32 %v89, %v2198
  %v2200 = vpop.f32.mrb[0].mxu0
  %2201 = vmatprep.mubr.bf16.mxu0 0
  %2202 = vmatmul.mubr.bf16.gmra.mrb[0].mxu0 %v1975
  %v2203 = vpop.f32.mrb[0].mxu0
  %v2204 = vadd.f32 %v89, %v2203
  %v2205 = vpop.f32.mrb[0].mxu0
  %v2206 = vpop.f32.mrb[0].mxu0
  %v2207 = vadd.f32 %v89, %v2206
  %v2208 = vpop.f32.mrb[0].mxu0
  %2209 = vdwg.mxu0
  %v2210 = vmax.f32 %v2012, 0.0
  %v2211 = vmax.f32 %v2015, 0.0
  %v2212 = vmax.f32 %v2020, 0.0
  %v2213 = vmax.f32 %v2023, 0.0
  %v2214 = vmax.f32 %v2028, 0.0
  %v2215 = vmax.f32 %v2031, 0.0
  %v2216 = vmax.f32 %v2036, 0.0
  %v2217 = vmax.f32 %v2039, 0.0
  %v2218 = vmax.f32 %v2044, 0.0
  %v2219 = vmax.f32 %v2047, 0.0
  %v2220 = vmax.f32 %v2052, 0.0
  %v2221 = vmax.f32 %v2055, 0.0
  %v2222 = vmax.f32 %v2060, 0.0
  %v2223 = vmax.f32 %v2063, 0.0
  %v2224 = vmax.f32 %v2068, 0.0
  %v2225 = vmax.f32 %v2071, 0.0
  %v2226 = vmax.f32 %v2076, 0.0
  %v2227 = vmax.f32 %v2079, 0.0
  %v2228 = vmax.f32 %v2084, 0.0
  %v2229 = vmax.f32 %v2087, 0.0
  %v2230 = vmax.f32 %v2092, 0.0
  %v2231 = vmax.f32 %v2095, 0.0
  %v2232 = vmax.f32 %v2100, 0.0
  %v2233 = vmax.f32 %v2103, 0.0
  %v2234 = vmax.f32 %v2108, 0.0
  %v2235 = vmax.f32 %v2111, 0.0
  %v2236 = vmax.f32 %v2116, 0.0
  %v2237 = vmax.f32 %v2119, 0.0
  %v2238 = vmax.f32 %v2124, 0.0
  %v2239 = vmax.f32 %v2127, 0.0
  %v2240 = vmax.f32 %v2132, 0.0
  %v2241 = vmax.f32 %v2135, 0.0
  %v2242 = vmax.f32 %v2140, 0.0
  %v2243 = vmax.f32 %v2143, 0.0
  %v2244 = vmax.f32 %v2148, 0.0
  %v2245 = vmax.f32 %v2151, 0.0
  %v2246 = vmax.f32 %v2156, 0.0
  %v2247 = vmax.f32 %v2159, 0.0
  %v2248 = vmax.f32 %v2164, 0.0
  %v2249 = vmax.f32 %v2167, 0.0
  %v2250 = vmax.f32 %v2172, 0.0
  %v2251 = vmax.f32 %v2175, 0.0
  %v2252 = vmax.f32 %v2180, 0.0
  %v2253 = vmax.f32 %v2183, 0.0
  %v2254 = vmax.f32 %v2188, 0.0
  %v2255 = vmax.f32 %v2191, 0.0
  %v2256 = vmax.f32 %v2196, 0.0
  %v2257 = vmax.f32 %v2199, 0.0
  %v2258 = vmax.f32 %v2204, 0.0
  %v2259 = vmax.f32 %v2207, 0.0
  %v2260 = vmax.f32 %v1677, %v2210
  %v2261 = vmax.f32 %v1678, %v2211
  %v2262 = vmax.f32 %v1679, %v2212
  %v2263 = vmax.f32 %v1680, %v2213
  %v2264 = vmax.f32 %v1681, %v2214
  %v2265 = vmax.f32 %v1682, %v2215
  %v2266 = vmax.f32 %v1683, %v2216
  %v2267 = vmax.f32 %v1684, %v2217
  %v2268 = vmax.f32 %v1685, %v2218
  %v2269 = vmax.f32 %v1686, %v2219
  %v2270 = vmax.f32 %v1687, %v2220
  %v2271 = vmax.f32 %v1688, %v2221
  %v2272 = vmax.f32 %v1689, %v2222
  %v2273 = vmax.f32 %v1690, %v2223
  %v2274 = vmax.f32 %v1691, %v2224
  %v2275 = vmax.f32 %v1692, %v2225
  %v2276 = vmax.f32 %v1693, %v2226
  %v2277 = vmax.f32 %v1694, %v2227
  %v2278 = vmax.f32 %v1695, %v2228
  %v2279 = vmax.f32 %v1696, %v2229
  %v2280 = vmax.f32 %v1697, %v2230
  %v2281 = vmax.f32 %v1698, %v2231
  %v2282 = vmax.f32 %v1699, %v2232
  %v2283 = vmax.f32 %v1700, %v2233
  %v2284 = vmax.f32 %v1701, %v2234
  %v2285 = vmax.f32 %v1702, %v2235
  %v2286 = vmax.f32 %v1703, %v2236
  %v2287 = vmax.f32 %v1704, %v2237
  %v2288 = vmax.f32 %v1705, %v2238
  %v2289 = vmax.f32 %v1706, %v2239
  %v2290 = vmax.f32 %v1707, %v2240
  %v2291 = vmax.f32 %v1708, %v2241
  %v2292 = vmax.f32 %v1709, %v2242
  %v2293 = vmax.f32 %v1710, %v2243
  %v2294 = vmax.f32 %v1711, %v2244
  %v2295 = vmax.f32 %v1712, %v2245
  %v2296 = vmax.f32 %v1713, %v2246
  %v2297 = vmax.f32 %v1714, %v2247
  %v2298 = vmax.f32 %v1715, %v2248
  %v2299 = vmax.f32 %v1716, %v2249
  %v2300 = vmax.f32 %v1717, %v2250
  %v2301 = vmax.f32 %v1718, %v2251
  %v2302 = vmax.f32 %v1719, %v2252
  %v2303 = vmax.f32 %v1720, %v2253
  %v2304 = vmax.f32 %v1721, %v2254
  %v2305 = vmax.f32 %v1722, %v2255
  %v2306 = vmax.f32 %v1723, %v2256
  %v2307 = vmax.f32 %v1724, %v2257
  %v2308 = vmax.f32 %v1725, %v2258
  %v2309 = vmax.f32 %v1726, %v2259
  %v2310 = vmax.f32 %v1144, %v2260
  %v2311 = vmax.f32 %v1145, %v2261
  %v2312 = vmax.f32 %v1146, %v2262
  %v2313 = vmax.f32 %v1147, %v2263
  %v2314 = vmax.f32 %v1148, %v2264
  %v2315 = vmax.f32 %v1149, %v2265
  %v2316 = vmax.f32 %v1150, %v2266
  %v2317 = vmax.f32 %v1151, %v2267
  %v2318 = vmax.f32 %v1152, %v2268
  %v2319 = vmax.f32 %v1153, %v2269
  %v2320 = vmax.f32 %v1154, %v2270
  %v2321 = vmax.f32 %v1155, %v2271
  %v2322 = vmax.f32 %v1156, %v2272
  %v2323 = vmax.f32 %v1157, %v2273
  %v2324 = vmax.f32 %v1158, %v2274
  %v2325 = vmax.f32 %v1159, %v2275
  %v2326 = vmax.f32 %v1160, %v2276
  %v2327 = vmax.f32 %v1161, %v2277
  %v2328 = vmax.f32 %v1162, %v2278
  %v2329 = vmax.f32 %v1163, %v2279
  %v2330 = vmax.f32 %v1164, %v2280
  %v2331 = vmax.f32 %v1165, %v2281
  %v2332 = vmax.f32 %v1166, %v2282
  %v2333 = vmax.f32 %v1167, %v2283
  %v2334 = vmax.f32 %v1168, %v2284
  %v2335 = vmax.f32 %v1169, %v2285
  %v2336 = vmax.f32 %v1170, %v2286
  %v2337 = vmax.f32 %v1171, %v2287
  %v2338 = vmax.f32 %v1172, %v2288
  %v2339 = vmax.f32 %v1173, %v2289
  %v2340 = vmax.f32 %v1174, %v2290
  %v2341 = vmax.f32 %v1175, %v2291
  %v2342 = vmax.f32 %v1176, %v2292
  %v2343 = vmax.f32 %v1177, %v2293
  %v2344 = vmax.f32 %v1178, %v2294
  %v2345 = vmax.f32 %v1179, %v2295
  %v2346 = vmax.f32 %v1180, %v2296
  %v2347 = vmax.f32 %v1181, %v2297
  %v2348 = vmax.f32 %v1182, %v2298
  %v2349 = vmax.f32 %v1183, %v2299
  %v2350 = vmax.f32 %v1184, %v2300
  %v2351 = vmax.f32 %v1185, %v2301
  %v2352 = vmax.f32 %v1186, %v2302
  %v2353 = vmax.f32 %v1187, %v2303
  %v2354 = vmax.f32 %v1188, %v2304
  %v2355 = vmax.f32 %v1189, %v2305
  %v2356 = vmax.f32 %v1190, %v2306
  %v2357 = vmax.f32 %v1191, %v2307
  %v2358 = vmax.f32 %v1192, %v2308
  %v2359 = vmax.f32 %v1193, %v2309
  %v2360 = vpack.c.bf16 %v2311, %v2310
  %v2361 = vpack.c.bf16 %v2313, %v2312
  %v2362 = vpack.c.bf16 %v2315, %v2314
  %v2363 = vpack.c.bf16 %v2317, %v2316
  %v2364 = vpack.c.bf16 %v2319, %v2318
  %v2365 = vpack.c.bf16 %v2321, %v2320
  %v2366 = vpack.c.bf16 %v2323, %v2322
  %v2367 = vpack.c.bf16 %v2325, %v2324
  %v2368 = vpack.c.bf16 %v2327, %v2326
  %v2369 = vpack.c.bf16 %v2329, %v2328
  %v2370 = vpack.c.bf16 %v2331, %v2330
  %v2371 = vpack.c.bf16 %v2333, %v2332
  %v2372 = vpack.c.bf16 %v2335, %v2334
  %v2373 = vpack.c.bf16 %v2337, %v2336
  %v2374 = vpack.c.bf16 %v2339, %v2338
  %v2375 = vpack.c.bf16 %v2341, %v2340
  %v2376 = vpack.c.bf16 %v2343, %v2342
  %v2377 = vpack.c.bf16 %v2345, %v2344
  %v2378 = vpack.c.bf16 %v2347, %v2346
  %v2379 = vpack.c.bf16 %v2349, %v2348
  %v2380 = vpack.c.bf16 %v2351, %v2350
  %v2381 = vpack.c.bf16 %v2353, %v2352
  %v2382 = vpack.c.bf16 %v2355, %v2354
  %v2383 = vpack.c.bf16 %v2357, %v2356
  %v2384 = vpack.c.bf16 %v2359, %v2358
  %v2410 = vunpack.c.l.b16 %v2360
  %v2411 = vunpack.c.h.b16 %v2360
  %v2412 = vunpack.c.l.b16 %v2361
  %v2413 = vunpack.c.h.b16 %v2361
  %v2414 = vunpack.c.l.b16 %v2362
  %v2415 = vunpack.c.h.b16 %v2362
  %v2416 = vunpack.c.l.b16 %v2363
  %v2417 = vunpack.c.h.b16 %v2363
  %v2418 = vunpack.c.l.b16 %v2364
  %v2419 = vunpack.c.h.b16 %v2364
  %v2420 = vunpack.c.l.b16 %v2365
  %v2421 = vunpack.c.h.b16 %v2365
  %v2422 = vunpack.c.l.b16 %v2366
  %v2423 = vunpack.c.h.b16 %v2366
  %v2424 = vunpack.c.l.b16 %v2367
  %v2425 = vunpack.c.h.b16 %v2367
  %v2426 = vunpack.c.l.b16 %v2368
  %v2427 = vunpack.c.h.b16 %v2368
  %v2428 = vunpack.c.l.b16 %v2369
  %v2429 = vunpack.c.h.b16 %v2369
  %v2430 = vunpack.c.l.b16 %v2370
  %v2431 = vunpack.c.h.b16 %v2370
  %v2432 = vunpack.c.l.b16 %v2371
  %v2433 = vunpack.c.h.b16 %v2371
  %v2434 = vunpack.c.l.b16 %v2372
  %v2435 = vunpack.c.h.b16 %v2372
  %v2436 = vunpack.c.l.b16 %v2373
  %v2437 = vunpack.c.h.b16 %v2373
  %v2438 = vunpack.c.l.b16 %v2374
  %v2439 = vunpack.c.h.b16 %v2374
  %v2440 = vunpack.c.l.b16 %v2375
  %v2441 = vunpack.c.h.b16 %v2375
  %v2442 = vunpack.c.l.b16 %v2376
  %v2443 = vunpack.c.h.b16 %v2376
  %v2444 = vunpack.c.l.b16 %v2377
  %v2445 = vunpack.c.h.b16 %v2377
  %v2446 = vunpack.c.l.b16 %v2378
  %v2447 = vunpack.c.h.b16 %v2378
  %v2448 = vunpack.c.l.b16 %v2379
  %v2449 = vunpack.c.h.b16 %v2379
  %v2450 = vunpack.c.l.b16 %v2380
  %v2451 = vunpack.c.h.b16 %v2380
  %v2452 = vunpack.c.l.b16 %v2381
  %v2453 = vunpack.c.h.b16 %v2381
  %v2454 = vunpack.c.l.b16 %v2382
  %v2455 = vunpack.c.h.b16 %v2382
  %v2456 = vunpack.c.l.b16 %v2383
  %v2457 = vunpack.c.h.b16 %v2383
  %v2458 = vunpack.c.l.b16 %v2384
  %v2459 = vunpack.c.h.b16 %v2384
  %v2460 = vpack.c.b16 %v2410, %v2410
  %v2461 = vpack.c.b16 %v2411, %v2411
  %v2462 = vpack.c.b16 %v2412, %v2412
  %v2463 = vpack.c.b16 %v2413, %v2413
  %v2464 = vpack.c.b16 %v2414, %v2414
  %v2465 = vpack.c.b16 %v2415, %v2415
  %v2466 = vpack.c.b16 %v2416, %v2416
  %v2467 = vpack.c.b16 %v2417, %v2417
  %v2468 = vpack.c.b16 %v2418, %v2418
  %v2469 = vpack.c.b16 %v2419, %v2419
  %v2470 = vpack.c.b16 %v2420, %v2420
  %v2471 = vpack.c.b16 %v2421, %v2421
  %v2472 = vpack.c.b16 %v2422, %v2422
  %v2473 = vpack.c.b16 %v2423, %v2423
  %v2474 = vpack.c.b16 %v2424, %v2424
  %v2475 = vpack.c.b16 %v2425, %v2425
  %v2476 = vpack.c.b16 %v2426, %v2426
  %v2477 = vpack.c.b16 %v2427, %v2427
  %v2478 = vpack.c.b16 %v2428, %v2428
  %v2479 = vpack.c.b16 %v2429, %v2429
  %v2480 = vpack.c.b16 %v2430, %v2430
  %v2481 = vpack.c.b16 %v2431, %v2431
  %v2482 = vpack.c.b16 %v2432, %v2432
  %v2483 = vpack.c.b16 %v2433, %v2433
  %v2484 = vpack.c.b16 %v2434, %v2434
  %v2485 = vpack.c.b16 %v2435, %v2435
  %v2486 = vpack.c.b16 %v2436, %v2436
  %v2487 = vpack.c.b16 %v2437, %v2437
  %v2488 = vpack.c.b16 %v2438, %v2438
  %v2489 = vpack.c.b16 %v2439, %v2439
  %v2490 = vpack.c.b16 %v2440, %v2440
  %v2491 = vpack.c.b16 %v2441, %v2441
  %v2492 = vpack.c.b16 %v2442, %v2442
  %v2493 = vpack.c.b16 %v2443, %v2443
  %v2494 = vpack.c.b16 %v2444, %v2444
  %v2495 = vpack.c.b16 %v2445, %v2445
  %v2496 = vpack.c.b16 %v2446, %v2446
  %v2497 = vpack.c.b16 %v2447, %v2447
  %v2498 = vpack.c.b16 %v2448, %v2448
  %v2499 = vpack.c.b16 %v2449, %v2449
  %v2500 = vpack.c.b16 %v2450, %v2450
  %v2501 = vpack.c.b16 %v2451, %v2451
  %v2502 = vpack.c.b16 %v2452, %v2452
  %v2503 = vpack.c.b16 %v2453, %v2453
  %v2504 = vpack.c.b16 %v2454, %v2454
  %v2505 = vpack.c.b16 %v2455, %v2455
  %v2506 = vpack.c.b16 %v2456, %v2456
  %v2507 = vpack.c.b16 %v2457, %v2457
  %v2508 = vpack.c.b16 %v2458, %v2458
  %v2509 = vpack.c.b16 %v2459, %v2459
  %2560 = vst [vmem:[%s6] sm:$0xf] %v2460
  %2561 = vst [vmem:[%s6 + $0x4] sm:$0xf] %v2461
  %2562 = vst [vmem:[%s6 + $0x8] sm:$0xf] %v2462
  %2563 = vst [vmem:[%s6 + $0xc] sm:$0xf] %v2463
  %2564 = vst [vmem:[%s6 + $0x10] sm:$0xf] %v2464
  %2565 = vst [vmem:[%s6 + $0x14] sm:$0xf] %v2465
  %2566 = vst [vmem:[%s6 + $0x18] sm:$0xf] %v2466
  %2567 = vst [vmem:[%s6 + $0x1c] sm:$0xf] %v2467
  %2568 = vst [vmem:[%s6 + $0x20] sm:$0xf] %v2468
  %2569 = vst [vmem:[%s6 + $0x24] sm:$0xf] %v2469
  %2570 = vst [vmem:[%s6 + $0x28] sm:$0xf] %v2470
  %2571 = vst [vmem:[%s6 + $0x2c] sm:$0xf] %v2471
  %2572 = vst [vmem:[%s6 + $0x30] sm:$0xf] %v2472
  %2573 = vst [vmem:[%s6 + $0x34] sm:$0xf] %v2473
  %2574 = vst [vmem:[%s6 + $0x38] sm:$0xf] %v2474
  %2575 = vst [vmem:[%s6 + $0x3c] sm:$0xf] %v2475
  %2576 = vst [vmem:[%s6 + $0x40] sm:$0xf] %v2476
  %2577 = vst [vmem:[%s6 + $0x44] sm:$0xf] %v2477
  %2578 = vst [vmem:[%s6 + $0x48] sm:$0xf] %v2478
  %2579 = vst [vmem:[%s6 + $0x4c] sm:$0xf] %v2479
  %2580 = vst [vmem:[%s6 + $0x50] sm:$0xf] %v2480
  %2581 = vst [vmem:[%s6 + $0x54] sm:$0xf] %v2481
  %2582 = vst [vmem:[%s6 + $0x58] sm:$0xf] %v2482
  %2583 = vst [vmem:[%s6 + $0x5c] sm:$0xf] %v2483
  %2584 = vst [vmem:[%s6 + $0x60] sm:$0xf] %v2484
  %2585 = vst [vmem:[%s6 + $0x64] sm:$0xf] %v2485
  %2586 = vst [vmem:[%s6 + $0x68] sm:$0xf] %v2486
  %2587 = vst [vmem:[%s6 + $0x6c] sm:$0xf] %v2487
  %2588 = vst [vmem:[%s6 + $0x70] sm:$0xf] %v2488
  %2589 = vst [vmem:[%s6 + $0x74] sm:$0xf] %v2489
  %2590 = vst [vmem:[%s6 + $0x78] sm:$0xf] %v2490
  %2591 = vst [vmem:[%s6 + $0x7c] sm:$0xf] %v2491
  %2592 = vst [vmem:[%s6 + $0x80] sm:$0xf] %v2492
  %2593 = vst [vmem:[%s6 + $0x84] sm:$0xf] %v2493
  %2594 = vst [vmem:[%s6 + $0x88] sm:$0xf] %v2494
  %2595 = vst [vmem:[%s6 + $0x8c] sm:$0xf] %v2495
  %2596 = vst [vmem:[%s6 + $0x90] sm:$0xf] %v2496
  %2597 = vst [vmem:[%s6 + $0x94] sm:$0xf] %v2497
  %2598 = vst [vmem:[%s6 + $0x98] sm:$0xf] %v2498
  %2599 = vst [vmem:[%s6 + $0x9c] sm:$0xf] %v2499
  %2600 = vst [vmem:[%s6 + $0xa0] sm:$0xf] %v2500
  %2601 = vst [vmem:[%s6 + $0xa4] sm:$0xf] %v2501
  %2602 = vst [vmem:[%s6 + $0xa8] sm:$0xf] %v2502
  %2603 = vst [vmem:[%s6 + $0xac] sm:$0xf] %v2503
  %2604 = vst [vmem:[%s6 + $0xb0] sm:$0xf] %v2504
  %2605 = vst [vmem:[%s6 + $0xb4] sm:$0xf] %v2505
  %2606 = vst [vmem:[%s6 + $0xb8] sm:$0xf] %v2506
  %2607 = vst [vmem:[%s6 + $0xbc] sm:$0xf] %v2507
  %2608 = vst [vmem:[%s6 + $0xc0] sm:$0xf] %v2508
  %2609 = vst [vmem:[%s6 + $0xc4] sm:$0xf] %v2509
  // Predicated region
  $region26: #{net_forward.3} parent=0 // pred_check
    _
  $region27: #{net_forward.3} parent=0 // pred_check_branch
    %2611 = sbr.rel (0) target = $region29
  $region28: #{net_forward.3} parent=0 // pred_region
    _
  $region29: #{net_forward.3} parent=0 // pred_fallthru
    _
  // Predicated region
  $region30: #{net_forward.3} parent=0 // pred_check
    _
  $region31: #{net_forward.3} parent=0 // pred_check_branch
    %2613 = sbr.rel (0) target = $region33
  $region32: #{net_forward.3} parent=0 // pred_region
    _
  $region33: #{net_forward.3} parent=0 // pred_fallthru
    _

// kernel: net_forward.4
$region0: #{net_forward.4}
  #allocation0 [shape = 'u32[]', space=smem, size = 0x4, offset = 0x4, fixed_abs, tag = 'smem constant byte address 0x4 - core index']
  #allocation1 [shape = 'u32[144,128]{1,0:T(1,128)}', space=vmem, size = 0x12000, scoped, tag = 'internal scratch']
  %s0 = inlined_call_operand.vmem [shape: bf16[64,150], index: 0, kind: input, shape index: {}]
  %s1 = inlined_call_operand.vmem [shape: bf16[64,150], index: 1, kind: input, shape index: {}]
  %s2 = inlined_call_operand.vmem [shape: bf16[64,150], index: 2, kind: input, shape index: {}]
  %s3 = inlined_call_operand.vmem [shape: bf16[64,150], index: 3, kind: input, shape index: {}]
  %s4 = inlined_call_operand.vmem [shape: bf16[150,128], index: 4, kind: input, shape index: {}]
  %s5 = inlined_call_operand.vmem [shape: f32[1,128], index: 5, kind: input, shape index: {}]
  %s6 = inlined_call_operand.vmem [shape: bf16[64,128], index: 6, kind: output, shape index: {}]
  %s7 = sld [smem:[#allocation0]]
  $region34: #{net_forward.4} parent=0
    _
  %s9 = ssub.s32 1, %s7
  %s10 = scalar_select 0, %s9, %s7
  // Predicated region
  $region2: #{net_forward.4} parent=0 // pred_check
    _
  $region3: #{net_forward.4} parent=0 // pred_check_branch
    %12 = sbr.rel (0) target = $region5
  $region4: #{net_forward.4} parent=0 // pred_region
    _
  $region5: #{net_forward.4} parent=0 // pred_fallthru
    _
  // Predicated region
  $region6: #{net_forward.4} parent=0 // pred_check
    _
  $region7: #{net_forward.4} parent=0 // pred_check_branch
    %14 = sbr.rel (0) target = $region9
  $region8: #{net_forward.4} parent=0 // pred_region
    _
  $region9: #{net_forward.4} parent=0 // pred_fallthru
    _
  // Predicated region
  $region10: #{net_forward.4} parent=0 // pred_check
    _
  $region11: #{net_forward.4} parent=0 // pred_check_branch
    %16 = sbr.rel (0) target = $region13
  $region12: #{net_forward.4} parent=0 // pred_region
    _
  $region13: #{net_forward.4} parent=0 // pred_fallthru
    _
  // Predicated region
  $region14: #{net_forward.4} parent=0 // pred_check
    _
  $region15: #{net_forward.4} parent=0 // pred_check_branch
    %18 = sbr.rel (0) target = $region17
  $region16: #{net_forward.4} parent=0 // pred_region
    _
  $region17: #{net_forward.4} parent=0 // pred_fallthru
    _
  // Predicated region
  $region18: #{net_forward.4} parent=0 // pred_check
    _
  $region19: #{net_forward.4} parent=0 // pred_check_branch
    %20 = sbr.rel (0) target = $region21
  $region20: #{net_forward.4} parent=0 // pred_region
    _
  $region21: #{net_forward.4} parent=0 // pred_fallthru
    _
  // Predicated region
  $region22: #{net_forward.4} parent=0 // pred_check
    _
  $region23: #{net_forward.4} parent=0 // pred_check_branch
    %22 = sbr.rel (0) target = $region25
  $region24: #{net_forward.4} parent=0 // pred_region
    _
  $region25: #{net_forward.4} parent=0 // pred_fallthru
    _
  %v24 = vld [vmem:[%s4] sm:$0xf]
  %v25 = vld [vmem:[%s4 + $0x4] sm:$0xf]
  %v26 = vld [vmem:[%s4 + $0x8] sm:$0xf]
  %v27 = vld [vmem:[%s4 + $0xc] sm:$0xf]
  %v28 = vld [vmem:[%s4 + $0x10] sm:$0xf]
  %v29 = vld [vmem:[%s4 + $0x14] sm:$0xf]
  %v30 = vld [vmem:[%s4 + $0x18] sm:$0xf]
  %v31 = vld [vmem:[%s4 + $0x1c] sm:$0xf]
  %v32 = vld [vmem:[%s4 + $0x20] sm:$0xf]
  %v33 = vld [vmem:[%s4 + $0x24] sm:$0xf]
  %v34 = vld [vmem:[%s4 + $0x28] sm:$0xf]
  %v35 = vld [vmem:[%s4 + $0x2c] sm:$0xf]
  %v36 = vld [vmem:[%s4 + $0x30] sm:$0xf]
  %v37 = vld [vmem:[%s4 + $0x34] sm:$0xf]
  %v38 = vld [vmem:[%s4 + $0x38] sm:$0xf]
  %v39 = vld [vmem:[%s4 + $0x3c] sm:$0xf]
  %v40 = vld [vmem:[%s4 + $0x40] sm:$0xf]
  %v41 = vld [vmem:[%s4 + $0x44] sm:$0xf]
  %v42 = vld [vmem:[%s4 + $0x48] sm:$0x7]
  %v43 = vld [vmem:[%s5] sm:$0x1]
  %v44 = vld [vmem:[%s0] sm:$0xff]
  %v45 = vld [vmem:[%s0 + $0x8] sm:$0xff]
  %v46 = vld [vmem:[%s0 + $0x10] sm:$0xff]
  %v47 = vld [vmem:[%s0 + $0x18] sm:$0xff]
  %v48 = vld [vmem:[%s0 + $0x20] sm:$0xff]
  %v49 = vld [vmem:[%s0 + $0x28] sm:$0xff]
  %v50 = vld [vmem:[%s0 + $0x30] sm:$0xff]
  %v51 = vld [vmem:[%s0 + $0x38] sm:$0xff]
  %v53 = vlaneseq
  %v54 = vshrl.u32 %v53, 7
  %v55 = vsub.s32 0, %v54
  %v56 = vrot.slane %v43, %v55
  %v66 = vunpack.c.l.b16 %v44
  %v67 = vunpack.c.h.b16 %v44
  %v68 = vunpack.c.l.b16 %v45
  %v69 = vunpack.c.h.b16 %v45
  %v70 = vunpack.c.l.b16 %v46
  %v71 = vunpack.c.h.b16 %v46
  %v72 = vunpack.c.l.b16 %v47
  %v73 = vunpack.c.h.b16 %v47
  %v74 = vunpack.c.l.b16 %v48
  %v75 = vunpack.c.h.b16 %v48
  %v76 = vunpack.c.l.b16 %v49
  %v77 = vunpack.c.h.b16 %v49
  %v78 = vunpack.c.l.b16 %v50
  %v79 = vunpack.c.h.b16 %v50
  %v80 = vunpack.c.l.b16 %v51
  %v81 = vunpack.c.h.b16 %v51
  %v82 = vpack.c.b16 %v68, %v66
  %v83 = vpack.c.b16 %v69, %v67
  %v84 = vpack.c.b16 %v72, %v70
  %v85 = vpack.c.b16 %v73, %v71
  %v86 = vpack.c.b16 %v76, %v74
  %v87 = vpack.c.b16 %v77, %v75
  %v88 = vpack.c.b16 %v80, %v78
  %v89 = vpack.c.b16 %v81, %v79
  %v113 = vunpack.c.l.b16 %v24
  %v114 = vunpack.c.l.b16 %v25
  %v115 = vunpack.c.l.b16 %v26
  %v116 = vunpack.c.l.b16 %v27
  %v117 = vunpack.c.l.b16 %v28
  %v118 = vunpack.c.l.b16 %v29
  %v119 = vunpack.c.l.b16 %v30
  %v120 = vunpack.c.l.b16 %v31
  %v121 = vunpack.c.l.b16 %v32
  %v122 = vunpack.c.l.b16 %v33
  %v123 = vunpack.c.l.b16 %v34
  %v124 = vunpack.c.l.b16 %v35
  %v125 = vunpack.c.l.b16 %v36
  %v126 = vunpack.c.l.b16 %v37
  %v127 = vunpack.c.l.b16 %v38
  %v128 = vunpack.c.l.b16 %v39
  %v129 = vunpack.c.l.b16 %v40
  %v130 = vunpack.c.l.b16 %v41
  %v131 = vunpack.c.l.b16 %v42
  %v132 = vpack.c.b16 %v114, %v113
  %v133 = vpack.c.b16 %v116, %v115
  %v134 = vpack.c.b16 %v118, %v117
  %v135 = vpack.c.b16 %v120, %v119
  %v136 = vpack.c.b16 %v122, %v121
  %v137 = vpack.c.b16 %v124, %v123
  %v138 = vpack.c.b16 %v126, %v125
  %v139 = vpack.c.b16 %v128, %v127
  %v140 = vpack.c.b16 %v130, %v129
  %v141 = vpack.c.b16 %v131, %v131
  %vm151 = vcmask 179200
  %v153 = vsel %vm151, %v83, 0
  %v156 = vsel %vm151, %v85, 0
  %v159 = vsel %vm151, %v87, 0
  %v162 = vsel %vm151, %v89, 0
  %vm164 = vcmask 1042432
  %v166 = vsel %vm164, %v141, 0
  %168 = vmatprep.subr.bf16.mxu0 0
  %169 = vmatpush1.bf16.msra.mxu0 %v132
  %170 = vmatprep.subr.bf16.mxu0 0
  %171 = vmatpush1.bf16.msra.mxu0 %v133
  %172 = vmatprep.subr.bf16.mxu0 0
  %173 = vmatpush1.bf16.msra.mxu0 %v134
  %174 = vmatprep.subr.bf16.mxu0 0
  %175 = vmatpush1.bf16.msra.mxu0 %v135
  %176 = vmatprep.subr.bf16.mxu0 0
  %177 = vmatpush1.bf16.msra.mxu0 %v136
  %178 = vmatprep.subr.bf16.mxu0 0
  %179 = vmatpush1.bf16.msra.mxu0 %v137
  %180 = vmatprep.subr.bf16.mxu0 0
  %181 = vmatpush1.bf16.msra.mxu0 %v138
  %182 = vmatprep.subr.bf16.mxu0 0
  %183 = vmatpush1.bf16.msra.mxu0 %v139
  %184 = vmatprep.subr.bf16.mxu0 0
  %185 = vmatpush1.bf16.msra.mxu0 %v140
  %186 = vmatprep.subr.bf16.mxu0 0
  %187 = vmatpush1.bf16.msra.mxu0 %v166
  %188 = vmatprep.subr.bf16.mxu0 0
  %189 = vmatpush1.bf16.msra.mxu0 0
  %190 = vmatprep.subr.bf16.mxu0 0
  %191 = vmatpush1.bf16.msra.mxu0 0
  %192 = vmatprep.subr.bf16.mxu0 0
  %193 = vmatpush1.bf16.msra.mxu0 0
  %194 = vmatprep.subr.bf16.mxu0 0
  %195 = vmatpush1.bf16.msra.mxu0 0
  %196 = vmatprep.subr.bf16.mxu0 0
  %197 = vmatpush1.bf16.msra.mxu0 0
  %198 = vmatprep.subr.bf16.mxu0 0
  %199 = vmatpush1.bf16.msra.mxu0 0
  %200 = vmatprep.mubr.bf16.mxu0 %v153
  %201 = vmatmul.mubr.bf16.gmra.mrb[0].mxu0 %v82
  %v202 = vpop.f32.mrb[0].mxu0
  %v203 = vadd.f32 %v56, %v202
  %v204 = vpop.f32.mrb[0].mxu0
  %v205 = vpop.f32.mrb[0].mxu0
  %v206 = vadd.f32 %v56, %v205
  %v207 = vpop.f32.mrb[0].mxu0
  %208 = vmatprep.mubr.bf16.mxu0 %v156
  %209 = vmatmul.mubr.bf16.gmra.mrb[0].mxu0 %v84
  %v210 = vpop.f32.mrb[0].mxu0
  %v211 = vadd.f32 %v56, %v210
  %v212 = vpop.f32.mrb[0].mxu0
  %v213 = vpop.f32.mrb[0].mxu0
  %v214 = vadd.f32 %v56, %v213
  %v215 = vpop.f32.mrb[0].mxu0
  %216 = vmatprep.mubr.bf16.mxu0 %v159
  %217 = vmatmul.mubr.bf16.gmra.mrb[0].mxu0 %v86
  %v218 = vpop.f32.mrb[0].mxu0
  %v219 = vadd.f32 %v56, %v218
  %v220 = vpop.f32.mrb[0].mxu0
  %v221 = vpop.f32.mrb[0].mxu0
  %v222 = vadd.f32 %v56, %v221
  %v223 = vpop.f32.mrb[0].mxu0
  %224 = vmatprep.mubr.bf16.mxu0 %v162
  %225 = vmatmul.mubr.bf16.gmra.mrb[0].mxu0 %v88
  %v226 = vpop.f32.mrb[0].mxu0
  %v227 = vadd.f32 %v56, %v226
  %v228 = vpop.f32.mrb[0].mxu0
  %v229 = vpop.f32.mrb[0].mxu0
  %v230 = vadd.f32 %v56, %v229
  %v231 = vpop.f32.mrb[0].mxu0
  %232 = vdwg.mxu0
  %v233 = vmax.f32 %v203, 0.0
  %v234 = vmax.f32 %v206, 0.0
  %v235 = vmax.f32 %v211, 0.0
  %v236 = vmax.f32 %v214, 0.0
  %v237 = vmax.f32 %v219, 0.0
  %v238 = vmax.f32 %v222, 0.0
  %v239 = vmax.f32 %v227, 0.0
  %v240 = vmax.f32 %v230, 0.0
  %v241 = vld [vmem:[%s1] sm:$0xff]
  %v242 = vld [vmem:[%s1 + $0x8] sm:$0xff]
  %v243 = vld [vmem:[%s1 + $0x10] sm:$0xff]
  %v244 = vld [vmem:[%s1 + $0x18] sm:$0xff]
  %v245 = vld [vmem:[%s1 + $0x20] sm:$0xff]
  %v246 = vld [vmem:[%s1 + $0x28] sm:$0xff]
  %v247 = vld [vmem:[%s1 + $0x30] sm:$0xff]
  %v248 = vld [vmem:[%s1 + $0x38] sm:$0xff]
  %v257 = vunpack.c.l.b16 %v241
  %v258 = vunpack.c.h.b16 %v241
  %v259 = vunpack.c.l.b16 %v242
  %v260 = vunpack.c.h.b16 %v242
  %v261 = vunpack.c.l.b16 %v243
  %v262 = vunpack.c.h.b16 %v243
  %v263 = vunpack.c.l.b16 %v244
  %v264 = vunpack.c.h.b16 %v244
  %v265 = vunpack.c.l.b16 %v245
  %v266 = vunpack.c.h.b16 %v245
  %v267 = vunpack.c.l.b16 %v246
  %v268 = vunpack.c.h.b16 %v246
  %v269 = vunpack.c.l.b16 %v247
  %v270 = vunpack.c.h.b16 %v247
  %v271 = vunpack.c.l.b16 %v248
  %v272 = vunpack.c.h.b16 %v248
  %v273 = vpack.c.b16 %v259, %v257
  %v274 = vpack.c.b16 %v260, %v258
  %v275 = vpack.c.b16 %v263, %v261
  %v276 = vpack.c.b16 %v264, %v262
  %v277 = vpack.c.b16 %v267, %v265
  %v278 = vpack.c.b16 %v268, %v266
  %v279 = vpack.c.b16 %v271, %v269
  %v280 = vpack.c.b16 %v272, %v270
  %v286 = vsel %vm151, %v274, 0
  %v289 = vsel %vm151, %v276, 0
  %v292 = vsel %vm151, %v278, 0
  %v295 = vsel %vm151, %v280, 0
  %297 = vmatprep.subr.bf16.mxu0 0
  %298 = vmatpush1.bf16.msra.mxu0 %v132
  %299 = vmatprep.subr.bf16.mxu0 0
  %300 = vmatpush1.bf16.msra.mxu0 %v133
  %301 = vmatprep.subr.bf16.mxu0 0
  %302 = vmatpush1.bf16.msra.mxu0 %v134
  %303 = vmatprep.subr.bf16.mxu0 0
  %304 = vmatpush1.bf16.msra.mxu0 %v135
  %305 = vmatprep.subr.bf16.mxu0 0
  %306 = vmatpush1.bf16.msra.mxu0 %v136
  %307 = vmatprep.subr.bf16.mxu0 0
  %308 = vmatpush1.bf16.msra.mxu0 %v137
  %309 = vmatprep.subr.bf16.mxu0 0
  %310 = vmatpush1.bf16.msra.mxu0 %v138
  %311 = vmatprep.subr.bf16.mxu0 0
  %312 = vmatpush1.bf16.msra.mxu0 %v139
  %313 = vmatprep.subr.bf16.mxu0 0
  %314 = vmatpush1.bf16.msra.mxu0 %v140
  %315 = vmatprep.subr.bf16.mxu0 0
  %316 = vmatpush1.bf16.msra.mxu0 %v166
  %317 = vmatprep.subr.bf16.mxu0 0
  %318 = vmatpush1.bf16.msra.mxu0 0
  %319 = vmatprep.subr.bf16.mxu0 0
  %320 = vmatpush1.bf16.msra.mxu0 0
  %321 = vmatprep.subr.bf16.mxu0 0
  %322 = vmatpush1.bf16.msra.mxu0 0
  %323 = vmatprep.subr.bf16.mxu0 0
  %324 = vmatpush1.bf16.msra.mxu0 0
  %325 = vmatprep.subr.bf16.mxu0 0
  %326 = vmatpush1.bf16.msra.mxu0 0
  %327 = vmatprep.subr.bf16.mxu0 0
  %328 = vmatpush1.bf16.msra.mxu0 0
  %329 = vmatprep.mubr.bf16.mxu0 %v286
  %330 = vmatmul.mubr.bf16.gmra.mrb[0].mxu0 %v273
  %v331 = vpop.f32.mrb[0].mxu0
  %v332 = vadd.f32 %v56, %v331
  %v333 = vpop.f32.mrb[0].mxu0
  %v334 = vpop.f32.mrb[0].mxu0
  %v335 = vadd.f32 %v56, %v334
  %v336 = vpop.f32.mrb[0].mxu0
  %337 = vmatprep.mubr.bf16.mxu0 %v289
  %338 = vmatmul.mubr.bf16.gmra.mrb[0].mxu0 %v275
  %v339 = vpop.f32.mrb[0].mxu0
  %v340 = vadd.f32 %v56, %v339
  %v341 = vpop.f32.mrb[0].mxu0
  %v342 = vpop.f32.mrb[0].mxu0
  %v343 = vadd.f32 %v56, %v342
  %v344 = vpop.f32.mrb[0].mxu0
  %345 = vmatprep.mubr.bf16.mxu0 %v292
  %346 = vmatmul.mubr.bf16.gmra.mrb[0].mxu0 %v277
  %v347 = vpop.f32.mrb[0].mxu0
  %v348 = vadd.f32 %v56, %v347
  %v349 = vpop.f32.mrb[0].mxu0
  %v350 = vpop.f32.mrb[0].mxu0
  %v351 = vadd.f32 %v56, %v350
  %v352 = vpop.f32.mrb[0].mxu0
  %353 = vmatprep.mubr.bf16.mxu0 %v295
  %354 = vmatmul.mubr.bf16.gmra.mrb[0].mxu0 %v279
  %v355 = vpop.f32.mrb[0].mxu0
  %v356 = vadd.f32 %v56, %v355
  %v357 = vpop.f32.mrb[0].mxu0
  %v358 = vpop.f32.mrb[0].mxu0
  %v359 = vadd.f32 %v56, %v358
  %v360 = vpop.f32.mrb[0].mxu0
  %361 = vdwg.mxu0
  %v362 = vmax.f32 %v332, 0.0
  %v363 = vmax.f32 %v335, 0.0
  %v364 = vmax.f32 %v340, 0.0
  %v365 = vmax.f32 %v343, 0.0
  %v366 = vmax.f32 %v348, 0.0
  %v367 = vmax.f32 %v351, 0.0
  %v368 = vmax.f32 %v356, 0.0
  %v369 = vmax.f32 %v359, 0.0
  %v370 = vmax.f32 %v233, %v362
  %v371 = vmax.f32 %v234, %v363
  %v372 = vmax.f32 %v235, %v364
  %v373 = vmax.f32 %v236, %v365
  %v374 = vmax.f32 %v237, %v366
  %v375 = vmax.f32 %v238, %v367
  %v376 = vmax.f32 %v239, %v368
  %v377 = vmax.f32 %v240, %v369
  %v378 = vld [vmem:[%s2] sm:$0xff]
  %v379 = vld [vmem:[%s2 + $0x8] sm:$0xff]
  %v380 = vld [vmem:[%s2 + $0x10] sm:$0xff]
  %v381 = vld [vmem:[%s2 + $0x18] sm:$0xff]
  %v382 = vld [vmem:[%s2 + $0x20] sm:$0xff]
  %v383 = vld [vmem:[%s2 + $0x28] sm:$0xff]
  %v384 = vld [vmem:[%s2 + $0x30] sm:$0xff]
  %v385 = vld [vmem:[%s2 + $0x38] sm:$0xff]
  %v394 = vunpack.c.l.b16 %v378
  %v395 = vunpack.c.h.b16 %v378
  %v396 = vunpack.c.l.b16 %v379
  %v397 = vunpack.c.h.b16 %v379
  %v398 = vunpack.c.l.b16 %v380
  %v399 = vunpack.c.h.b16 %v380
  %v400 = vunpack.c.l.b16 %v381
  %v401 = vunpack.c.h.b16 %v381
  %v402 = vunpack.c.l.b16 %v382
  %v403 = vunpack.c.h.b16 %v382
  %v404 = vunpack.c.l.b16 %v383
  %v405 = vunpack.c.h.b16 %v383
  %v406 = vunpack.c.l.b16 %v384
  %v407 = vunpack.c.h.b16 %v384
  %v408 = vunpack.c.l.b16 %v385
  %v409 = vunpack.c.h.b16 %v385
  %v410 = vpack.c.b16 %v396, %v394
  %v411 = vpack.c.b16 %v397, %v395
  %v412 = vpack.c.b16 %v400, %v398
  %v413 = vpack.c.b16 %v401, %v399
  %v414 = vpack.c.b16 %v404, %v402
  %v415 = vpack.c.b16 %v405, %v403
  %v416 = vpack.c.b16 %v408, %v406
  %v417 = vpack.c.b16 %v409, %v407
  %v423 = vsel %vm151, %v411, 0
  %v426 = vsel %vm151, %v413, 0
  %v429 = vsel %vm151, %v415, 0
  %v432 = vsel %vm151, %v417, 0
  %434 = vmatprep.subr.bf16.mxu0 0
  %435 = vmatpush1.bf16.msra.mxu0 %v132
  %436 = vmatprep.subr.bf16.mxu0 0
  %437 = vmatpush1.bf16.msra.mxu0 %v133
  %438 = vmatprep.subr.bf16.mxu0 0
  %439 = vmatpush1.bf16.msra.mxu0 %v134
  %440 = vmatprep.subr.bf16.mxu0 0
  %441 = vmatpush1.bf16.msra.mxu0 %v135
  %442 = vmatprep.subr.bf16.mxu0 0
  %443 = vmatpush1.bf16.msra.mxu0 %v136
  %444 = vmatprep.subr.bf16.mxu0 0
  %445 = vmatpush1.bf16.msra.mxu0 %v137
  %446 = vmatprep.subr.bf16.mxu0 0
  %447 = vmatpush1.bf16.msra.mxu0 %v138
  %448 = vmatprep.subr.bf16.mxu0 0
  %449 = vmatpush1.bf16.msra.mxu0 %v139
  %450 = vmatprep.subr.bf16.mxu0 0
  %451 = vmatpush1.bf16.msra.mxu0 %v140
  %452 = vmatprep.subr.bf16.mxu0 0
  %453 = vmatpush1.bf16.msra.mxu0 %v166
  %454 = vmatprep.subr.bf16.mxu0 0
  %455 = vmatpush1.bf16.msra.mxu0 0
  %456 = vmatprep.subr.bf16.mxu0 0
  %457 = vmatpush1.bf16.msra.mxu0 0
  %458 = vmatprep.subr.bf16.mxu0 0
  %459 = vmatpush1.bf16.msra.mxu0 0
  %460 = vmatprep.subr.bf16.mxu0 0
  %461 = vmatpush1.bf16.msra.mxu0 0
  %462 = vmatprep.subr.bf16.mxu0 0
  %463 = vmatpush1.bf16.msra.mxu0 0
  %464 = vmatprep.subr.bf16.mxu0 0
  %465 = vmatpush1.bf16.msra.mxu0 0
  %466 = vmatprep.mubr.bf16.mxu0 %v423
  %467 = vmatmul.mubr.bf16.gmra.mrb[0].mxu0 %v410
  %v468 = vpop.f32.mrb[0].mxu0
  %v469 = vadd.f32 %v56, %v468
  %v470 = vpop.f32.mrb[0].mxu0
  %v471 = vpop.f32.mrb[0].mxu0
  %v472 = vadd.f32 %v56, %v471
  %v473 = vpop.f32.mrb[0].mxu0
  %474 = vmatprep.mubr.bf16.mxu0 %v426
  %475 = vmatmul.mubr.bf16.gmra.mrb[0].mxu0 %v412
  %v476 = vpop.f32.mrb[0].mxu0
  %v477 = vadd.f32 %v56, %v476
  %v478 = vpop.f32.mrb[0].mxu0
  %v479 = vpop.f32.mrb[0].mxu0
  %v480 = vadd.f32 %v56, %v479
  %v481 = vpop.f32.mrb[0].mxu0
  %482 = vmatprep.mubr.bf16.mxu0 %v429
  %483 = vmatmul.mubr.bf16.gmra.mrb[0].mxu0 %v414
  %v484 = vpop.f32.mrb[0].mxu0
  %v485 = vadd.f32 %v56, %v484
  %v486 = vpop.f32.mrb[0].mxu0
  %v487 = vpop.f32.mrb[0].mxu0
  %v488 = vadd.f32 %v56, %v487
  %v489 = vpop.f32.mrb[0].mxu0
  %490 = vmatprep.mubr.bf16.mxu0 %v432
  %491 = vmatmul.mubr.bf16.gmra.mrb[0].mxu0 %v416
  %v492 = vpop.f32.mrb[0].mxu0
  %v493 = vadd.f32 %v56, %v492
  %v494 = vpop.f32.mrb[0].mxu0
  %v495 = vpop.f32.mrb[0].mxu0
  %v496 = vadd.f32 %v56, %v495
  %v497 = vpop.f32.mrb[0].mxu0
  %498 = vdwg.mxu0
  %v499 = vmax.f32 %v469, 0.0
  %v500 = vmax.f32 %v472, 0.0
  %v501 = vmax.f32 %v477, 0.0
  %v502 = vmax.f32 %v480, 0.0
  %v503 = vmax.f32 %v485, 0.0
  %v504 = vmax.f32 %v488, 0.0
  %v505 = vmax.f32 %v493, 0.0
  %v506 = vmax.f32 %v496, 0.0
  %v507 = vld [vmem:[%s3] sm:$0xff]
  %v508 = vld [vmem:[%s3 + $0x8] sm:$0xff]
  %v509 = vld [vmem:[%s3 + $0x10] sm:$0xff]
  %v510 = vld [vmem:[%s3 + $0x18] sm:$0xff]
  %v511 = vld [vmem:[%s3 + $0x20] sm:$0xff]
  %v512 = vld [vmem:[%s3 + $0x28] sm:$0xff]
  %v513 = vld [vmem:[%s3 + $0x30] sm:$0xff]
  %v514 = vld [vmem:[%s3 + $0x38] sm:$0xff]
  %v523 = vunpack.c.l.b16 %v507
  %v524 = vunpack.c.h.b16 %v507
  %v525 = vunpack.c.l.b16 %v508
  %v526 = vunpack.c.h.b16 %v508
  %v527 = vunpack.c.l.b16 %v509
  %v528 = vunpack.c.h.b16 %v509
  %v529 = vunpack.c.l.b16 %v510
  %v530 = vunpack.c.h.b16 %v510
  %v531 = vunpack.c.l.b16 %v511
  %v532 = vunpack.c.h.b16 %v511
  %v533 = vunpack.c.l.b16 %v512
  %v534 = vunpack.c.h.b16 %v512
  %v535 = vunpack.c.l.b16 %v513
  %v536 = vunpack.c.h.b16 %v513
  %v537 = vunpack.c.l.b16 %v514
  %v538 = vunpack.c.h.b16 %v514
  %v539 = vpack.c.b16 %v525, %v523
  %v540 = vpack.c.b16 %v526, %v524
  %v541 = vpack.c.b16 %v529, %v527
  %v542 = vpack.c.b16 %v530, %v528
  %v543 = vpack.c.b16 %v533, %v531
  %v544 = vpack.c.b16 %v534, %v532
  %v545 = vpack.c.b16 %v537, %v535
  %v546 = vpack.c.b16 %v538, %v536
  %v552 = vsel %vm151, %v540, 0
  %v555 = vsel %vm151, %v542, 0
  %v558 = vsel %vm151, %v544, 0
  %v561 = vsel %vm151, %v546, 0
  %563 = vmatprep.subr.bf16.mxu0 0
  %564 = vmatpush1.bf16.msra.mxu0 %v132
  %565 = vmatprep.subr.bf16.mxu0 0
  %566 = vmatpush1.bf16.msra.mxu0 %v133
  %567 = vmatprep.subr.bf16.mxu0 0
  %568 = vmatpush1.bf16.msra.mxu0 %v134
  %569 = vmatprep.subr.bf16.mxu0 0
  %570 = vmatpush1.bf16.msra.mxu0 %v135
  %571 = vmatprep.subr.bf16.mxu0 0
  %572 = vmatpush1.bf16.msra.mxu0 %v136
  %573 = vmatprep.subr.bf16.mxu0 0
  %574 = vmatpush1.bf16.msra.mxu0 %v137
  %575 = vmatprep.subr.bf16.mxu0 0
  %576 = vmatpush1.bf16.msra.mxu0 %v138
  %577 = vmatprep.subr.bf16.mxu0 0
  %578 = vmatpush1.bf16.msra.mxu0 %v139
  %579 = vmatprep.subr.bf16.mxu0 0
  %580 = vmatpush1.bf16.msra.mxu0 %v140
  %581 = vmatprep.subr.bf16.mxu0 0
  %582 = vmatpush1.bf16.msra.mxu0 %v166
  %583 = vmatprep.subr.bf16.mxu0 0
  %584 = vmatpush1.bf16.msra.mxu0 0
  %585 = vmatprep.subr.bf16.mxu0 0
  %586 = vmatpush1.bf16.msra.mxu0 0
  %587 = vmatprep.subr.bf16.mxu0 0
  %588 = vmatpush1.bf16.msra.mxu0 0
  %589 = vmatprep.subr.bf16.mxu0 0
  %590 = vmatpush1.bf16.msra.mxu0 0
  %591 = vmatprep.subr.bf16.mxu0 0
  %592 = vmatpush1.bf16.msra.mxu0 0
  %593 = vmatprep.subr.bf16.mxu0 0
  %594 = vmatpush1.bf16.msra.mxu0 0
  %595 = vmatprep.mubr.bf16.mxu0 %v552
  %596 = vmatmul.mubr.bf16.gmra.mrb[0].mxu0 %v539
  %v597 = vpop.f32.mrb[0].mxu0
  %v598 = vadd.f32 %v56, %v597
  %v599 = vpop.f32.mrb[0].mxu0
  %v600 = vpop.f32.mrb[0].mxu0
  %v601 = vadd.f32 %v56, %v600
  %v602 = vpop.f32.mrb[0].mxu0
  %603 = vmatprep.mubr.bf16.mxu0 %v555
  %604 = vmatmul.mubr.bf16.gmra.mrb[0].mxu0 %v541
  %v605 = vpop.f32.mrb[0].mxu0
  %v606 = vadd.f32 %v56, %v605
  %v607 = vpop.f32.mrb[0].mxu0
  %v608 = vpop.f32.mrb[0].mxu0
  %v609 = vadd.f32 %v56, %v608
  %v610 = vpop.f32.mrb[0].mxu0
  %611 = vmatprep.mubr.bf16.mxu0 %v558
  %612 = vmatmul.mubr.bf16.gmra.mrb[0].mxu0 %v543
  %v613 = vpop.f32.mrb[0].mxu0
  %v614 = vadd.f32 %v56, %v613
  %v615 = vpop.f32.mrb[0].mxu0
  %v616 = vpop.f32.mrb[0].mxu0
  %v617 = vadd.f32 %v56, %v616
  %v618 = vpop.f32.mrb[0].mxu0
  %619 = vmatprep.mubr.bf16.mxu0 %v561
  %620 = vmatmul.mubr.bf16.gmra.mrb[0].mxu0 %v545
  %v621 = vpop.f32.mrb[0].mxu0
  %v622 = vadd.f32 %v56, %v621
  %v623 = vpop.f32.mrb[0].mxu0
  %v624 = vpop.f32.mrb[0].mxu0
  %v625 = vadd.f32 %v56, %v624
  %v626 = vpop.f32.mrb[0].mxu0
  %627 = vdwg.mxu0
  %v628 = vmax.f32 %v598, 0.0
  %v629 = vmax.f32 %v601, 0.0
  %v630 = vmax.f32 %v606, 0.0
  %v631 = vmax.f32 %v609, 0.0
  %v632 = vmax.f32 %v614, 0.0
  %v633 = vmax.f32 %v617, 0.0
  %v634 = vmax.f32 %v622, 0.0
  %v635 = vmax.f32 %v625, 0.0
  %v636 = vmax.f32 %v499, %v628
  %v637 = vmax.f32 %v500, %v629
  %v638 = vmax.f32 %v501, %v630
  %v639 = vmax.f32 %v502, %v631
  %v640 = vmax.f32 %v503, %v632
  %v641 = vmax.f32 %v504, %v633
  %v642 = vmax.f32 %v505, %v634
  %v643 = vmax.f32 %v506, %v635
  %v644 = vmax.f32 %v370, %v636
  %v645 = vmax.f32 %v371, %v637
  %v646 = vmax.f32 %v372, %v638
  %v647 = vmax.f32 %v373, %v639
  %v648 = vmax.f32 %v374, %v640
  %v649 = vmax.f32 %v375, %v641
  %v650 = vmax.f32 %v376, %v642
  %v651 = vmax.f32 %v377, %v643
  %v652 = vpack.c.bf16 %v645, %v644
  %v653 = vpack.c.bf16 %v647, %v646
  %v654 = vpack.c.bf16 %v649, %v648
  %v655 = vpack.c.bf16 %v651, %v650
  %v660 = vunpack.c.l.b16 %v652
  %v661 = vunpack.c.h.b16 %v652
  %v662 = vunpack.c.l.b16 %v653
  %v663 = vunpack.c.h.b16 %v653
  %v664 = vunpack.c.l.b16 %v654
  %v665 = vunpack.c.h.b16 %v654
  %v666 = vunpack.c.l.b16 %v655
  %v667 = vunpack.c.h.b16 %v655
  %v668 = vpack.c.b16 %v660, %v660
  %v669 = vpack.c.b16 %v661, %v661
  %v670 = vpack.c.b16 %v662, %v662
  %v671 = vpack.c.b16 %v663, %v663
  %v672 = vpack.c.b16 %v664, %v664
  %v673 = vpack.c.b16 %v665, %v665
  %v674 = vpack.c.b16 %v666, %v666
  %v675 = vpack.c.b16 %v667, %v667
  %684 = vst [vmem:[%s6] sm:$0xf] %v668
  %685 = vst [vmem:[%s6 + $0x4] sm:$0xf] %v669
  %686 = vst [vmem:[%s6 + $0x8] sm:$0xf] %v670
  %687 = vst [vmem:[%s6 + $0xc] sm:$0xf] %v671
  %688 = vst [vmem:[%s6 + $0x10] sm:$0xf] %v672
  %689 = vst [vmem:[%s6 + $0x14] sm:$0xf] %v673
  %690 = vst [vmem:[%s6 + $0x18] sm:$0xf] %v674
  %691 = vst [vmem:[%s6 + $0x1c] sm:$0xf] %v675
  // Predicated region
  $region26: #{net_forward.4} parent=0 // pred_check
    _
  $region27: #{net_forward.4} parent=0 // pred_check_branch
    %693 = sbr.rel (0) target = $region29
  $region28: #{net_forward.4} parent=0 // pred_region
    _
  $region29: #{net_forward.4} parent=0 // pred_fallthru
    _
  // Predicated region
  $region30: #{net_forward.4} parent=0 // pred_check
    _
  $region31: #{net_forward.4} parent=0 // pred_check_branch
    %695 = sbr.rel (0) target = $region33
  $region32: #{net_forward.4} parent=0 // pred_region
    _
  $region33: #{net_forward.4} parent=0 // pred_fallthru
    _

// kernel: net_forward.5
$region0: #{net_forward.5}
  #allocation0 [shape = 'u32[]', space=smem, size = 0x4, offset = 0x4, fixed_abs, tag = 'smem constant byte address 0x4 - core index']
  #allocation1 [shape = 'u32[144,128]{1,0:T(1,128)}', space=vmem, size = 0x12000, scoped, tag = 'internal scratch']
  %s0 = inlined_call_operand.vmem [shape: bf16[16,400], index: 0, kind: input, shape index: {}]
  %s1 = inlined_call_operand.vmem [shape: bf16[400,128], index: 1, kind: input, shape index: {}]
  %s2 = inlined_call_operand.vmem [shape: f32[1,128], index: 2, kind: input, shape index: {}]
  %s3 = inlined_call_operand.vmem [shape: bf16[128,128], index: 3, kind: input, shape index: {}]
  %s4 = inlined_call_operand.vmem [shape: f32[1,128], index: 4, kind: input, shape index: {}]
  %s5 = inlined_call_operand.vmem [shape: bf16[128,128], index: 5, kind: input, shape index: {}]
  %s6 = inlined_call_operand.vmem [shape: f32[1,128], index: 6, kind: input, shape index: {}]
  %s7 = inlined_call_operand.vmem [shape: f32[16,128], index: 7, kind: output, shape index: {}]
  %s8 = sld [smem:[#allocation0]]
  $region38: #{net_forward.5} parent=0
    _
  %s10 = ssub.s32 1, %s8
  %s11 = scalar_select 0, %s10, %s8
  // Predicated region
  $region2: #{net_forward.5} parent=0 // pred_check
    _
  $region3: #{net_forward.5} parent=0 // pred_check_branch
    %13 = sbr.rel (0) target = $region5
  $region4: #{net_forward.5} parent=0 // pred_region
    _
  $region5: #{net_forward.5} parent=0 // pred_fallthru
    _
  // Predicated region
  $region6: #{net_forward.5} parent=0 // pred_check
    _
  $region7: #{net_forward.5} parent=0 // pred_check_branch
    %15 = sbr.rel (0) target = $region9
  $region8: #{net_forward.5} parent=0 // pred_region
    _
  $region9: #{net_forward.5} parent=0 // pred_fallthru
    _
  // Predicated region
  $region10: #{net_forward.5} parent=0 // pred_check
    _
  $region11: #{net_forward.5} parent=0 // pred_check_branch
    %17 = sbr.rel (0) target = $region13
  $region12: #{net_forward.5} parent=0 // pred_region
    _
  $region13: #{net_forward.5} parent=0 // pred_fallthru
    _
  // Predicated region
  $region14: #{net_forward.5} parent=0 // pred_check
    _
  $region15: #{net_forward.5} parent=0 // pred_check_branch
    %19 = sbr.rel (0) target = $region17
  $region16: #{net_forward.5} parent=0 // pred_region
    _
  $region17: #{net_forward.5} parent=0 // pred_fallthru
    _
  // Predicated region
  $region18: #{net_forward.5} parent=0 // pred_check
    _
  $region19: #{net_forward.5} parent=0 // pred_check_branch
    %21 = sbr.rel (0) target = $region21
  $region20: #{net_forward.5} parent=0 // pred_region
    _
  $region21: #{net_forward.5} parent=0 // pred_fallthru
    _
  // Predicated region
  $region22: #{net_forward.5} parent=0 // pred_check
    _
  $region23: #{net_forward.5} parent=0 // pred_check_branch
    %23 = sbr.rel (0) target = $region25
  $region24: #{net_forward.5} parent=0 // pred_region
    _
  $region25: #{net_forward.5} parent=0 // pred_fallthru
    _
  // Predicated region
  $region26: #{net_forward.5} parent=0 // pred_check
    _
  $region27: #{net_forward.5} parent=0 // pred_check_branch
    %25 = sbr.rel (0) target = $region29
  $region28: #{net_forward.5} parent=0 // pred_region
    _
  $region29: #{net_forward.5} parent=0 // pred_fallthru
    _
  %v27 = vld [vmem:[%s0] sm:$0xff]
  %v28 = vld [vmem:[%s0 + $0x8] sm:$0xff]
  %v29 = vld [vmem:[%s0 + $0x10] sm:$0xff]
  %v30 = vld [vmem:[%s0 + $0x18] sm:$0xff]
  %v31 = vld [vmem:[%s1] sm:$0xf]
  %v32 = vld [vmem:[%s1 + $0x4] sm:$0xf]
  %v33 = vld [vmem:[%s1 + $0x8] sm:$0xf]
  %v34 = vld [vmem:[%s1 + $0xc] sm:$0xf]
  %v35 = vld [vmem:[%s1 + $0x10] sm:$0xf]
  %v36 = vld [vmem:[%s1 + $0x14] sm:$0xf]
  %v37 = vld [vmem:[%s1 + $0x18] sm:$0xf]
  %v38 = vld [vmem:[%s1 + $0x1c] sm:$0xf]
  %v39 = vld [vmem:[%s1 + $0x20] sm:$0xf]
  %v40 = vld [vmem:[%s1 + $0x24] sm:$0xf]
  %v41 = vld [vmem:[%s1 + $0x28] sm:$0xf]
  %v42 = vld [vmem:[%s1 + $0x2c] sm:$0xf]
  %v43 = vld [vmem:[%s1 + $0x30] sm:$0xf]
  %v44 = vld [vmem:[%s1 + $0x34] sm:$0xf]
  %v45 = vld [vmem:[%s1 + $0x38] sm:$0xf]
  %v46 = vld [vmem:[%s1 + $0x3c] sm:$0xf]
  %v47 = vld [vmem:[%s1 + $0x40] sm:$0xf]
  %v48 = vld [vmem:[%s1 + $0x44] sm:$0xf]
  %v49 = vld [vmem:[%s1 + $0x48] sm:$0xf]
  %v50 = vld [vmem:[%s1 + $0x4c] sm:$0xf]
  %v51 = vld [vmem:[%s1 + $0x50] sm:$0xf]
  %v52 = vld [vmem:[%s1 + $0x54] sm:$0xf]
  %v53 = vld [vmem:[%s1 + $0x58] sm:$0xf]
  %v54 = vld [vmem:[%s1 + $0x5c] sm:$0xf]
  %v55 = vld [vmem:[%s1 + $0x60] sm:$0xf]
  %v56 = vld [vmem:[%s1 + $0x64] sm:$0xf]
  %v57 = vld [vmem:[%s1 + $0x68] sm:$0xf]
  %v58 = vld [vmem:[%s1 + $0x6c] sm:$0xf]
  %v59 = vld [vmem:[%s1 + $0x70] sm:$0xf]
  %v60 = vld [vmem:[%s1 + $0x74] sm:$0xf]
  %v61 = vld [vmem:[%s1 + $0x78] sm:$0xf]
  %v62 = vld [vmem:[%s1 + $0x7c] sm:$0xf]
  %v63 = vld [vmem:[%s1 + $0x80] sm:$0xf]
  %v64 = vld [vmem:[%s1 + $0x84] sm:$0xf]
  %v65 = vld [vmem:[%s1 + $0x88] sm:$0xf]
  %v66 = vld [vmem:[%s1 + $0x8c] sm:$0xf]
  %v67 = vld [vmem:[%s1 + $0x90] sm:$0xf]
  %v68 = vld [vmem:[%s1 + $0x94] sm:$0xf]
  %v69 = vld [vmem:[%s1 + $0x98] sm:$0xf]
  %v70 = vld [vmem:[%s1 + $0x9c] sm:$0xf]
  %v71 = vld [vmem:[%s1 + $0xa0] sm:$0xf]
  %v72 = vld [vmem:[%s1 + $0xa4] sm:$0xf]
  %v73 = vld [vmem:[%s1 + $0xa8] sm:$0xf]
  %v74 = vld [vmem:[%s1 + $0xac] sm:$0xf]
  %v75 = vld [vmem:[%s1 + $0xb0] sm:$0xf]
  %v76 = vld [vmem:[%s1 + $0xb4] sm:$0xf]
  %v77 = vld [vmem:[%s1 + $0xb8] sm:$0xf]
  %v78 = vld [vmem:[%s1 + $0xbc] sm:$0xf]
  %v79 = vld [vmem:[%s1 + $0xc0] sm:$0xf]
  %v80 = vld [vmem:[%s1 + $0xc4] sm:$0xf]
  %v81 = vld [vmem:[%s2] sm:$0x1]
  %v83 = vlaneseq
  %v84 = vshrl.u32 %v83, 7
  %v85 = vsub.s32 0, %v84
  %v86 = vrot.slane %v81, %v85
  %v92 = vunpack.c.l.b16 %v27
  %v93 = vunpack.c.h.b16 %v27
  %v94 = vunpack.c.l.b16 %v28
  %v95 = vunpack.c.h.b16 %v28
  %v96 = vunpack.c.l.b16 %v29
  %v97 = vunpack.c.h.b16 %v29
  %v98 = vunpack.c.l.b16 %v30
  %v99 = vunpack.c.h.b16 %v30
  %v100 = vpack.c.b16 %v96, %v92
  %v101 = vpack.c.b16 %v97, %v93
  %v102 = vpack.c.b16 %v98, %v94
  %v103 = vpack.c.b16 %v99, %v95
  %v157 = vunpack.c.l.b16 %v31
  %v158 = vunpack.c.l.b16 %v32
  %v159 = vunpack.c.l.b16 %v33
  %v160 = vunpack.c.l.b16 %v34
  %v161 = vunpack.c.l.b16 %v35
  %v162 = vunpack.c.l.b16 %v36
  %v163 = vunpack.c.l.b16 %v37
  %v164 = vunpack.c.l.b16 %v38
  %v165 = vunpack.c.l.b16 %v39
  %v166 = vunpack.c.l.b16 %v40
  %v167 = vunpack.c.l.b16 %v41
  %v168 = vunpack.c.l.b16 %v42
  %v169 = vunpack.c.l.b16 %v43
  %v170 = vunpack.c.l.b16 %v44
  %v171 = vunpack.c.l.b16 %v45
  %v172 = vunpack.c.l.b16 %v46
  %v173 = vunpack.c.l.b16 %v47
  %v174 = vunpack.c.l.b16 %v48
  %v175 = vunpack.c.l.b16 %v49
  %v176 = vunpack.c.l.b16 %v50
  %v177 = vunpack.c.l.b16 %v51
  %v178 = vunpack.c.l.b16 %v52
  %v179 = vunpack.c.l.b16 %v53
  %v180 = vunpack.c.l.b16 %v54
  %v181 = vunpack.c.l.b16 %v55
  %v182 = vunpack.c.l.b16 %v56
  %v183 = vunpack.c.l.b16 %v57
  %v184 = vunpack.c.l.b16 %v58
  %v185 = vunpack.c.l.b16 %v59
  %v186 = vunpack.c.l.b16 %v60
  %v187 = vunpack.c.l.b16 %v61
  %v188 = vunpack.c.l.b16 %v62
  %v189 = vunpack.c.l.b16 %v63
  %v190 = vunpack.c.l.b16 %v64
  %v191 = vunpack.c.l.b16 %v65
  %v192 = vunpack.c.l.b16 %v66
  %v193 = vunpack.c.l.b16 %v67
  %v194 = vunpack.c.l.b16 %v68
  %v195 = vunpack.c.l.b16 %v69
  %v196 = vunpack.c.l.b16 %v70
  %v197 = vunpack.c.l.b16 %v71
  %v198 = vunpack.c.l.b16 %v72
  %v199 = vunpack.c.l.b16 %v73
  %v200 = vunpack.c.l.b16 %v74
  %v201 = vunpack.c.l.b16 %v75
  %v202 = vunpack.c.l.b16 %v76
  %v203 = vunpack.c.l.b16 %v77
  %v204 = vunpack.c.l.b16 %v78
  %v205 = vunpack.c.l.b16 %v79
  %v206 = vunpack.c.l.b16 %v80
  %v207 = vpack.c.b16 %v158, %v157
  %v208 = vpack.c.b16 %v160, %v159
  %v209 = vpack.c.b16 %v162, %v161
  %v210 = vpack.c.b16 %v164, %v163
  %v211 = vpack.c.b16 %v166, %v165
  %v212 = vpack.c.b16 %v168, %v167
  %v213 = vpack.c.b16 %v170, %v169
  %v214 = vpack.c.b16 %v172, %v171
  %v215 = vpack.c.b16 %v174, %v173
  %v216 = vpack.c.b16 %v176, %v175
  %v217 = vpack.c.b16 %v178, %v177
  %v218 = vpack.c.b16 %v180, %v179
  %v219 = vpack.c.b16 %v182, %v181
  %v220 = vpack.c.b16 %v184, %v183
  %v221 = vpack.c.b16 %v186, %v185
  %v222 = vpack.c.b16 %v188, %v187
  %v223 = vpack.c.b16 %v190, %v189
  %v224 = vpack.c.b16 %v192, %v191
  %v225 = vpack.c.b16 %v194, %v193
  %v226 = vpack.c.b16 %v196, %v195
  %v227 = vpack.c.b16 %v198, %v197
  %v228 = vpack.c.b16 %v200, %v199
  %v229 = vpack.c.b16 %v202, %v201
  %v230 = vpack.c.b16 %v204, %v203
  %v231 = vpack.c.b16 %v206, %v205
  %vm257 = vcmask 130048
  %v259 = vsel %vm257, %v103, 0
  %261 = vmatprep.subr.bf16.mxu0 0
  %262 = vmatpush1.bf16.msra.mxu0 %v207
  %263 = vmatprep.subr.bf16.mxu0 0
  %264 = vmatpush1.bf16.msra.mxu0 %v208
  %265 = vmatprep.subr.bf16.mxu0 0
  %266 = vmatpush1.bf16.msra.mxu0 %v209
  %267 = vmatprep.subr.bf16.mxu0 0
  %268 = vmatpush1.bf16.msra.mxu0 %v210
  %269 = vmatprep.subr.bf16.mxu0 0
  %270 = vmatpush1.bf16.msra.mxu0 %v211
  %271 = vmatprep.subr.bf16.mxu0 0
  %272 = vmatpush1.bf16.msra.mxu0 %v212
  %273 = vmatprep.subr.bf16.mxu0 0
  %274 = vmatpush1.bf16.msra.mxu0 %v213
  %275 = vmatprep.subr.bf16.mxu0 0
  %276 = vmatpush1.bf16.msra.mxu0 %v214
  %277 = vmatprep.subr.bf16.mxu0 0
  %278 = vmatpush1.bf16.msra.mxu0 %v215
  %279 = vmatprep.subr.bf16.mxu0 0
  %280 = vmatpush1.bf16.msra.mxu0 %v216
  %281 = vmatprep.subr.bf16.mxu0 0
  %282 = vmatpush1.bf16.msra.mxu0 %v217
  %283 = vmatprep.subr.bf16.mxu0 0
  %284 = vmatpush1.bf16.msra.mxu0 %v218
  %285 = vmatprep.subr.bf16.mxu0 0
  %286 = vmatpush1.bf16.msra.mxu0 %v219
  %287 = vmatprep.subr.bf16.mxu0 0
  %288 = vmatpush1.bf16.msra.mxu0 %v220
  %289 = vmatprep.subr.bf16.mxu0 0
  %290 = vmatpush1.bf16.msra.mxu0 %v221
  %291 = vmatprep.subr.bf16.mxu0 0
  %292 = vmatpush1.bf16.msra.mxu0 %v222
  %293 = vmatprep.mubr.bf16.mxu0 %v101
  %294 = vmatmul.mubr.bf16.gmra.mrb[0].mxu0 %v100
  %v295 = vpop.f32.mrb[0].mxu0
  %v296 = vadd.f32 %v86, %v295
  %v297 = vpop.f32.mrb[0].mxu0
  %v298 = vpop.f32.mrb[0].mxu0
  %v299 = vadd.f32 %v86, %v298
  %v300 = vpop.f32.mrb[0].mxu0
  %301 = vdwg.mxu0
  %302 = vmatprep.subr.bf16.mxu0 0
  %303 = vmatpush1.bf16.msra.mxu0 %v223
  %304 = vmatprep.subr.bf16.mxu0 0
  %305 = vmatpush1.bf16.msra.mxu0 %v224
  %306 = vmatprep.subr.bf16.mxu0 0
  %307 = vmatpush1.bf16.msra.mxu0 %v225
  %308 = vmatprep.subr.bf16.mxu0 0
  %309 = vmatpush1.bf16.msra.mxu0 %v226
  %310 = vmatprep.subr.bf16.mxu0 0
  %311 = vmatpush1.bf16.msra.mxu0 %v227
  %312 = vmatprep.subr.bf16.mxu0 0
  %313 = vmatpush1.bf16.msra.mxu0 %v228
  %314 = vmatprep.subr.bf16.mxu0 0
  %315 = vmatpush1.bf16.msra.mxu0 %v229
  %316 = vmatprep.subr.bf16.mxu0 0
  %317 = vmatpush1.bf16.msra.mxu0 %v230
  %318 = vmatprep.subr.bf16.mxu0 0
  %319 = vmatpush1.bf16.msra.mxu0 %v231
  %320 = vmatprep.subr.bf16.mxu0 0
  %321 = vmatpush1.bf16.msra.mxu0 0
  %322 = vmatprep.subr.bf16.mxu0 0
  %323 = vmatpush1.bf16.msra.mxu0 0
  %324 = vmatprep.subr.bf16.mxu0 0
  %325 = vmatpush1.bf16.msra.mxu0 0
  %326 = vmatprep.subr.bf16.mxu0 0
  %327 = vmatpush1.bf16.msra.mxu0 0
  %328 = vmatprep.subr.bf16.mxu0 0
  %329 = vmatpush1.bf16.msra.mxu0 0
  %330 = vmatprep.subr.bf16.mxu0 0
  %331 = vmatpush1.bf16.msra.mxu0 0
  %332 = vmatprep.subr.bf16.mxu0 0
  %333 = vmatpush1.bf16.msra.mxu0 0
  %334 = vmatprep.mubr.bf16.mxu0 %v259
  %335 = vmatmul.mubr.bf16.gmra.mrb[0].mxu0 %v102
  %v336 = vpop.f32.mrb[0].mxu0
  %v337 = vadd.f32 %v296, %v336
  %v338 = vpop.f32.mrb[0].mxu0
  %v339 = vpop.f32.mrb[0].mxu0
  %v340 = vadd.f32 %v299, %v339
  %v341 = vpop.f32.mrb[0].mxu0
  %342 = vdwg.mxu0
  %v343 = vmax.f32 %v337, 0.0
  %v344 = vmax.f32 %v340, 0.0
  %v345 = vpack.c.bf16 %v344, %v343
  %v346 = vld [vmem:[%s3] sm:$0xf]
  %v347 = vld [vmem:[%s3 + $0x4] sm:$0xf]
  %v348 = vld [vmem:[%s3 + $0x8] sm:$0xf]
  %v349 = vld [vmem:[%s3 + $0xc] sm:$0xf]
  %v350 = vld [vmem:[%s3 + $0x10] sm:$0xf]
  %v351 = vld [vmem:[%s3 + $0x14] sm:$0xf]
  %v352 = vld [vmem:[%s3 + $0x18] sm:$0xf]
  %v353 = vld [vmem:[%s3 + $0x1c] sm:$0xf]
  %v354 = vld [vmem:[%s3 + $0x20] sm:$0xf]
  %v355 = vld [vmem:[%s3 + $0x24] sm:$0xf]
  %v356 = vld [vmem:[%s3 + $0x28] sm:$0xf]
  %v357 = vld [vmem:[%s3 + $0x2c] sm:$0xf]
  %v358 = vld [vmem:[%s3 + $0x30] sm:$0xf]
  %v359 = vld [vmem:[%s3 + $0x34] sm:$0xf]
  %v360 = vld [vmem:[%s3 + $0x38] sm:$0xf]
  %v361 = vld [vmem:[%s3 + $0x3c] sm:$0xf]
  %v362 = vld [vmem:[%s4] sm:$0x1]
  %v364 = vlaneseq
  %v365 = vshrl.u32 %v364, 7
  %v366 = vsub.s32 0, %v365
  %v367 = vrot.slane %v362, %v366
  %v385 = vunpack.c.l.b16 %v346
  %v386 = vunpack.c.l.b16 %v347
  %v387 = vunpack.c.l.b16 %v348
  %v388 = vunpack.c.l.b16 %v349
  %v389 = vunpack.c.l.b16 %v350
  %v390 = vunpack.c.l.b16 %v351
  %v391 = vunpack.c.l.b16 %v352
  %v392 = vunpack.c.l.b16 %v353
  %v393 = vunpack.c.l.b16 %v354
  %v394 = vunpack.c.l.b16 %v355
  %v395 = vunpack.c.l.b16 %v356
  %v396 = vunpack.c.l.b16 %v357
  %v397 = vunpack.c.l.b16 %v358
  %v398 = vunpack.c.l.b16 %v359
  %v399 = vunpack.c.l.b16 %v360
  %v400 = vunpack.c.l.b16 %v361
  %v401 = vpack.c.b16 %v386, %v385
  %v402 = vpack.c.b16 %v388, %v387
  %v403 = vpack.c.b16 %v390, %v389
  %v404 = vpack.c.b16 %v392, %v391
  %v405 = vpack.c.b16 %v394, %v393
  %v406 = vpack.c.b16 %v396, %v395
  %v407 = vpack.c.b16 %v398, %v397
  %v408 = vpack.c.b16 %v400, %v399
  %417 = vmatprep.subr.bf16.mxu0 0
  %418 = vmatpush1.bf16.msra.mxu0 %v401
  %419 = vmatprep.subr.bf16.mxu0 0
  %420 = vmatpush1.bf16.msra.mxu0 %v402
  %421 = vmatprep.subr.bf16.mxu0 0
  %422 = vmatpush1.bf16.msra.mxu0 %v403
  %423 = vmatprep.subr.bf16.mxu0 0
  %424 = vmatpush1.bf16.msra.mxu0 %v404
  %425 = vmatprep.subr.bf16.mxu0 0
  %426 = vmatpush1.bf16.msra.mxu0 %v405
  %427 = vmatprep.subr.bf16.mxu0 0
  %428 = vmatpush1.bf16.msra.mxu0 %v406
  %429 = vmatprep.subr.bf16.mxu0 0
  %430 = vmatpush1.bf16.msra.mxu0 %v407
  %431 = vmatprep.subr.bf16.mxu0 0
  %432 = vmatpush1.bf16.msra.mxu0 %v408
  %433 = vmatprep.subr.bf16.mxu0 0
  %434 = vmatpush1.bf16.msra.mxu0 0
  %435 = vmatprep.subr.bf16.mxu0 0
  %436 = vmatpush1.bf16.msra.mxu0 0
  %437 = vmatprep.subr.bf16.mxu0 0
  %438 = vmatpush1.bf16.msra.mxu0 0
  %439 = vmatprep.subr.bf16.mxu0 0
  %440 = vmatpush1.bf16.msra.mxu0 0
  %441 = vmatprep.subr.bf16.mxu0 0
  %442 = vmatpush1.bf16.msra.mxu0 0
  %443 = vmatprep.subr.bf16.mxu0 0
  %444 = vmatpush1.bf16.msra.mxu0 0
  %445 = vmatprep.subr.bf16.mxu0 0
  %446 = vmatpush1.bf16.msra.mxu0 0
  %447 = vmatprep.subr.bf16.mxu0 0
  %448 = vmatpush1.bf16.msra.mxu0 0
  %449 = vmatprep.mubr.bf16.mxu0 0
  %450 = vmatmul.mubr.bf16.gmra.mrb[0].mxu0 %v345
  %v451 = vpop.f32.mrb[0].mxu0
  %v452 = vadd.f32 %v367, %v451
  %v453 = vpop.f32.mrb[0].mxu0
  %v454 = vpop.f32.mrb[0].mxu0
  %v455 = vadd.f32 %v367, %v454
  %v456 = vpop.f32.mrb[0].mxu0
  %457 = vdwg.mxu0
  %v458 = vmax.f32 %v452, 0.0
  %v459 = vmax.f32 %v455, 0.0
  %v460 = vpack.c.bf16 %v459, %v458
  %v461 = vld [vmem:[%s5] sm:$0xf]
  %v462 = vld [vmem:[%s5 + $0x4] sm:$0xf]
  %v463 = vld [vmem:[%s5 + $0x8] sm:$0xf]
  %v464 = vld [vmem:[%s5 + $0xc] sm:$0xf]
  %v465 = vld [vmem:[%s5 + $0x10] sm:$0xf]
  %v466 = vld [vmem:[%s5 + $0x14] sm:$0xf]
  %v467 = vld [vmem:[%s5 + $0x18] sm:$0xf]
  %v468 = vld [vmem:[%s5 + $0x1c] sm:$0xf]
  %v469 = vld [vmem:[%s5 + $0x20] sm:$0xf]
  %v470 = vld [vmem:[%s5 + $0x24] sm:$0xf]
  %v471 = vld [vmem:[%s5 + $0x28] sm:$0xf]
  %v472 = vld [vmem:[%s5 + $0x2c] sm:$0xf]
  %v473 = vld [vmem:[%s5 + $0x30] sm:$0xf]
  %v474 = vld [vmem:[%s5 + $0x34] sm:$0xf]
  %v475 = vld [vmem:[%s5 + $0x38] sm:$0xf]
  %v476 = vld [vmem:[%s5 + $0x3c] sm:$0xf]
  %v477 = vld [vmem:[%s6] sm:$0x1]
  %v479 = vlaneseq
  %v480 = vshrl.u32 %v479, 7
  %v481 = vsub.s32 0, %v480
  %v482 = vrot.slane %v477, %v481
  %v500 = vunpack.c.l.b16 %v461
  %v501 = vunpack.c.l.b16 %v462
  %v502 = vunpack.c.l.b16 %v463
  %v503 = vunpack.c.l.b16 %v464
  %v504 = vunpack.c.l.b16 %v465
  %v505 = vunpack.c.l.b16 %v466
  %v506 = vunpack.c.l.b16 %v467
  %v507 = vunpack.c.l.b16 %v468
  %v508 = vunpack.c.l.b16 %v469
  %v509 = vunpack.c.l.b16 %v470
  %v510 = vunpack.c.l.b16 %v471
  %v511 = vunpack.c.l.b16 %v472
  %v512 = vunpack.c.l.b16 %v473
  %v513 = vunpack.c.l.b16 %v474
  %v514 = vunpack.c.l.b16 %v475
  %v515 = vunpack.c.l.b16 %v476
  %v516 = vpack.c.b16 %v501, %v500
  %v517 = vpack.c.b16 %v503, %v502
  %v518 = vpack.c.b16 %v505, %v504
  %v519 = vpack.c.b16 %v507, %v506
  %v520 = vpack.c.b16 %v509, %v508
  %v521 = vpack.c.b16 %v511, %v510
  %v522 = vpack.c.b16 %v513, %v512
  %v523 = vpack.c.b16 %v515, %v514
  %532 = vmatprep.subr.bf16.mxu0 0
  %533 = vmatpush1.bf16.msra.mxu0 %v516
  %534 = vmatprep.subr.bf16.mxu0 0
  %535 = vmatpush1.bf16.msra.mxu0 %v517
  %536 = vmatprep.subr.bf16.mxu0 0
  %537 = vmatpush1.bf16.msra.mxu0 %v518
  %538 = vmatprep.subr.bf16.mxu0 0
  %539 = vmatpush1.bf16.msra.mxu0 %v519
  %540 = vmatprep.subr.bf16.mxu0 0
  %541 = vmatpush1.bf16.msra.mxu0 %v520
  %542 = vmatprep.subr.bf16.mxu0 0
  %543 = vmatpush1.bf16.msra.mxu0 %v521
  %544 = vmatprep.subr.bf16.mxu0 0
  %545 = vmatpush1.bf16.msra.mxu0 %v522
  %546 = vmatprep.subr.bf16.mxu0 0
  %547 = vmatpush1.bf16.msra.mxu0 %v523
  %548 = vmatprep.subr.bf16.mxu0 0
  %549 = vmatpush1.bf16.msra.mxu0 0
  %550 = vmatprep.subr.bf16.mxu0 0
  %551 = vmatpush1.bf16.msra.mxu0 0
  %552 = vmatprep.subr.bf16.mxu0 0
  %553 = vmatpush1.bf16.msra.mxu0 0
  %554 = vmatprep.subr.bf16.mxu0 0
  %555 = vmatpush1.bf16.msra.mxu0 0
  %556 = vmatprep.subr.bf16.mxu0 0
  %557 = vmatpush1.bf16.msra.mxu0 0
  %558 = vmatprep.subr.bf16.mxu0 0
  %559 = vmatpush1.bf16.msra.mxu0 0
  %560 = vmatprep.subr.bf16.mxu0 0
  %561 = vmatpush1.bf16.msra.mxu0 0
  %562 = vmatprep.subr.bf16.mxu0 0
  %563 = vmatpush1.bf16.msra.mxu0 0
  %564 = vmatprep.mubr.bf16.mxu0 0
  %565 = vmatmul.mubr.bf16.gmra.mrb[0].mxu0 %v460
  %v566 = vpop.f32.mrb[0].mxu0
  %v567 = vadd.f32 %v482, %v566
  %v568 = vpop.f32.mrb[0].mxu0
  %v569 = vpop.f32.mrb[0].mxu0
  %v570 = vadd.f32 %v482, %v569
  %v571 = vpop.f32.mrb[0].mxu0
  %572 = vdwg.mxu0
  %573 = vst [vmem:[%s7] sm:$0xff] %v567
  %574 = vst [vmem:[%s7 + $0x8] sm:$0xff] %v570
  // Predicated region
  $region30: #{net_forward.5} parent=0 // pred_check
    _
  $region31: #{net_forward.5} parent=0 // pred_check_branch
    %576 = sbr.rel (0) target = $region33
  $region32: #{net_forward.5} parent=0 // pred_region
    _
  $region33: #{net_forward.5} parent=0 // pred_fallthru
    _
  // Predicated region
  $region34: #{net_forward.5} parent=0 // pred_check
    _
  $region35: #{net_forward.5} parent=0 // pred_check_branch
    %578 = sbr.rel (0) target = $region37
  $region36: #{net_forward.5} parent=0 // pred_region
    _
  $region37: #{net_forward.5} parent=0 // pred_fallthru
    _

</llo_original>
